<compile_context>
chip_gen: v7x
topology: tpu7x:2x2x1
jax: 0.10.0
libtpu: 0.0.40
codegen_flags: <defaults>
</compile_context>

<pallas_src>
import functools
import math

import jax
import jax.numpy as jnp
from jax.experimental import pallas as pl
from jax.experimental.pallas import tpu as pltpu

_BN_EPS = 1e-5
_LEAKY_SLOPE = 0.2          # GATConv default negative_slope
_NEG_INF = -1e30
_SQRT_2_OVER_PI = math.sqrt(2.0 / math.pi)


# --------------------------- in-kernel math helpers --------------------------

def _elu(x):
    # ELU(alpha=1); clamp exp arg so the unselected branch never produces inf.
    return jnp.where(x > 0, x, jnp.exp(jnp.minimum(x, 0.0)) - 1.0)


def _gelu(x):
    # TODO(synk): tanh-approximation GELU (runs on the otherwise-idle EUP slot);
    #             torch F.gelu default is exact erf (~1e-3 max deviation).
    return 0.5 * x * (1.0 + jnp.tanh(_SQRT_2_OVER_PI * (x + 0.044715 * x * x * x)))


def _masked_softmax(logits, mask, bd, *, heads, n):
    """Masked softmax over the neighbor axis on lane-packed [N, H*N] logits.

    Uses a per-head row max as the stabilizer (not the global row max), so no
    head can underflow to zeros when another head dominates the row.
    Matches PyG: p = exp(l - m) * mask; attn = p / (sum_j p + 1e-16).
    """
    lg = jnp.where(mask > 0, logits, jnp.float32(_NEG_INF))
    if heads == 1:
        m = jnp.max(lg, axis=-1, keepdims=True)
        p = jnp.exp(lg - m) * mask
        denom = jnp.sum(p, axis=-1, keepdims=True) + 1e-16
    else:
        rows = lg.shape[0]
        m = jnp.concatenate(
            [jnp.broadcast_to(
                jnp.max(lg[:, h * n:(h + 1) * n], axis=-1, keepdims=True),
                (rows, n)) for h in range(heads)],
            axis=-1)                                               # [N, H*N]
        p = jnp.exp(lg - m) * mask
        # Per-head row sums broadcast within each head block: one matmul.
        denom = jnp.dot(p, bd, preferred_element_type=jnp.float32) + 1e-16
    return p * pl.reciprocal(denom, approx=True)


def _gat_layer(x, adj, adj_t, it_m, bd, mkv, w_all, bias, *, heads, n, c):
    """GATConv (dense masked attention, self-loops already in adj), BN folded.

    w_all packs host-side: lane-packed dst/src attention projections (from the
    unscaled weight, so logits are BN-independent) plus the value transform
    (with BN gamma folded in) -> exactly one x @ w_all per layer.
    """
    xw_all = jnp.dot(x, w_all, preferred_element_type=jnp.float32)
    if heads == 1:
        xw = xw_all[:, :c]
        a_dst = xw_all[:, c:c + 1]
        a_src = xw_all[:, c + 1:c + 2]
        logits = a_dst + a_src.T                                   # [N, N]
        logits = jnp.where(logits > 0, logits, _LEAKY_SLOPE * logits)
        attn = _masked_softmax(logits, adj, None, heads=1, n=n)
        return jnp.dot(attn, xw, preferred_element_type=jnp.float32) + bias
    hn = heads * n
    dst_b = xw_all[:, :hn]                       # dst_b[i, h*N+j] = a_dst[i, h]
    # src_row[0, h*N+j] = a_src[j, h]: masked cross-sublane reduce (XLU slot).
    src_row = jnp.sum(xw_all[:, hn:2 * hn] * it_m, axis=0, keepdims=True)
    xw = xw_all[:, 2 * hn:]                                        # [N, H*C]
    logits = dst_b + src_row                                       # [N, H*N]
    logits = jnp.where(logits > 0, logits, _LEAKY_SLOPE * logits)
    attn = _masked_softmax(logits, adj_t, bd, heads=heads, n=n)
    xw_st = jnp.concatenate([xw] * heads, axis=0) * mkv            # [H*N, H*C]
    return jnp.dot(attn, xw_st, preferred_element_type=jnp.float32) + bias


def _transformer_layer(x, adj, adj_t, bd, mkv, mck, w_qkvs, b_qkvs,
                       *, heads, n, c):
    """TransformerConv (dense masked attention + root skip), QKVS fused, BN folded."""
    hc = heads * c
    qkvs = jnp.dot(x, w_qkvs, preferred_element_type=jnp.float32) + b_qkvs
    q = qkvs[:, :hc]                     # 1/sqrt(C) folded into wq/bq host-side
    k = qkvs[:, hc:2 * hc]
    v = qkvs[:, 2 * hc:3 * hc]           # BN gamma folded into wv/bv & wskip/bskip
    skip = qkvs[:, 3 * hc:]
    if heads == 1:
        logits = jnp.dot(q, k.T, preferred_element_type=jnp.float32)   # [N, N]
        attn = _masked_softmax(logits, adj, None, heads=1, n=n)
        return jnp.dot(attn, v, preferred_element_type=jnp.float32) + skip
    kt = jnp.concatenate([k.T] * heads, axis=1) * mck              # [H*C, H*N]
    logits = jnp.dot(q, kt, preferred_element_type=jnp.float32)    # [N, H*N]
    attn = _masked_softmax(logits, adj_t, bd, heads=heads, n=n)
    v_st = jnp.concatenate([v] * heads, axis=0) * mkv              # [H*N, H*C]
    return jnp.dot(attn, v_st, preferred_element_type=jnp.float32) + skip


# --------------------------------- fused kernel -------------------------------

def _fused_kernel(x_ref, adj_m_ref, adj_s_ref, adj_mt_ref, adj_st_ref,
                  it_ref, bd_ref, mkv_ref, mck_ref,
                  g1w_ref, g1b_ref, g2w_ref, g2b_ref, g3w_ref, g3b_ref,
                  t1w_ref, t1b_ref, t2w_ref, t2b_ref, t3w_ref, t3b_ref,
                  fw1a_ref, fw1b_ref, fb1_ref, fw2_ref, fb2_ref,
                  out_ref, *, n, hidden, heads):
    x = x_ref[...]
    adj_m, adj_s = adj_m_ref[...], adj_s_ref[...]
    adj_mt, adj_st = adj_mt_ref[...], adj_st_ref[...]
    it_m, bd = it_ref[...], bd_ref[...]
    mkv, mck = mkv_ref[...], mck_ref[...]

    # ---- EdgeGAT branch: GAT+BN+ELU -> GAT+BN+ELU -> GAT (dropout: eval no-op)
    h = _elu(_gat_layer(x, adj_m, adj_mt, it_m, bd, mkv,
                        g1w_ref[...], g1b_ref[...], heads=heads, n=n, c=hidden))
    h = _elu(_gat_layer(h, adj_m, adj_mt, it_m, bd, mkv,
                        g2w_ref[...], g2b_ref[...], heads=heads, n=n, c=hidden))
    x_main = _gat_layer(h, adj_m, None, None, None, None,
                        g3w_ref[...], g3b_ref[...], heads=1, n=n, c=hidden)

    # ---- TransformerGNN branch: TC+BN+GELU -> TC+BN+GELU -> TC ---------------
    # TODO(synk): on v7x these two independent branches could run on the two
    #             TensorCores via pl.core_map; single-TC execution here.
    s = _gelu(_transformer_layer(x, adj_s, adj_st, bd, mkv, mck,
                                 t1w_ref[...], t1b_ref[...],
                                 heads=heads, n=n, c=hidden))
    s = _gelu(_transformer_layer(s, adj_s, adj_st, bd, mkv, mck,
                                 t2w_ref[...], t2b_ref[...],
                                 heads=heads, n=n, c=hidden))
    x_sim = _transformer_layer(s, adj_s, None, None, None, None,
                               t3w_ref[...], t3b_ref[...],
                               heads=1, n=n, c=hidden)

    # ---- Fusion MLP: Linear -> BN(folded) -> ReLU -> (Dropout no-op) -> Linear
    # cat([x_main, x_sim], dim=1) @ W1 folded into a split matmul.
    f = (jnp.dot(x_main, fw1a_ref[...], preferred_element_type=jnp.float32) +
         jnp.dot(x_sim, fw1b_ref[...], preferred_element_type=jnp.float32) +
         fb1_ref[...])
    f = jnp.maximum(f, 0.0)
    # Final projection zero-padded to 128 lanes -> single lane-dense store.
    out_ref[...] = (jnp.dot(f, fw2_ref[...], preferred_element_type=jnp.float32) +
                    fb2_ref[...])


# ----------------------------------- wrapper ----------------------------------

def _dense_adj(edge_index, n):
    # TODO(synk): .at[].set dedups repeated edges; PyG softmax over edge_index
    #             would count multi-edges separately.
    src, dst = edge_index[0], edge_index[1]
    return jnp.zeros((n, n), jnp.float32).at[dst, src].set(1.0)


def multiview_gnn_forward(x, edge_index_main, edge_index_sim, packed,
                          *, hidden, out_ch, heads):
    n = x.shape[0]
    hn, hc = heads * n, heads * hidden

    adj_m = _dense_adj(edge_index_main, n)
    adj_m = jnp.maximum(adj_m, jnp.eye(n, dtype=jnp.float32))  # GATConv self loops
    adj_s = _dense_adj(edge_index_sim, n)                      # TransformerConv: none
    # Lane-tiled masks adj_t[i, h*N+j] = adj[i, j] (built here, not in-kernel).
    adj_mt = jnp.tile(adj_m, (1, heads))
    adj_st = jnp.tile(adj_s, (1, heads))

    # Head-packing constants (one-shot DMA into VMEM; nothing built in-kernel).
    f32 = jnp.float32
    r_n, r_hn, r_hc = jnp.arange(n), jnp.arange(hn), jnp.arange(hc)
    it_m = (r_hn[None, :] % n == r_n[:, None]).astype(f32)             # [N, H*N]
    bd = (r_hn[:, None] // n == r_hn[None, :] // n).astype(f32)        # [H*N, H*N]
    mkv = (r_hn[:, None] // n == r_hc[None, :] // hidden).astype(f32)  # [H*N, H*C]
    mck = mkv.T                                                        # [H*C, H*N]

    args = (x, adj_m, adj_s, adj_mt, adj_st, it_m, bd, mkv, mck,
            packed["g1w"], packed["g1b"], packed["g2w"], packed["g2b"],
            packed["g3w"], packed["g3b"],
            packed["t1w"], packed["t1b"], packed["t2w"], packed["t2b"],
            packed["t3w"], packed["t3b"],
            packed["fw1a"], packed["fw1b"], packed["fb1"],
            packed["fw2"], packed["fb2"])

    out_pad = packed["fw2"].shape[1]
    kernel = functools.partial(_fused_kernel, n=n, hidden=hidden, heads=heads)
    out = pl.pallas_call(
        kernel,
        out_shape=jax.ShapeDtypeStruct((n, out_pad), jnp.float32),
        in_specs=[pl.BlockSpec(memory_space=pltpu.MemorySpace.VMEM)] * len(args),
        out_specs=pl.BlockSpec(memory_space=pltpu.MemorySpace.VMEM),
        # Everything-resident, no-grid design; explicit VMEM budget (fits all
        # generations at this scale).  TODO(synk): row-tile logits/attn over a
        # grid for large N (v7x has only 64 MiB VMEM).
        compiler_params=pltpu.CompilerParams(vmem_limit_bytes=32 * 1024 * 1024),
    )(*args)
    return out[:, :out_ch]


# ------------------------------ parameter packing -----------------------------

def _att_blockdiag(att):
    # [H, C] -> block-diagonal [H*C, H]: (xw @ blk)[:, h] = sum_c xw[:, h*C+c]*att[h, c]
    h, c = att.shape
    eye = jnp.eye(h, dtype=jnp.float32)
    return (att[:, :, None] * eye[:, None, :]).reshape(h * c, h)


def _head_expander(heads, n):
    # E[h, h*N + j] = 1: broadcasts a per-head scalar across that head's lane block.
    return jnp.repeat(jnp.eye(heads, dtype=jnp.float32), n, axis=1)


def _bn_scale(p):
    # Eval-mode BN with default running stats (mean=0, var=1).
    return p["gamma"] * (1.0 / math.sqrt(1.0 + _BN_EPS))


def pack_params(raw, *, n, hidden, out_ch, heads):
    """Host-side folding: BN into linear weights, GAT attention projections into
    the feature matmul (lane-packed), QKVS fusion, fusion-concat split, output pad."""

    def pack_gat(p, h, with_bn):
        w = p["w"]                                              # [fin, H*C]
        if with_bn:
            g = _bn_scale(p)
            w_val, bias = w * g[None, :], p["bias"] * g + p["beta"]
        else:
            w_val, bias = w, p["bias"]
        # Attention projections use the UNSCALED weight (logits are BN-independent).
        w_dst = w @ _att_blockdiag(p["att_dst"])                # [fin, H]
        w_src = w @ _att_blockdiag(p["att_src"])                # [fin, H]
        if h == 1:
            w_all = jnp.concatenate([w_val, w_dst, w_src], axis=1)        # [fin, C+2]
        else:
            e = _head_expander(h, n)                                       # [H, H*N]
            w_all = jnp.concatenate([w_dst @ e, w_src @ e, w_val], axis=1)  # [fin, 2HN+HC]
        return w_all, bias[None, :]

    def pack_trans(p, c, with_bn):
        s = 1.0 / math.sqrt(c)                                  # softmax scale -> q
        wq, bq = p["wq"] * s, p["bq"] * s
        wk, bk = p["wk"], p["bk"]
        wv, bv = p["wv"], p["bv"]
        wsk, bsk = p["wskip"], p["bskip"]
        if with_bn:
            g = _bn_scale(p)
            wv, bv = wv * g[None, :], bv * g
            wsk, bsk = wsk * g[None, :], bsk * g + p["beta"]
        w_qkvs = jnp.concatenate([wq, wk, wv, wsk], axis=1)     # [fin, 4*H*C]
        b_qkvs = jnp.concatenate([bq, bk, bv, bsk])[None, :]
        return w_qkvs, b_qkvs

    pm, ps, pf = raw["main"], raw["sim"], raw["fusion"]
    g1w, g1b = pack_gat(pm[0], heads, True)
    g2w, g2b = pack_gat(pm[1], heads, True)
    g3w, g3b = pack_gat(pm[2], 1, False)
    t1w, t1b = pack_trans(ps[0], hidden, True)
    t2w, t2b = pack_trans(ps[1], hidden, True)
    t3w, t3b = pack_trans(ps[2], hidden, False)

    g = _bn_scale(pf)
    w1 = pf["w1"] * g[None, :]
    b1 = pf["b1"] * g + pf["beta"]
    out_pad = max(128, ((out_ch + 127) // 128) * 128)
    fw2 = jnp.pad(pf["w2"], ((0, 0), (0, out_pad - out_ch)))
    fb2 = jnp.pad(pf["b2"], (0, out_pad - out_ch))

    return {"g1w": g1w, "g1b": g1b, "g2w": g2w, "g2b": g2b, "g3w": g3w, "g3b": g3b,
            "t1w": t1w, "t1b": t1b, "t2w": t2w, "t2b": t2b, "t3w": t3w, "t3b": t3b,
            "fw1a": w1[:hidden], "fw1b": w1[hidden:], "fb1": b1[None, :],
            "fw2": fw2, "fb2": fb2[None, :]}


# ------------------------------- raw parameters --------------------------------

def init_multiview_gnn(key, in_ch, hidden, out_ch, heads, scale=0.2):
    """Raw torch-layout-like parameters; folding/packing happens in pack_params."""

    def gat(k, fin, c, h, with_bn):
        ks = jax.random.split(k, 6)
        p = {"w": scale * jax.random.normal(ks[0], (fin, h * c), jnp.float32),
             "att_src": scale * jax.random.normal(ks[1], (h, c), jnp.float32),
             "att_dst": scale * jax.random.normal(ks[2], (h, c), jnp.float32),
             "bias": 0.01 * jax.random.normal(ks[3], (h * c,), jnp.float32)}
        if with_bn:
            p["gamma"] = 1.0 + 0.1 * jax.random.normal(ks[4], (h * c,), jnp.float32)
            p["beta"] = 0.1 * jax.random.normal(ks[5], (h * c,), jnp.float32)
        return p

    def trans(k, fin, c, h, with_bn):
        ks = jax.random.split(k, 10)
        d = h * c
        p = {}
        for i, nm in enumerate(("q", "k", "v", "skip")):
            p["w" + nm] = scale * jax.random.normal(ks[2 * i], (fin, d), jnp.float32)
            p["b" + nm] = 0.01 * jax.random.normal(ks[2 * i + 1], (d,), jnp.float32)
        if with_bn:
            p["gamma"] = 1.0 + 0.1 * jax.random.normal(ks[8], (d,), jnp.float32)
            p["beta"] = 0.1 * jax.random.normal(ks[9], (d,), jnp.float32)
        return p

    km, ksim, kfu = jax.random.split(key, 3)
    km1, km2, km3 = jax.random.split(km, 3)
    ks1, ks2, ks3 = jax.random.split(ksim, 3)
    kf = jax.random.split(kfu, 6)
    fusion = {
        "w1": scale * jax.random.normal(kf[0], (2 * hidden, hidden), jnp.float32),
        "b1": 0.01 * jax.random.normal(kf[1], (hidden,), jnp.float32),
        "gamma": 1.0 + 0.1 * jax.random.normal(kf[2], (hidden,), jnp.float32),
        "beta": 0.1 * jax.random.normal(kf[3], (hidden,), jnp.float32),
        "w2": scale * jax.random.normal(kf[4], (hidden, out_ch), jnp.float32),
        "b2": 0.01 * jax.random.normal(kf[5], (out_ch,), jnp.float32),
    }
    return {
        "main": [gat(km1, in_ch, hidden, heads, True),
                 gat(km2, hidden * heads, hidden, heads, True),
                 gat(km3, hidden * heads, hidden, 1, False)],
        "sim": [trans(ks1, in_ch, hidden, heads, True),
                trans(ks2, hidden * heads, hidden, heads, True),
                trans(ks3, hidden * heads, hidden, 1, False)],
        "fusion": fusion,
    }


# ------------------------------------ main -------------------------------------

if __name__ == "__main__":
    N, IN_CH, HIDDEN, OUT_CH, HEADS, N_EDGES = 32, 8, 16, 4, 4, 96

    key = jax.random.PRNGKey(0)
    kx, kem1, kem2, kes1, kes2, kp = jax.random.split(key, 6)

    x = jax.random.normal(kx, (N, IN_CH), jnp.float32)
    edge_index_main = jnp.stack(
        [jax.random.randint(kem1, (N_EDGES,), 0, N),
         jax.random.randint(kem2, (N_EDGES,), 0, N)]).astype(jnp.int32)
    edge_index_sim = jnp.stack(
        [jax.random.randint(kes1, (N_EDGES,), 0, N),
         jax.random.randint(kes2, (N_EDGES,), 0, N)]).astype(jnp.int32)

    raw_params = init_multiview_gnn(kp, IN_CH, HIDDEN, OUT_CH, HEADS)
    packed = pack_params(raw_params, n=N, hidden=HIDDEN, out_ch=OUT_CH, heads=HEADS)

    fwd = jax.jit(functools.partial(multiview_gnn_forward,
                                    hidden=HIDDEN, out_ch=OUT_CH, heads=HEADS))
    out = fwd(x, edge_index_main, edge_index_sim, packed)
    out = jax.block_until_ready(out)
    assert out.shape == (N, OUT_CH), out.shape
    assert bool(jnp.all(jnp.isfinite(out)))
    print("KERNEL_OK")
</pallas_src>

<mosaic_0001>
module attributes {stable_mosaic.version = 11 : i64} {
  func.func @_fused_kernel(%arg0: memref<32x8xf32, #tpu.memory_space<vmem>>, %arg1: memref<32x32xf32, #tpu.memory_space<vmem>>, %arg2: memref<32x32xf32, #tpu.memory_space<vmem>>, %arg3: memref<32x128xf32, #tpu.memory_space<vmem>>, %arg4: memref<32x128xf32, #tpu.memory_space<vmem>>, %arg5: memref<32x128xf32, #tpu.memory_space<vmem>>, %arg6: memref<128x128xf32, #tpu.memory_space<vmem>>, %arg7: memref<128x64xf32, #tpu.memory_space<vmem>>, %arg8: memref<64x128xf32, #tpu.memory_space<vmem>>, %arg9: memref<8x320xf32, #tpu.memory_space<vmem>>, %arg10: memref<1x64xf32, #tpu.memory_space<vmem>>, %arg11: memref<64x320xf32, #tpu.memory_space<vmem>>, %arg12: memref<1x64xf32, #tpu.memory_space<vmem>>, %arg13: memref<64x18xf32, #tpu.memory_space<vmem>>, %arg14: memref<1x16xf32, #tpu.memory_space<vmem>>, %arg15: memref<8x256xf32, #tpu.memory_space<vmem>>, %arg16: memref<1x256xf32, #tpu.memory_space<vmem>>, %arg17: memref<64x256xf32, #tpu.memory_space<vmem>>, %arg18: memref<1x256xf32, #tpu.memory_space<vmem>>, %arg19: memref<64x64xf32, #tpu.memory_space<vmem>>, %arg20: memref<1x64xf32, #tpu.memory_space<vmem>>, %arg21: memref<16x16xf32, #tpu.memory_space<vmem>>, %arg22: memref<16x16xf32, #tpu.memory_space<vmem>>, %arg23: memref<1x16xf32, #tpu.memory_space<vmem>>, %arg24: memref<16x128xf32, #tpu.memory_space<vmem>>, %arg25: memref<1x128xf32, #tpu.memory_space<vmem>>, %arg26: memref<32x128xf32, #tpu.memory_space<vmem>>) attributes {dimension_semantics = [], scalar_prefetch = 0 : i64, scratch_operands = 0 : i64, tpu.core_type = #tpu.core_type<tc>} {
    %c0 = arith.constant 0 : index
    %c0_0 = arith.constant 0 : index
    %0 = vector.load %arg0[%c0, %c0_0] : memref<32x8xf32, #tpu.memory_space<vmem>>, vector<32x8xf32>
    %c0_1 = arith.constant 0 : index
    %c0_2 = arith.constant 0 : index
    %1 = vector.load %arg1[%c0_1, %c0_2] : memref<32x32xf32, #tpu.memory_space<vmem>>, vector<32x32xf32>
    %c0_3 = arith.constant 0 : index
    %c0_4 = arith.constant 0 : index
    %2 = vector.load %arg2[%c0_3, %c0_4] : memref<32x32xf32, #tpu.memory_space<vmem>>, vector<32x32xf32>
    %c0_5 = arith.constant 0 : index
    %c0_6 = arith.constant 0 : index
    %3 = vector.load %arg3[%c0_5, %c0_6] : memref<32x128xf32, #tpu.memory_space<vmem>>, vector<32x128xf32>
    %c0_7 = arith.constant 0 : index
    %c0_8 = arith.constant 0 : index
    %4 = vector.load %arg4[%c0_7, %c0_8] : memref<32x128xf32, #tpu.memory_space<vmem>>, vector<32x128xf32>
    %c0_9 = arith.constant 0 : index
    %c0_10 = arith.constant 0 : index
    %5 = vector.load %arg5[%c0_9, %c0_10] : memref<32x128xf32, #tpu.memory_space<vmem>>, vector<32x128xf32>
    %c0_11 = arith.constant 0 : index
    %c0_12 = arith.constant 0 : index
    %6 = vector.load %arg6[%c0_11, %c0_12] : memref<128x128xf32, #tpu.memory_space<vmem>>, vector<128x128xf32>
    %c0_13 = arith.constant 0 : index
    %c0_14 = arith.constant 0 : index
    %7 = vector.load %arg7[%c0_13, %c0_14] : memref<128x64xf32, #tpu.memory_space<vmem>>, vector<128x64xf32>
    %c0_15 = arith.constant 0 : index
    %c0_16 = arith.constant 0 : index
    %8 = vector.load %arg8[%c0_15, %c0_16] : memref<64x128xf32, #tpu.memory_space<vmem>>, vector<64x128xf32>
    %c0_17 = arith.constant 0 : index
    %c0_18 = arith.constant 0 : index
    %9 = vector.load %arg9[%c0_17, %c0_18] : memref<8x320xf32, #tpu.memory_space<vmem>>, vector<8x320xf32>
    %c0_19 = arith.constant 0 : index
    %c0_20 = arith.constant 0 : index
    %10 = vector.load %arg10[%c0_19, %c0_20] : memref<1x64xf32, #tpu.memory_space<vmem>>, vector<1x64xf32>
    %cst = arith.constant dense<0.000000e+00> : vector<32x320xf32>
    %11 = tpu.matmul %0, %9, %cst {dimension_numbers = #tpu.dot_dimension_numbers<[1], [0], [0], [1], [0, 0, 1, 1], [], []>} : vector<32x8xf32>, vector<8x320xf32>, vector<32x320xf32> -> vector<32x320xf32>
    %12 = vector.extract_strided_slice %11 {offsets = [0, 0], sizes = [32, 128], strides = [1, 1]} : vector<32x320xf32> to vector<32x128xf32>
    %13 = vector.extract_strided_slice %11 {offsets = [0, 128], sizes = [32, 128], strides = [1, 1]} : vector<32x320xf32> to vector<32x128xf32>
    %14 = arith.mulf %13, %5 : vector<32x128xf32>
    %cst_21 = arith.constant dense<0.000000e+00> : vector<128xf32>
    %15 = vector.multi_reduction <add>, %14, %cst_21 [0] : vector<32x128xf32> to vector<128xf32>
    %16 = vector.shape_cast %15 : vector<128xf32> to vector<1x128xf32>
    %17 = vector.extract_strided_slice %11 {offsets = [0, 256], sizes = [32, 64], strides = [1, 1]} : vector<32x320xf32> to vector<32x64xf32>
    %18 = vector.broadcast %16 : vector<1x128xf32> to vector<32x128xf32>
    %19 = arith.addf %12, %18 : vector<32x128xf32>
    %cst_22 = arith.constant 0.000000e+00 : f32
    %20 = vector.broadcast %cst_22 : f32 to vector<32x128xf32>
    %21 = arith.cmpf ogt, %19, %20 : vector<32x128xf32>
    %cst_23 = arith.constant 2.000000e-01 : f32
    %22 = vector.broadcast %cst_23 : f32 to vector<32x128xf32>
    %23 = arith.mulf %22, %19 : vector<32x128xf32>
    %24 = arith.select %21, %19, %23 : vector<32x128xi1>, vector<32x128xf32>
    %cst_24 = arith.constant 0.000000e+00 : f32
    %25 = vector.broadcast %cst_24 : f32 to vector<32x128xf32>
    %26 = arith.cmpf ogt, %3, %25 : vector<32x128xf32>
    %cst_25 = arith.constant -1.000000e+30 : f32
    %27 = vector.broadcast %cst_25 : f32 to vector<32x128xf32>
    %28 = arith.select %26, %24, %27 : vector<32x128xi1>, vector<32x128xf32>
    %29 = vector.extract_strided_slice %28 {offsets = [0, 0], sizes = [32, 32], strides = [1, 1]} : vector<32x128xf32> to vector<32x32xf32>
    %cst_26 = arith.constant dense<0xFF800000> : vector<32xf32>
    %30 = vector.multi_reduction <maximumf>, %29, %cst_26 [1] : vector<32x32xf32> to vector<32xf32>
    %31 = vector.shape_cast %30 : vector<32xf32> to vector<32x1xf32>
    %32 = vector.shape_cast %31 : vector<32x1xf32> to vector<32x1xf32>
    %33 = vector.broadcast %32 : vector<32x1xf32> to vector<32x32xf32>
    %34 = vector.extract_strided_slice %28 {offsets = [0, 32], sizes = [32, 32], strides = [1, 1]} : vector<32x128xf32> to vector<32x32xf32>
    %cst_27 = arith.constant dense<0xFF800000> : vector<32xf32>
    %35 = vector.multi_reduction <maximumf>, %34, %cst_27 [1] : vector<32x32xf32> to vector<32xf32>
    %36 = vector.shape_cast %35 : vector<32xf32> to vector<32x1xf32>
    %37 = vector.shape_cast %36 : vector<32x1xf32> to vector<32x1xf32>
    %38 = vector.broadcast %37 : vector<32x1xf32> to vector<32x32xf32>
    %39 = vector.extract_strided_slice %28 {offsets = [0, 64], sizes = [32, 32], strides = [1, 1]} : vector<32x128xf32> to vector<32x32xf32>
    %cst_28 = arith.constant dense<0xFF800000> : vector<32xf32>
    %40 = vector.multi_reduction <maximumf>, %39, %cst_28 [1] : vector<32x32xf32> to vector<32xf32>
    %41 = vector.shape_cast %40 : vector<32xf32> to vector<32x1xf32>
    %42 = vector.shape_cast %41 : vector<32x1xf32> to vector<32x1xf32>
    %43 = vector.broadcast %42 : vector<32x1xf32> to vector<32x32xf32>
    %44 = vector.extract_strided_slice %28 {offsets = [0, 96], sizes = [32, 32], strides = [1, 1]} : vector<32x128xf32> to vector<32x32xf32>
    %cst_29 = arith.constant dense<0xFF800000> : vector<32xf32>
    %45 = vector.multi_reduction <maximumf>, %44, %cst_29 [1] : vector<32x32xf32> to vector<32xf32>
    %46 = vector.shape_cast %45 : vector<32xf32> to vector<32x1xf32>
    %47 = vector.shape_cast %46 : vector<32x1xf32> to vector<32x1xf32>
    %48 = vector.broadcast %47 : vector<32x1xf32> to vector<32x32xf32>
    %49 = tpu.concatenate %33, %38, %43, %48 in 1 : vector<32x32xf32>, vector<32x32xf32>, vector<32x32xf32>, vector<32x32xf32> -> vector<32x128xf32>
    %50 = arith.subf %28, %49 : vector<32x128xf32>
    %51 = math.exp %50 : vector<32x128xf32>
    %52 = arith.mulf %51, %3 : vector<32x128xf32>
    %cst_30 = arith.constant dense<0.000000e+00> : vector<32x128xf32>
    %53 = tpu.matmul %52, %6, %cst_30 {dimension_numbers = #tpu.dot_dimension_numbers<[1], [0], [0], [1], [0, 0, 1, 1], [], []>} : vector<32x128xf32>, vector<128x128xf32>, vector<32x128xf32> -> vector<32x128xf32>
    %cst_31 = arith.constant 1.000000e-16 : f32
    %54 = vector.broadcast %cst_31 : f32 to vector<32x128xf32>
    %55 = arith.addf %53, %54 : vector<32x128xf32>
    %56 = tpu.reciprocal %55 {approx = true} : vector<32x128xf32> -> vector<32x128xf32>
    %57 = arith.mulf %52, %56 : vector<32x128xf32>
    %58 = tpu.concatenate %17, %17, %17, %17 in 0 : vector<32x64xf32>, vector<32x64xf32>, vector<32x64xf32>, vector<32x64xf32> -> vector<128x64xf32>
    %59 = arith.mulf %58, %7 : vector<128x64xf32>
    %cst_32 = arith.constant dense<0.000000e+00> : vector<32x64xf32>
    %60 = tpu.matmul %57, %59, %cst_32 {dimension_numbers = #tpu.dot_dimension_numbers<[1], [0], [0], [1], [0, 0, 1, 1], [], []>} : vector<32x128xf32>, vector<128x64xf32>, vector<32x64xf32> -> vector<32x64xf32>
    %61 = vector.broadcast %10 : vector<1x64xf32> to vector<32x64xf32>
    %62 = arith.addf %60, %61 : vector<32x64xf32>
    %cst_33 = arith.constant 0.000000e+00 : f32
    %63 = vector.broadcast %cst_33 : f32 to vector<32x64xf32>
    %64 = arith.cmpf ogt, %62, %63 : vector<32x64xf32>
    %cst_34 = arith.constant 0.000000e+00 : f32
    %65 = vector.broadcast %cst_34 : f32 to vector<32x64xf32>
    %66 = arith.minimumf %62, %65 : vector<32x64xf32>
    %67 = math.exp %66 : vector<32x64xf32>
    %cst_35 = arith.constant 1.000000e+00 : f32
    %68 = vector.broadcast %cst_35 : f32 to vector<32x64xf32>
    %69 = arith.subf %67, %68 : vector<32x64xf32>
    %70 = arith.select %64, %62, %69 : vector<32x64xi1>, vector<32x64xf32>
    %c0_36 = arith.constant 0 : index
    %c0_37 = arith.constant 0 : index
    %71 = vector.load %arg11[%c0_36, %c0_37] : memref<64x320xf32, #tpu.memory_space<vmem>>, vector<64x320xf32>
    %c0_38 = arith.constant 0 : index
    %c0_39 = arith.constant 0 : index
    %72 = vector.load %arg12[%c0_38, %c0_39] : memref<1x64xf32, #tpu.memory_space<vmem>>, vector<1x64xf32>
    %cst_40 = arith.constant dense<0.000000e+00> : vector<32x320xf32>
    %73 = tpu.matmul %70, %71, %cst_40 {dimension_numbers = #tpu.dot_dimension_numbers<[1], [0], [0], [1], [0, 0, 1, 1], [], []>} : vector<32x64xf32>, vector<64x320xf32>, vector<32x320xf32> -> vector<32x320xf32>
    %74 = vector.extract_strided_slice %73 {offsets = [0, 0], sizes = [32, 128], strides = [1, 1]} : vector<32x320xf32> to vector<32x128xf32>
    %75 = vector.extract_strided_slice %73 {offsets = [0, 128], sizes = [32, 128], strides = [1, 1]} : vector<32x320xf32> to vector<32x128xf32>
    %76 = arith.mulf %75, %5 : vector<32x128xf32>
    %cst_41 = arith.constant dense<0.000000e+00> : vector<128xf32>
    %77 = vector.multi_reduction <add>, %76, %cst_41 [0] : vector<32x128xf32> to vector<128xf32>
    %78 = vector.shape_cast %77 : vector<128xf32> to vector<1x128xf32>
    %79 = vector.extract_strided_slice %73 {offsets = [0, 256], sizes = [32, 64], strides = [1, 1]} : vector<32x320xf32> to vector<32x64xf32>
    %80 = vector.broadcast %78 : vector<1x128xf32> to vector<32x128xf32>
    %81 = arith.addf %74, %80 : vector<32x128xf32>
    %cst_42 = arith.constant 0.000000e+00 : f32
    %82 = vector.broadcast %cst_42 : f32 to vector<32x128xf32>
    %83 = arith.cmpf ogt, %81, %82 : vector<32x128xf32>
    %cst_43 = arith.constant 2.000000e-01 : f32
    %84 = vector.broadcast %cst_43 : f32 to vector<32x128xf32>
    %85 = arith.mulf %84, %81 : vector<32x128xf32>
    %86 = arith.select %83, %81, %85 : vector<32x128xi1>, vector<32x128xf32>
    %cst_44 = arith.constant 0.000000e+00 : f32
    %87 = vector.broadcast %cst_44 : f32 to vector<32x128xf32>
    %88 = arith.cmpf ogt, %3, %87 : vector<32x128xf32>
    %cst_45 = arith.constant -1.000000e+30 : f32
    %89 = vector.broadcast %cst_45 : f32 to vector<32x128xf32>
    %90 = arith.select %88, %86, %89 : vector<32x128xi1>, vector<32x128xf32>
    %91 = vector.extract_strided_slice %90 {offsets = [0, 0], sizes = [32, 32], strides = [1, 1]} : vector<32x128xf32> to vector<32x32xf32>
    %cst_46 = arith.constant dense<0xFF800000> : vector<32xf32>
    %92 = vector.multi_reduction <maximumf>, %91, %cst_46 [1] : vector<32x32xf32> to vector<32xf32>
    %93 = vector.shape_cast %92 : vector<32xf32> to vector<32x1xf32>
    %94 = vector.shape_cast %93 : vector<32x1xf32> to vector<32x1xf32>
    %95 = vector.broadcast %94 : vector<32x1xf32> to vector<32x32xf32>
    %96 = vector.extract_strided_slice %90 {offsets = [0, 32], sizes = [32, 32], strides = [1, 1]} : vector<32x128xf32> to vector<32x32xf32>
    %cst_47 = arith.constant dense<0xFF800000> : vector<32xf32>
    %97 = vector.multi_reduction <maximumf>, %96, %cst_47 [1] : vector<32x32xf32> to vector<32xf32>
    %98 = vector.shape_cast %97 : vector<32xf32> to vector<32x1xf32>
    %99 = vector.shape_cast %98 : vector<32x1xf32> to vector<32x1xf32>
    %100 = vector.broadcast %99 : vector<32x1xf32> to vector<32x32xf32>
    %101 = vector.extract_strided_slice %90 {offsets = [0, 64], sizes = [32, 32], strides = [1, 1]} : vector<32x128xf32> to vector<32x32xf32>
    %cst_48 = arith.constant dense<0xFF800000> : vector<32xf32>
    %102 = vector.multi_reduction <maximumf>, %101, %cst_48 [1] : vector<32x32xf32> to vector<32xf32>
    %103 = vector.shape_cast %102 : vector<32xf32> to vector<32x1xf32>
    %104 = vector.shape_cast %103 : vector<32x1xf32> to vector<32x1xf32>
    %105 = vector.broadcast %104 : vector<32x1xf32> to vector<32x32xf32>
    %106 = vector.extract_strided_slice %90 {offsets = [0, 96], sizes = [32, 32], strides = [1, 1]} : vector<32x128xf32> to vector<32x32xf32>
    %cst_49 = arith.constant dense<0xFF800000> : vector<32xf32>
    %107 = vector.multi_reduction <maximumf>, %106, %cst_49 [1] : vector<32x32xf32> to vector<32xf32>
    %108 = vector.shape_cast %107 : vector<32xf32> to vector<32x1xf32>
    %109 = vector.shape_cast %108 : vector<32x1xf32> to vector<32x1xf32>
    %110 = vector.broadcast %109 : vector<32x1xf32> to vector<32x32xf32>
    %111 = tpu.concatenate %95, %100, %105, %110 in 1 : vector<32x32xf32>, vector<32x32xf32>, vector<32x32xf32>, vector<32x32xf32> -> vector<32x128xf32>
    %112 = arith.subf %90, %111 : vector<32x128xf32>
    %113 = math.exp %112 : vector<32x128xf32>
    %114 = arith.mulf %113, %3 : vector<32x128xf32>
    %cst_50 = arith.constant dense<0.000000e+00> : vector<32x128xf32>
    %115 = tpu.matmul %114, %6, %cst_50 {dimension_numbers = #tpu.dot_dimension_numbers<[1], [0], [0], [1], [0, 0, 1, 1], [], []>} : vector<32x128xf32>, vector<128x128xf32>, vector<32x128xf32> -> vector<32x128xf32>
    %cst_51 = arith.constant 1.000000e-16 : f32
    %116 = vector.broadcast %cst_51 : f32 to vector<32x128xf32>
    %117 = arith.addf %115, %116 : vector<32x128xf32>
    %118 = tpu.reciprocal %117 {approx = true} : vector<32x128xf32> -> vector<32x128xf32>
    %119 = arith.mulf %114, %118 : vector<32x128xf32>
    %120 = tpu.concatenate %79, %79, %79, %79 in 0 : vector<32x64xf32>, vector<32x64xf32>, vector<32x64xf32>, vector<32x64xf32> -> vector<128x64xf32>
    %121 = arith.mulf %120, %7 : vector<128x64xf32>
    %cst_52 = arith.constant dense<0.000000e+00> : vector<32x64xf32>
    %122 = tpu.matmul %119, %121, %cst_52 {dimension_numbers = #tpu.dot_dimension_numbers<[1], [0], [0], [1], [0, 0, 1, 1], [], []>} : vector<32x128xf32>, vector<128x64xf32>, vector<32x64xf32> -> vector<32x64xf32>
    %123 = vector.broadcast %72 : vector<1x64xf32> to vector<32x64xf32>
    %124 = arith.addf %122, %123 : vector<32x64xf32>
    %cst_53 = arith.constant 0.000000e+00 : f32
    %125 = vector.broadcast %cst_53 : f32 to vector<32x64xf32>
    %126 = arith.cmpf ogt, %124, %125 : vector<32x64xf32>
    %cst_54 = arith.constant 0.000000e+00 : f32
    %127 = vector.broadcast %cst_54 : f32 to vector<32x64xf32>
    %128 = arith.minimumf %124, %127 : vector<32x64xf32>
    %129 = math.exp %128 : vector<32x64xf32>
    %cst_55 = arith.constant 1.000000e+00 : f32
    %130 = vector.broadcast %cst_55 : f32 to vector<32x64xf32>
    %131 = arith.subf %129, %130 : vector<32x64xf32>
    %132 = arith.select %126, %124, %131 : vector<32x64xi1>, vector<32x64xf32>
    %c0_56 = arith.constant 0 : index
    %c0_57 = arith.constant 0 : index
    %133 = vector.load %arg13[%c0_56, %c0_57] : memref<64x18xf32, #tpu.memory_space<vmem>>, vector<64x18xf32>
    %c0_58 = arith.constant 0 : index
    %c0_59 = arith.constant 0 : index
    %134 = vector.load %arg14[%c0_58, %c0_59] : memref<1x16xf32, #tpu.memory_space<vmem>>, vector<1x16xf32>
    %cst_60 = arith.constant dense<0.000000e+00> : vector<32x18xf32>
    %135 = tpu.matmul %132, %133, %cst_60 {dimension_numbers = #tpu.dot_dimension_numbers<[1], [0], [0], [1], [0, 0, 1, 1], [], []>} : vector<32x64xf32>, vector<64x18xf32>, vector<32x18xf32> -> vector<32x18xf32>
    %136 = vector.extract_strided_slice %135 {offsets = [0, 0], sizes = [32, 16], strides = [1, 1]} : vector<32x18xf32> to vector<32x16xf32>
    %137 = vector.extract_strided_slice %135 {offsets = [0, 16], sizes = [32, 1], strides = [1, 1]} : vector<32x18xf32> to vector<32x1xf32>
    %138 = vector.extract_strided_slice %135 {offsets = [0, 17], sizes = [32, 1], strides = [1, 1]} : vector<32x18xf32> to vector<32x1xf32>
    %139 = tpu.transpose %138, [1, 0] : vector<32x1xf32> -> vector<1x32xf32>
    %140 = vector.broadcast %137 : vector<32x1xf32> to vector<32x32xf32>
    %141 = vector.broadcast %139 : vector<1x32xf32> to vector<32x32xf32>
    %142 = arith.addf %140, %141 : vector<32x32xf32>
    %cst_61 = arith.constant 0.000000e+00 : f32
    %143 = vector.broadcast %cst_61 : f32 to vector<32x32xf32>
    %144 = arith.cmpf ogt, %142, %143 : vector<32x32xf32>
    %cst_62 = arith.constant 2.000000e-01 : f32
    %145 = vector.broadcast %cst_62 : f32 to vector<32x32xf32>
    %146 = arith.mulf %145, %142 : vector<32x32xf32>
    %147 = arith.select %144, %142, %146 : vector<32x32xi1>, vector<32x32xf32>
    %cst_63 = arith.constant 0.000000e+00 : f32
    %148 = vector.broadcast %cst_63 : f32 to vector<32x32xf32>
    %149 = arith.cmpf ogt, %1, %148 : vector<32x32xf32>
    %cst_64 = arith.constant -1.000000e+30 : f32
    %150 = vector.broadcast %cst_64 : f32 to vector<32x32xf32>
    %151 = arith.select %149, %147, %150 : vector<32x32xi1>, vector<32x32xf32>
    %cst_65 = arith.constant dense<0xFF800000> : vector<32xf32>
    %152 = vector.multi_reduction <maximumf>, %151, %cst_65 [1] : vector<32x32xf32> to vector<32xf32>
    %153 = vector.shape_cast %152 : vector<32xf32> to vector<32x1xf32>
    %154 = vector.broadcast %153 : vector<32x1xf32> to vector<32x32xf32>
    %155 = arith.subf %151, %154 : vector<32x32xf32>
    %156 = math.exp %155 : vector<32x32xf32>
    %157 = arith.mulf %156, %1 : vector<32x32xf32>
    %cst_66 = arith.constant dense<0.000000e+00> : vector<32xf32>
    %158 = vector.multi_reduction <add>, %157, %cst_66 [1] : vector<32x32xf32> to vector<32xf32>
    %159 = vector.shape_cast %158 : vector<32xf32> to vector<32x1xf32>
    %cst_67 = arith.constant 1.000000e-16 : f32
    %160 = vector.broadcast %cst_67 : f32 to vector<32x1xf32>
    %161 = arith.addf %159, %160 : vector<32x1xf32>
    %162 = tpu.reciprocal %161 {approx = true} : vector<32x1xf32> -> vector<32x1xf32>
    %163 = vector.broadcast %162 : vector<32x1xf32> to vector<32x32xf32>
    %164 = arith.mulf %157, %163 : vector<32x32xf32>
    %cst_68 = arith.constant dense<0.000000e+00> : vector<32x16xf32>
    %165 = tpu.matmul %164, %136, %cst_68 {dimension_numbers = #tpu.dot_dimension_numbers<[1], [0], [0], [1], [0, 0, 1, 1], [], []>} : vector<32x32xf32>, vector<32x16xf32>, vector<32x16xf32> -> vector<32x16xf32>
    %166 = vector.broadcast %134 : vector<1x16xf32> to vector<32x16xf32>
    %167 = arith.addf %165, %166 : vector<32x16xf32>
    %c0_69 = arith.constant 0 : index
    %c0_70 = arith.constant 0 : index
    %168 = vector.load %arg15[%c0_69, %c0_70] : memref<8x256xf32, #tpu.memory_space<vmem>>, vector<8x256xf32>
    %c0_71 = arith.constant 0 : index
    %c0_72 = arith.constant 0 : index
    %169 = vector.load %arg16[%c0_71, %c0_72] : memref<1x256xf32, #tpu.memory_space<vmem>>, vector<1x256xf32>
    %cst_73 = arith.constant dense<0.000000e+00> : vector<32x256xf32>
    %170 = tpu.matmul %0, %168, %cst_73 {dimension_numbers = #tpu.dot_dimension_numbers<[1], [0], [0], [1], [0, 0, 1, 1], [], []>} : vector<32x8xf32>, vector<8x256xf32>, vector<32x256xf32> -> vector<32x256xf32>
    %171 = vector.broadcast %169 : vector<1x256xf32> to vector<32x256xf32>
    %172 = arith.addf %170, %171 : vector<32x256xf32>
    %173 = vector.extract_strided_slice %172 {offsets = [0, 0], sizes = [32, 64], strides = [1, 1]} : vector<32x256xf32> to vector<32x64xf32>
    %174 = vector.extract_strided_slice %172 {offsets = [0, 64], sizes = [32, 64], strides = [1, 1]} : vector<32x256xf32> to vector<32x64xf32>
    %175 = vector.extract_strided_slice %172 {offsets = [0, 128], sizes = [32, 64], strides = [1, 1]} : vector<32x256xf32> to vector<32x64xf32>
    %176 = vector.extract_strided_slice %172 {offsets = [0, 192], sizes = [32, 64], strides = [1, 1]} : vector<32x256xf32> to vector<32x64xf32>
    %177 = tpu.transpose %174, [1, 0] : vector<32x64xf32> -> vector<64x32xf32>
    %178 = tpu.concatenate %177, %177, %177, %177 in 1 : vector<64x32xf32>, vector<64x32xf32>, vector<64x32xf32>, vector<64x32xf32> -> vector<64x128xf32>
    %179 = arith.mulf %178, %8 : vector<64x128xf32>
    %cst_74 = arith.constant dense<0.000000e+00> : vector<32x128xf32>
    %180 = tpu.matmul %173, %179, %cst_74 {dimension_numbers = #tpu.dot_dimension_numbers<[1], [0], [0], [1], [0, 0, 1, 1], [], []>} : vector<32x64xf32>, vector<64x128xf32>, vector<32x128xf32> -> vector<32x128xf32>
    %cst_75 = arith.constant 0.000000e+00 : f32
    %181 = vector.broadcast %cst_75 : f32 to vector<32x128xf32>
    %182 = arith.cmpf ogt, %4, %181 : vector<32x128xf32>
    %cst_76 = arith.constant -1.000000e+30 : f32
    %183 = vector.broadcast %cst_76 : f32 to vector<32x128xf32>
    %184 = arith.select %182, %180, %183 : vector<32x128xi1>, vector<32x128xf32>
    %185 = vector.extract_strided_slice %184 {offsets = [0, 0], sizes = [32, 32], strides = [1, 1]} : vector<32x128xf32> to vector<32x32xf32>
    %cst_77 = arith.constant dense<0xFF800000> : vector<32xf32>
    %186 = vector.multi_reduction <maximumf>, %185, %cst_77 [1] : vector<32x32xf32> to vector<32xf32>
    %187 = vector.shape_cast %186 : vector<32xf32> to vector<32x1xf32>
    %188 = vector.shape_cast %187 : vector<32x1xf32> to vector<32x1xf32>
    %189 = vector.broadcast %188 : vector<32x1xf32> to vector<32x32xf32>
    %190 = vector.extract_strided_slice %184 {offsets = [0, 32], sizes = [32, 32], strides = [1, 1]} : vector<32x128xf32> to vector<32x32xf32>
    %cst_78 = arith.constant dense<0xFF800000> : vector<32xf32>
    %191 = vector.multi_reduction <maximumf>, %190, %cst_78 [1] : vector<32x32xf32> to vector<32xf32>
    %192 = vector.shape_cast %191 : vector<32xf32> to vector<32x1xf32>
    %193 = vector.shape_cast %192 : vector<32x1xf32> to vector<32x1xf32>
    %194 = vector.broadcast %193 : vector<32x1xf32> to vector<32x32xf32>
    %195 = vector.extract_strided_slice %184 {offsets = [0, 64], sizes = [32, 32], strides = [1, 1]} : vector<32x128xf32> to vector<32x32xf32>
    %cst_79 = arith.constant dense<0xFF800000> : vector<32xf32>
    %196 = vector.multi_reduction <maximumf>, %195, %cst_79 [1] : vector<32x32xf32> to vector<32xf32>
    %197 = vector.shape_cast %196 : vector<32xf32> to vector<32x1xf32>
    %198 = vector.shape_cast %197 : vector<32x1xf32> to vector<32x1xf32>
    %199 = vector.broadcast %198 : vector<32x1xf32> to vector<32x32xf32>
    %200 = vector.extract_strided_slice %184 {offsets = [0, 96], sizes = [32, 32], strides = [1, 1]} : vector<32x128xf32> to vector<32x32xf32>
    %cst_80 = arith.constant dense<0xFF800000> : vector<32xf32>
    %201 = vector.multi_reduction <maximumf>, %200, %cst_80 [1] : vector<32x32xf32> to vector<32xf32>
    %202 = vector.shape_cast %201 : vector<32xf32> to vector<32x1xf32>
    %203 = vector.shape_cast %202 : vector<32x1xf32> to vector<32x1xf32>
    %204 = vector.broadcast %203 : vector<32x1xf32> to vector<32x32xf32>
    %205 = tpu.concatenate %189, %194, %199, %204 in 1 : vector<32x32xf32>, vector<32x32xf32>, vector<32x32xf32>, vector<32x32xf32> -> vector<32x128xf32>
    %206 = arith.subf %184, %205 : vector<32x128xf32>
    %207 = math.exp %206 : vector<32x128xf32>
    %208 = arith.mulf %207, %4 : vector<32x128xf32>
    %cst_81 = arith.constant dense<0.000000e+00> : vector<32x128xf32>
    %209 = tpu.matmul %208, %6, %cst_81 {dimension_numbers = #tpu.dot_dimension_numbers<[1], [0], [0], [1], [0, 0, 1, 1], [], []>} : vector<32x128xf32>, vector<128x128xf32>, vector<32x128xf32> -> vector<32x128xf32>
    %cst_82 = arith.constant 1.000000e-16 : f32
    %210 = vector.broadcast %cst_82 : f32 to vector<32x128xf32>
    %211 = arith.addf %209, %210 : vector<32x128xf32>
    %212 = tpu.reciprocal %211 {approx = true} : vector<32x128xf32> -> vector<32x128xf32>
    %213 = arith.mulf %208, %212 : vector<32x128xf32>
    %214 = tpu.concatenate %175, %175, %175, %175 in 0 : vector<32x64xf32>, vector<32x64xf32>, vector<32x64xf32>, vector<32x64xf32> -> vector<128x64xf32>
    %215 = arith.mulf %214, %7 : vector<128x64xf32>
    %cst_83 = arith.constant dense<0.000000e+00> : vector<32x64xf32>
    %216 = tpu.matmul %213, %215, %cst_83 {dimension_numbers = #tpu.dot_dimension_numbers<[1], [0], [0], [1], [0, 0, 1, 1], [], []>} : vector<32x128xf32>, vector<128x64xf32>, vector<32x64xf32> -> vector<32x64xf32>
    %217 = arith.addf %216, %176 : vector<32x64xf32>
    %cst_84 = arith.constant 5.000000e-01 : f32
    %218 = vector.broadcast %cst_84 : f32 to vector<32x64xf32>
    %219 = arith.mulf %218, %217 : vector<32x64xf32>
    %cst_85 = arith.constant 4.471500e-02 : f32
    %220 = vector.broadcast %cst_85 : f32 to vector<32x64xf32>
    %221 = arith.mulf %220, %217 : vector<32x64xf32>
    %222 = arith.mulf %221, %217 : vector<32x64xf32>
    %223 = arith.mulf %222, %217 : vector<32x64xf32>
    %224 = arith.addf %217, %223 : vector<32x64xf32>
    %cst_86 = arith.constant 0.797884583 : f32
    %225 = vector.broadcast %cst_86 : f32 to vector<32x64xf32>
    %226 = arith.mulf %225, %224 : vector<32x64xf32>
    %227 = math.tanh %226 : vector<32x64xf32>
    %cst_87 = arith.constant 1.000000e+00 : f32
    %228 = vector.broadcast %cst_87 : f32 to vector<32x64xf32>
    %229 = arith.addf %228, %227 : vector<32x64xf32>
    %230 = arith.mulf %219, %229 : vector<32x64xf32>
    %c0_88 = arith.constant 0 : index
    %c0_89 = arith.constant 0 : index
    %231 = vector.load %arg17[%c0_88, %c0_89] : memref<64x256xf32, #tpu.memory_space<vmem>>, vector<64x256xf32>
    %c0_90 = arith.constant 0 : index
    %c0_91 = arith.constant 0 : index
    %232 = vector.load %arg18[%c0_90, %c0_91] : memref<1x256xf32, #tpu.memory_space<vmem>>, vector<1x256xf32>
    %cst_92 = arith.constant dense<0.000000e+00> : vector<32x256xf32>
    %233 = tpu.matmul %230, %231, %cst_92 {dimension_numbers = #tpu.dot_dimension_numbers<[1], [0], [0], [1], [0, 0, 1, 1], [], []>} : vector<32x64xf32>, vector<64x256xf32>, vector<32x256xf32> -> vector<32x256xf32>
    %234 = vector.broadcast %232 : vector<1x256xf32> to vector<32x256xf32>
    %235 = arith.addf %233, %234 : vector<32x256xf32>
    %236 = vector.extract_strided_slice %235 {offsets = [0, 0], sizes = [32, 64], strides = [1, 1]} : vector<32x256xf32> to vector<32x64xf32>
    %237 = vector.extract_strided_slice %235 {offsets = [0, 64], sizes = [32, 64], strides = [1, 1]} : vector<32x256xf32> to vector<32x64xf32>
    %238 = vector.extract_strided_slice %235 {offsets = [0, 128], sizes = [32, 64], strides = [1, 1]} : vector<32x256xf32> to vector<32x64xf32>
    %239 = vector.extract_strided_slice %235 {offsets = [0, 192], sizes = [32, 64], strides = [1, 1]} : vector<32x256xf32> to vector<32x64xf32>
    %240 = tpu.transpose %237, [1, 0] : vector<32x64xf32> -> vector<64x32xf32>
    %241 = tpu.concatenate %240, %240, %240, %240 in 1 : vector<64x32xf32>, vector<64x32xf32>, vector<64x32xf32>, vector<64x32xf32> -> vector<64x128xf32>
    %242 = arith.mulf %241, %8 : vector<64x128xf32>
    %cst_93 = arith.constant dense<0.000000e+00> : vector<32x128xf32>
    %243 = tpu.matmul %236, %242, %cst_93 {dimension_numbers = #tpu.dot_dimension_numbers<[1], [0], [0], [1], [0, 0, 1, 1], [], []>} : vector<32x64xf32>, vector<64x128xf32>, vector<32x128xf32> -> vector<32x128xf32>
    %cst_94 = arith.constant 0.000000e+00 : f32
    %244 = vector.broadcast %cst_94 : f32 to vector<32x128xf32>
    %245 = arith.cmpf ogt, %4, %244 : vector<32x128xf32>
    %cst_95 = arith.constant -1.000000e+30 : f32
    %246 = vector.broadcast %cst_95 : f32 to vector<32x128xf32>
    %247 = arith.select %245, %243, %246 : vector<32x128xi1>, vector<32x128xf32>
    %248 = vector.extract_strided_slice %247 {offsets = [0, 0], sizes = [32, 32], strides = [1, 1]} : vector<32x128xf32> to vector<32x32xf32>
    %cst_96 = arith.constant dense<0xFF800000> : vector<32xf32>
    %249 = vector.multi_reduction <maximumf>, %248, %cst_96 [1] : vector<32x32xf32> to vector<32xf32>
    %250 = vector.shape_cast %249 : vector<32xf32> to vector<32x1xf32>
    %251 = vector.shape_cast %250 : vector<32x1xf32> to vector<32x1xf32>
    %252 = vector.broadcast %251 : vector<32x1xf32> to vector<32x32xf32>
    %253 = vector.extract_strided_slice %247 {offsets = [0, 32], sizes = [32, 32], strides = [1, 1]} : vector<32x128xf32> to vector<32x32xf32>
    %cst_97 = arith.constant dense<0xFF800000> : vector<32xf32>
    %254 = vector.multi_reduction <maximumf>, %253, %cst_97 [1] : vector<32x32xf32> to vector<32xf32>
    %255 = vector.shape_cast %254 : vector<32xf32> to vector<32x1xf32>
    %256 = vector.shape_cast %255 : vector<32x1xf32> to vector<32x1xf32>
    %257 = vector.broadcast %256 : vector<32x1xf32> to vector<32x32xf32>
    %258 = vector.extract_strided_slice %247 {offsets = [0, 64], sizes = [32, 32], strides = [1, 1]} : vector<32x128xf32> to vector<32x32xf32>
    %cst_98 = arith.constant dense<0xFF800000> : vector<32xf32>
    %259 = vector.multi_reduction <maximumf>, %258, %cst_98 [1] : vector<32x32xf32> to vector<32xf32>
    %260 = vector.shape_cast %259 : vector<32xf32> to vector<32x1xf32>
    %261 = vector.shape_cast %260 : vector<32x1xf32> to vector<32x1xf32>
    %262 = vector.broadcast %261 : vector<32x1xf32> to vector<32x32xf32>
    %263 = vector.extract_strided_slice %247 {offsets = [0, 96], sizes = [32, 32], strides = [1, 1]} : vector<32x128xf32> to vector<32x32xf32>
    %cst_99 = arith.constant dense<0xFF800000> : vector<32xf32>
    %264 = vector.multi_reduction <maximumf>, %263, %cst_99 [1] : vector<32x32xf32> to vector<32xf32>
    %265 = vector.shape_cast %264 : vector<32xf32> to vector<32x1xf32>
    %266 = vector.shape_cast %265 : vector<32x1xf32> to vector<32x1xf32>
    %267 = vector.broadcast %266 : vector<32x1xf32> to vector<32x32xf32>
    %268 = tpu.concatenate %252, %257, %262, %267 in 1 : vector<32x32xf32>, vector<32x32xf32>, vector<32x32xf32>, vector<32x32xf32> -> vector<32x128xf32>
    %269 = arith.subf %247, %268 : vector<32x128xf32>
    %270 = math.exp %269 : vector<32x128xf32>
    %271 = arith.mulf %270, %4 : vector<32x128xf32>
    %cst_100 = arith.constant dense<0.000000e+00> : vector<32x128xf32>
    %272 = tpu.matmul %271, %6, %cst_100 {dimension_numbers = #tpu.dot_dimension_numbers<[1], [0], [0], [1], [0, 0, 1, 1], [], []>} : vector<32x128xf32>, vector<128x128xf32>, vector<32x128xf32> -> vector<32x128xf32>
    %cst_101 = arith.constant 1.000000e-16 : f32
    %273 = vector.broadcast %cst_101 : f32 to vector<32x128xf32>
    %274 = arith.addf %272, %273 : vector<32x128xf32>
    %275 = tpu.reciprocal %274 {approx = true} : vector<32x128xf32> -> vector<32x128xf32>
    %276 = arith.mulf %271, %275 : vector<32x128xf32>
    %277 = tpu.concatenate %238, %238, %238, %238 in 0 : vector<32x64xf32>, vector<32x64xf32>, vector<32x64xf32>, vector<32x64xf32> -> vector<128x64xf32>
    %278 = arith.mulf %277, %7 : vector<128x64xf32>
    %cst_102 = arith.constant dense<0.000000e+00> : vector<32x64xf32>
    %279 = tpu.matmul %276, %278, %cst_102 {dimension_numbers = #tpu.dot_dimension_numbers<[1], [0], [0], [1], [0, 0, 1, 1], [], []>} : vector<32x128xf32>, vector<128x64xf32>, vector<32x64xf32> -> vector<32x64xf32>
    %280 = arith.addf %279, %239 : vector<32x64xf32>
    %cst_103 = arith.constant 5.000000e-01 : f32
    %281 = vector.broadcast %cst_103 : f32 to vector<32x64xf32>
    %282 = arith.mulf %281, %280 : vector<32x64xf32>
    %cst_104 = arith.constant 4.471500e-02 : f32
    %283 = vector.broadcast %cst_104 : f32 to vector<32x64xf32>
    %284 = arith.mulf %283, %280 : vector<32x64xf32>
    %285 = arith.mulf %284, %280 : vector<32x64xf32>
    %286 = arith.mulf %285, %280 : vector<32x64xf32>
    %287 = arith.addf %280, %286 : vector<32x64xf32>
    %cst_105 = arith.constant 0.797884583 : f32
    %288 = vector.broadcast %cst_105 : f32 to vector<32x64xf32>
    %289 = arith.mulf %288, %287 : vector<32x64xf32>
    %290 = math.tanh %289 : vector<32x64xf32>
    %cst_106 = arith.constant 1.000000e+00 : f32
    %291 = vector.broadcast %cst_106 : f32 to vector<32x64xf32>
    %292 = arith.addf %291, %290 : vector<32x64xf32>
    %293 = arith.mulf %282, %292 : vector<32x64xf32>
    %c0_107 = arith.constant 0 : index
    %c0_108 = arith.constant 0 : index
    %294 = vector.load %arg19[%c0_107, %c0_108] : memref<64x64xf32, #tpu.memory_space<vmem>>, vector<64x64xf32>
    %c0_109 = arith.constant 0 : index
    %c0_110 = arith.constant 0 : index
    %295 = vector.load %arg20[%c0_109, %c0_110] : memref<1x64xf32, #tpu.memory_space<vmem>>, vector<1x64xf32>
    %cst_111 = arith.constant dense<0.000000e+00> : vector<32x64xf32>
    %296 = tpu.matmul %293, %294, %cst_111 {dimension_numbers = #tpu.dot_dimension_numbers<[1], [0], [0], [1], [0, 0, 1, 1], [], []>} : vector<32x64xf32>, vector<64x64xf32>, vector<32x64xf32> -> vector<32x64xf32>
    %297 = vector.broadcast %295 : vector<1x64xf32> to vector<32x64xf32>
    %298 = arith.addf %296, %297 : vector<32x64xf32>
    %299 = vector.extract_strided_slice %298 {offsets = [0, 0], sizes = [32, 16], strides = [1, 1]} : vector<32x64xf32> to vector<32x16xf32>
    %300 = vector.extract_strided_slice %298 {offsets = [0, 16], sizes = [32, 16], strides = [1, 1]} : vector<32x64xf32> to vector<32x16xf32>
    %301 = vector.extract_strided_slice %298 {offsets = [0, 32], sizes = [32, 16], strides = [1, 1]} : vector<32x64xf32> to vector<32x16xf32>
    %302 = vector.extract_strided_slice %298 {offsets = [0, 48], sizes = [32, 16], strides = [1, 1]} : vector<32x64xf32> to vector<32x16xf32>
    %303 = tpu.transpose %300, [1, 0] : vector<32x16xf32> -> vector<16x32xf32>
    %cst_112 = arith.constant dense<0.000000e+00> : vector<32x32xf32>
    %304 = tpu.matmul %299, %303, %cst_112 {dimension_numbers = #tpu.dot_dimension_numbers<[1], [0], [0], [1], [0, 0, 1, 1], [], []>} : vector<32x16xf32>, vector<16x32xf32>, vector<32x32xf32> -> vector<32x32xf32>
    %cst_113 = arith.constant 0.000000e+00 : f32
    %305 = vector.broadcast %cst_113 : f32 to vector<32x32xf32>
    %306 = arith.cmpf ogt, %2, %305 : vector<32x32xf32>
    %cst_114 = arith.constant -1.000000e+30 : f32
    %307 = vector.broadcast %cst_114 : f32 to vector<32x32xf32>
    %308 = arith.select %306, %304, %307 : vector<32x32xi1>, vector<32x32xf32>
    %cst_115 = arith.constant dense<0xFF800000> : vector<32xf32>
    %309 = vector.multi_reduction <maximumf>, %308, %cst_115 [1] : vector<32x32xf32> to vector<32xf32>
    %310 = vector.shape_cast %309 : vector<32xf32> to vector<32x1xf32>
    %311 = vector.broadcast %310 : vector<32x1xf32> to vector<32x32xf32>
    %312 = arith.subf %308, %311 : vector<32x32xf32>
    %313 = math.exp %312 : vector<32x32xf32>
    %314 = arith.mulf %313, %2 : vector<32x32xf32>
    %cst_116 = arith.constant dense<0.000000e+00> : vector<32xf32>
    %315 = vector.multi_reduction <add>, %314, %cst_116 [1] : vector<32x32xf32> to vector<32xf32>
    %316 = vector.shape_cast %315 : vector<32xf32> to vector<32x1xf32>
    %cst_117 = arith.constant 1.000000e-16 : f32
    %317 = vector.broadcast %cst_117 : f32 to vector<32x1xf32>
    %318 = arith.addf %316, %317 : vector<32x1xf32>
    %319 = tpu.reciprocal %318 {approx = true} : vector<32x1xf32> -> vector<32x1xf32>
    %320 = vector.broadcast %319 : vector<32x1xf32> to vector<32x32xf32>
    %321 = arith.mulf %314, %320 : vector<32x32xf32>
    %cst_118 = arith.constant dense<0.000000e+00> : vector<32x16xf32>
    %322 = tpu.matmul %321, %301, %cst_118 {dimension_numbers = #tpu.dot_dimension_numbers<[1], [0], [0], [1], [0, 0, 1, 1], [], []>} : vector<32x32xf32>, vector<32x16xf32>, vector<32x16xf32> -> vector<32x16xf32>
    %323 = arith.addf %322, %302 : vector<32x16xf32>
    %c0_119 = arith.constant 0 : index
    %c0_120 = arith.constant 0 : index
    %324 = vector.load %arg21[%c0_119, %c0_120] : memref<16x16xf32, #tpu.memory_space<vmem>>, vector<16x16xf32>
    %cst_121 = arith.constant dense<0.000000e+00> : vector<32x16xf32>
    %325 = tpu.matmul %167, %324, %cst_121 {dimension_numbers = #tpu.dot_dimension_numbers<[1], [0], [0], [1], [0, 0, 1, 1], [], []>} : vector<32x16xf32>, vector<16x16xf32>, vector<32x16xf32> -> vector<32x16xf32>
    %c0_122 = arith.constant 0 : index
    %c0_123 = arith.constant 0 : index
    %326 = vector.load %arg22[%c0_122, %c0_123] : memref<16x16xf32, #tpu.memory_space<vmem>>, vector<16x16xf32>
    %cst_124 = arith.constant dense<0.000000e+00> : vector<32x16xf32>
    %327 = tpu.matmul %323, %326, %cst_124 {dimension_numbers = #tpu.dot_dimension_numbers<[1], [0], [0], [1], [0, 0, 1, 1], [], []>} : vector<32x16xf32>, vector<16x16xf32>, vector<32x16xf32> -> vector<32x16xf32>
    %328 = arith.addf %325, %327 : vector<32x16xf32>
    %c0_125 = arith.constant 0 : index
    %c0_126 = arith.constant 0 : index
    %329 = vector.load %arg23[%c0_125, %c0_126] : memref<1x16xf32, #tpu.memory_space<vmem>>, vector<1x16xf32>
    %330 = vector.broadcast %329 : vector<1x16xf32> to vector<32x16xf32>
    %331 = arith.addf %328, %330 : vector<32x16xf32>
    %cst_127 = arith.constant 0.000000e+00 : f32
    %332 = vector.broadcast %cst_127 : f32 to vector<32x16xf32>
    %333 = arith.maximumf %331, %332 : vector<32x16xf32>
    %c0_128 = arith.constant 0 : index
    %c0_129 = arith.constant 0 : index
    %334 = vector.load %arg24[%c0_128, %c0_129] : memref<16x128xf32, #tpu.memory_space<vmem>>, vector<16x128xf32>
    %cst_130 = arith.constant dense<0.000000e+00> : vector<32x128xf32>
    %335 = tpu.matmul %333, %334, %cst_130 {dimension_numbers = #tpu.dot_dimension_numbers<[1], [0], [0], [1], [0, 0, 1, 1], [], []>} : vector<32x16xf32>, vector<16x128xf32>, vector<32x128xf32> -> vector<32x128xf32>
    %c0_131 = arith.constant 0 : index
    %c0_132 = arith.constant 0 : index
    %336 = vector.load %arg25[%c0_131, %c0_132] : memref<1x128xf32, #tpu.memory_space<vmem>>, vector<1x128xf32>
    %337 = vector.broadcast %336 : vector<1x128xf32> to vector<32x128xf32>
    %338 = arith.addf %335, %337 : vector<32x128xf32>
    %c0_133 = arith.constant 0 : index
    %c0_134 = arith.constant 0 : index
    %339 = vector.load %arg26[%c0_133, %c0_134] : memref<32x128xf32, #tpu.memory_space<vmem>>, vector<32x128xf32>
    tpu.vector_store %arg26[%c0_133, %c0_134], %338 {strides = array<i32>} : memref<32x128xf32, #tpu.memory_space<vmem>>, vector<32x128xf32>,
    return
  }
}

</mosaic_0001>

<llo_original>
// kernel: tile.14
$region0: #{tile.14}
  %s0 = inlined_call_operand.vmem [shape: f32[32,4,32], index: 0, kind: input, shape index: {}]
  %s1 = inlined_call_operand.vmem [shape: f32[32,128], index: 1, kind: output, shape index: {}]
  $region1: #{tile.14} parent=0
    #allocation0 [shape = 'u8[131072]{0}', space=vmem, size = 0x20000, scoped, tag = 'scoped mem for input reshape']
    %s3 = sshllo.u32 0, 4
    %s4 = smul.addr 4, 31
    %s5 = scalar_lea.vmem %s0, %s4
    %v6 = vld [vmem:[%s5] sm:%s3]
    %s7 = scalar_lea.vmem [#allocation0], 248
    %8 = vst [vmem:[%s7] sm:%s3] %v6
    %s9 = smul.addr 4, 30
    %s10 = scalar_lea.vmem %s0, %s9
    %v11 = vld [vmem:[%s10] sm:%s3]
    %s12 = scalar_lea.vmem [#allocation0], 240
    %13 = vst [vmem:[%s12] sm:%s3] %v11
    %s14 = smul.addr 4, 29
    %s15 = scalar_lea.vmem %s0, %s14
    %v16 = vld [vmem:[%s15] sm:%s3]
    %s17 = scalar_lea.vmem [#allocation0], 232
    %18 = vst [vmem:[%s17] sm:%s3] %v16
    %s19 = smul.addr 4, 28
    %s20 = scalar_lea.vmem %s0, %s19
    %v21 = vld [vmem:[%s20] sm:%s3]
    %s22 = scalar_lea.vmem [#allocation0], 224
    %23 = vst [vmem:[%s22] sm:%s3] %v21
    %s24 = smul.addr 4, 27
    %s25 = scalar_lea.vmem %s0, %s24
    %v26 = vld [vmem:[%s25] sm:%s3]
    %s27 = scalar_lea.vmem [#allocation0], 216
    %28 = vst [vmem:[%s27] sm:%s3] %v26
    %s29 = smul.addr 4, 26
    %s30 = scalar_lea.vmem %s0, %s29
    %v31 = vld [vmem:[%s30] sm:%s3]
    %s32 = scalar_lea.vmem [#allocation0], 208
    %33 = vst [vmem:[%s32] sm:%s3] %v31
    %s34 = smul.addr 4, 25
    %s35 = scalar_lea.vmem %s0, %s34
    %v36 = vld [vmem:[%s35] sm:%s3]
    %s37 = scalar_lea.vmem [#allocation0], 200
    %38 = vst [vmem:[%s37] sm:%s3] %v36
    %s39 = smul.addr 4, 24
    %s40 = scalar_lea.vmem %s0, %s39
    %v41 = vld [vmem:[%s40] sm:%s3]
    %s42 = scalar_lea.vmem [#allocation0], 192
    %43 = vst [vmem:[%s42] sm:%s3] %v41
    %s44 = smul.addr 4, 23
    %s45 = scalar_lea.vmem %s0, %s44
    %v46 = vld [vmem:[%s45] sm:%s3]
    %s47 = scalar_lea.vmem [#allocation0], 184
    %48 = vst [vmem:[%s47] sm:%s3] %v46
    %s49 = smul.addr 4, 22
    %s50 = scalar_lea.vmem %s0, %s49
    %v51 = vld [vmem:[%s50] sm:%s3]
    %s52 = scalar_lea.vmem [#allocation0], 176
    %53 = vst [vmem:[%s52] sm:%s3] %v51
    %s54 = smul.addr 4, 21
    %s55 = scalar_lea.vmem %s0, %s54
    %v56 = vld [vmem:[%s55] sm:%s3]
    %s57 = scalar_lea.vmem [#allocation0], 168
    %58 = vst [vmem:[%s57] sm:%s3] %v56
    %s59 = smul.addr 4, 20
    %s60 = scalar_lea.vmem %s0, %s59
    %v61 = vld [vmem:[%s60] sm:%s3]
    %s62 = scalar_lea.vmem [#allocation0], 160
    %63 = vst [vmem:[%s62] sm:%s3] %v61
    %s64 = smul.addr 4, 19
    %s65 = scalar_lea.vmem %s0, %s64
    %v66 = vld [vmem:[%s65] sm:%s3]
    %s67 = scalar_lea.vmem [#allocation0], 152
    %68 = vst [vmem:[%s67] sm:%s3] %v66
    %s69 = smul.addr 4, 18
    %s70 = scalar_lea.vmem %s0, %s69
    %v71 = vld [vmem:[%s70] sm:%s3]
    %s72 = scalar_lea.vmem [#allocation0], 144
    %73 = vst [vmem:[%s72] sm:%s3] %v71
    %s74 = smul.addr 4, 17
    %s75 = scalar_lea.vmem %s0, %s74
    %v76 = vld [vmem:[%s75] sm:%s3]
    %s77 = scalar_lea.vmem [#allocation0], 136
    %78 = vst [vmem:[%s77] sm:%s3] %v76
    %s79 = smul.addr 4, 16
    %s80 = scalar_lea.vmem %s0, %s79
    %v81 = vld [vmem:[%s80] sm:%s3]
    %s82 = scalar_lea.vmem [#allocation0], 128
    %83 = vst [vmem:[%s82] sm:%s3] %v81
    %s84 = smul.addr 4, 15
    %s85 = scalar_lea.vmem %s0, %s84
    %v86 = vld [vmem:[%s85] sm:%s3]
    %s87 = scalar_lea.vmem [#allocation0], 120
    %88 = vst [vmem:[%s87] sm:%s3] %v86
    %s89 = smul.addr 4, 14
    %s90 = scalar_lea.vmem %s0, %s89
    %v91 = vld [vmem:[%s90] sm:%s3]
    %s92 = scalar_lea.vmem [#allocation0], 112
    %93 = vst [vmem:[%s92] sm:%s3] %v91
    %s94 = smul.addr 4, 13
    %s95 = scalar_lea.vmem %s0, %s94
    %v96 = vld [vmem:[%s95] sm:%s3]
    %s97 = scalar_lea.vmem [#allocation0], 104
    %98 = vst [vmem:[%s97] sm:%s3] %v96
    %s99 = smul.addr 4, 12
    %s100 = scalar_lea.vmem %s0, %s99
    %v101 = vld [vmem:[%s100] sm:%s3]
    %s102 = scalar_lea.vmem [#allocation0], 96
    %103 = vst [vmem:[%s102] sm:%s3] %v101
    %s104 = smul.addr 4, 11
    %s105 = scalar_lea.vmem %s0, %s104
    %v106 = vld [vmem:[%s105] sm:%s3]
    %s107 = scalar_lea.vmem [#allocation0], 88
    %108 = vst [vmem:[%s107] sm:%s3] %v106
    %s109 = smul.addr 4, 10
    %s110 = scalar_lea.vmem %s0, %s109
    %v111 = vld [vmem:[%s110] sm:%s3]
    %s112 = scalar_lea.vmem [#allocation0], 80
    %113 = vst [vmem:[%s112] sm:%s3] %v111
    %s114 = smul.addr 4, 9
    %s115 = scalar_lea.vmem %s0, %s114
    %v116 = vld [vmem:[%s115] sm:%s3]
    %s117 = scalar_lea.vmem [#allocation0], 72
    %118 = vst [vmem:[%s117] sm:%s3] %v116
    %s119 = smul.addr 4, 8
    %s120 = scalar_lea.vmem %s0, %s119
    %v121 = vld [vmem:[%s120] sm:%s3]
    %s122 = scalar_lea.vmem [#allocation0], 64
    %123 = vst [vmem:[%s122] sm:%s3] %v121
    %s124 = smul.addr 4, 7
    %s125 = scalar_lea.vmem %s0, %s124
    %v126 = vld [vmem:[%s125] sm:%s3]
    %s127 = scalar_lea.vmem [#allocation0], 56
    %128 = vst [vmem:[%s127] sm:%s3] %v126
    %s129 = smul.addr 4, 6
    %s130 = scalar_lea.vmem %s0, %s129
    %v131 = vld [vmem:[%s130] sm:%s3]
    %s132 = scalar_lea.vmem [#allocation0], 48
    %133 = vst [vmem:[%s132] sm:%s3] %v131
    %s134 = smul.addr 4, 5
    %s135 = scalar_lea.vmem %s0, %s134
    %v136 = vld [vmem:[%s135] sm:%s3]
    %s137 = scalar_lea.vmem [#allocation0], 40
    %138 = vst [vmem:[%s137] sm:%s3] %v136
    %s139 = smul.addr 4, 4
    %s140 = scalar_lea.vmem %s0, %s139
    %v141 = vld [vmem:[%s140] sm:%s3]
    %s142 = scalar_lea.vmem [#allocation0], 32
    %143 = vst [vmem:[%s142] sm:%s3] %v141
    %s144 = smul.addr 4, 3
    %s145 = scalar_lea.vmem %s0, %s144
    %v146 = vld [vmem:[%s145] sm:%s3]
    %s147 = scalar_lea.vmem [#allocation0], 24
    %148 = vst [vmem:[%s147] sm:%s3] %v146
    %s149 = smul.addr 4, 2
    %s150 = scalar_lea.vmem %s0, %s149
    %v151 = vld [vmem:[%s150] sm:%s3]
    %s152 = scalar_lea.vmem [#allocation0], 16
    %153 = vst [vmem:[%s152] sm:%s3] %v151
    %s154 = scalar_lea.vmem %s0, 4
    %v155 = vld [vmem:[%s154] sm:%s3]
    %s156 = scalar_lea.vmem [#allocation0], 8
    %157 = vst [vmem:[%s156] sm:%s3] %v155
    %v158 = vld [vmem:[%s0] sm:%s3]
    %159 = vst [vmem:[#allocation0] sm:%s3] %v158
    %v160 = vld [vmem:[#allocation0] ss:$8 sm:$0xf]
    %v161 = vld [vmem:[#allocation0] ss:$8 sm:$0xf0]
    %vm162 = vcmask 1047556
    %v163 = vsel %vm162, %v161, %v160
    %vm164 = vcmask 261120
    %165 = vst.msk [vmem:[%s1] sm:$0xff] %vm164, %v163
    %s166 = scalar_lea.vmem [#allocation0], 64
    %v167 = vld [vmem:[%s166] ss:$8 sm:$0xf]
    %s168 = scalar_lea.vmem [#allocation0], 64
    %v169 = vld [vmem:[%s168] ss:$8 sm:$0xf0]
    %vm170 = vcmask 1047556
    %v171 = vsel %vm170, %v169, %v167
    %vm172 = vcmask 261120
    %s173 = scalar_lea.vmem %s1, 8
    %174 = vst.msk [vmem:[%s173] sm:$0xff] %vm172, %v171
    %s175 = scalar_lea.vmem [#allocation0], 128
    %v176 = vld [vmem:[%s175] ss:$8 sm:$0xf]
    %s177 = scalar_lea.vmem [#allocation0], 128
    %v178 = vld [vmem:[%s177] ss:$8 sm:$0xf0]
    %vm179 = vcmask 1047556
    %v180 = vsel %vm179, %v178, %v176
    %vm181 = vcmask 261120
    %s182 = scalar_lea.vmem %s1, 16
    %183 = vst.msk [vmem:[%s182] sm:$0xff] %vm181, %v180
    %s184 = scalar_lea.vmem [#allocation0], 192
    %v185 = vld [vmem:[%s184] ss:$8 sm:$0xf]
    %s186 = scalar_lea.vmem [#allocation0], 192
    %v187 = vld [vmem:[%s186] ss:$8 sm:$0xf0]
    %vm188 = vcmask 1047556
    %v189 = vsel %vm188, %v187, %v185
    %vm190 = vcmask 261120
    %s191 = scalar_lea.vmem %s1, 24
    %192 = vst.msk [vmem:[%s191] sm:$0xff] %vm190, %v189
    %s193 = scalar_lea.vmem [#allocation0], 3
    %v194 = vld [vmem:[%s193] ss:$8 sm:$0xf]
    %s195 = scalar_lea.vmem [#allocation0], 3
    %v196 = vld [vmem:[%s195] ss:$8 sm:$0xf0]
    %vm197 = vcmask 1047556
    %v198 = vsel %vm197, %v196, %v194
    %199 = vrot.lane.b32.xlu0 %v198, 96
    %v200 = vpop.permute.xlu0 %199
    %vm201 = vcmask 1048320
    %202 = vst.msk [vmem:[%s1] sm:$0xff] %vm201, %v200
    %s203 = scalar_lea.vmem [#allocation0], 67
    %v204 = vld [vmem:[%s203] ss:$8 sm:$0xf]
    %s205 = scalar_lea.vmem [#allocation0], 67
    %v206 = vld [vmem:[%s205] ss:$8 sm:$0xf0]
    %vm207 = vcmask 1047556
    %v208 = vsel %vm207, %v206, %v204
    %209 = vrot.lane.b32.xlu0 %v208, 96
    %v210 = vpop.permute.xlu0 %209
    %vm211 = vcmask 1048320
    %s212 = scalar_lea.vmem %s1, 8
    %213 = vst.msk [vmem:[%s212] sm:$0xff] %vm211, %v210
    %s214 = scalar_lea.vmem [#allocation0], 131
    %v215 = vld [vmem:[%s214] ss:$8 sm:$0xf]
    %s216 = scalar_lea.vmem [#allocation0], 131
    %v217 = vld [vmem:[%s216] ss:$8 sm:$0xf0]
    %vm218 = vcmask 1047556
    %v219 = vsel %vm218, %v217, %v215
    %220 = vrot.lane.b32.xlu0 %v219, 96
    %v221 = vpop.permute.xlu0 %220
    %vm222 = vcmask 1048320
    %s223 = scalar_lea.vmem %s1, 16
    %224 = vst.msk [vmem:[%s223] sm:$0xff] %vm222, %v221
    %s225 = scalar_lea.vmem [#allocation0], 195
    %v226 = vld [vmem:[%s225] ss:$8 sm:$0xf]
    %s227 = scalar_lea.vmem [#allocation0], 195
    %v228 = vld [vmem:[%s227] ss:$8 sm:$0xf0]
    %vm229 = vcmask 1047556
    %v230 = vsel %vm229, %v228, %v226
    %231 = vrot.lane.b32.xlu0 %v230, 96
    %v232 = vpop.permute.xlu0 %231
    %vm233 = vcmask 1048320
    %s234 = scalar_lea.vmem %s1, 24
    %235 = vst.msk [vmem:[%s234] sm:$0xff] %vm233, %v232
    %s236 = scalar_lea.vmem [#allocation0], 2
    %v237 = vld [vmem:[%s236] ss:$8 sm:$0xf]
    %s238 = scalar_lea.vmem [#allocation0], 2
    %v239 = vld [vmem:[%s238] ss:$8 sm:$0xf0]
    %vm240 = vcmask 1047556
    %v241 = vsel %vm240, %v239, %v237
    %242 = vrot.lane.b32.xlu0 %v241, 64
    %v243 = vpop.permute.xlu0 %242
    %vm244 = vcmask 785920
    %245 = vst.msk [vmem:[%s1] sm:$0xff] %vm244, %v243
    %s246 = scalar_lea.vmem [#allocation0], 66
    %v247 = vld [vmem:[%s246] ss:$8 sm:$0xf]
    %s248 = scalar_lea.vmem [#allocation0], 66
    %v249 = vld [vmem:[%s248] ss:$8 sm:$0xf0]
    %vm250 = vcmask 1047556
    %v251 = vsel %vm250, %v249, %v247
    %252 = vrot.lane.b32.xlu0 %v251, 64
    %v253 = vpop.permute.xlu0 %252
    %vm254 = vcmask 785920
    %s255 = scalar_lea.vmem %s1, 8
    %256 = vst.msk [vmem:[%s255] sm:$0xff] %vm254, %v253
    %s257 = scalar_lea.vmem [#allocation0], 130
    %v258 = vld [vmem:[%s257] ss:$8 sm:$0xf]
    %s259 = scalar_lea.vmem [#allocation0], 130
    %v260 = vld [vmem:[%s259] ss:$8 sm:$0xf0]
    %vm261 = vcmask 1047556
    %v262 = vsel %vm261, %v260, %v258
    %263 = vrot.lane.b32.xlu0 %v262, 64
    %v264 = vpop.permute.xlu0 %263
    %vm265 = vcmask 785920
    %s266 = scalar_lea.vmem %s1, 16
    %267 = vst.msk [vmem:[%s266] sm:$0xff] %vm265, %v264
    %s268 = scalar_lea.vmem [#allocation0], 194
    %v269 = vld [vmem:[%s268] ss:$8 sm:$0xf]
    %s270 = scalar_lea.vmem [#allocation0], 194
    %v271 = vld [vmem:[%s270] ss:$8 sm:$0xf0]
    %vm272 = vcmask 1047556
    %v273 = vsel %vm272, %v271, %v269
    %274 = vrot.lane.b32.xlu0 %v273, 64
    %v275 = vpop.permute.xlu0 %274
    %vm276 = vcmask 785920
    %s277 = scalar_lea.vmem %s1, 24
    %278 = vst.msk [vmem:[%s277] sm:$0xff] %vm276, %v275
    %s279 = scalar_lea.vmem [#allocation0], 1
    %v280 = vld [vmem:[%s279] ss:$8 sm:$0xf]
    %s281 = scalar_lea.vmem [#allocation0], 1
    %v282 = vld [vmem:[%s281] ss:$8 sm:$0xf0]
    %vm283 = vcmask 1047556
    %v284 = vsel %vm283, %v282, %v280
    %285 = vrot.lane.b32.xlu0 %v284, 32
    %v286 = vpop.permute.xlu0 %285
    %vm287 = vcmask 523520
    %288 = vst.msk [vmem:[%s1] sm:$0xff] %vm287, %v286
    %s289 = scalar_lea.vmem [#allocation0], 65
    %v290 = vld [vmem:[%s289] ss:$8 sm:$0xf]
    %s291 = scalar_lea.vmem [#allocation0], 65
    %v292 = vld [vmem:[%s291] ss:$8 sm:$0xf0]
    %vm293 = vcmask 1047556
    %v294 = vsel %vm293, %v292, %v290
    %295 = vrot.lane.b32.xlu0 %v294, 32
    %v296 = vpop.permute.xlu0 %295
    %vm297 = vcmask 523520
    %s298 = scalar_lea.vmem %s1, 8
    %299 = vst.msk [vmem:[%s298] sm:$0xff] %vm297, %v296
    %s300 = scalar_lea.vmem [#allocation0], 129
    %v301 = vld [vmem:[%s300] ss:$8 sm:$0xf]
    %s302 = scalar_lea.vmem [#allocation0], 129
    %v303 = vld [vmem:[%s302] ss:$8 sm:$0xf0]
    %vm304 = vcmask 1047556
    %v305 = vsel %vm304, %v303, %v301
    %306 = vrot.lane.b32.xlu0 %v305, 32
    %v307 = vpop.permute.xlu0 %306
    %vm308 = vcmask 523520
    %s309 = scalar_lea.vmem %s1, 16
    %310 = vst.msk [vmem:[%s309] sm:$0xff] %vm308, %v307
    %s311 = scalar_lea.vmem [#allocation0], 193
    %v312 = vld [vmem:[%s311] ss:$8 sm:$0xf]
    %s313 = scalar_lea.vmem [#allocation0], 193
    %v314 = vld [vmem:[%s313] ss:$8 sm:$0xf0]
    %vm315 = vcmask 1047556
    %v316 = vsel %vm315, %v314, %v312
    %317 = vrot.lane.b32.xlu0 %v316, 32
    %v318 = vpop.permute.xlu0 %317
    %vm319 = vcmask 523520
    %s320 = scalar_lea.vmem %s1, 24
    %321 = vst.msk [vmem:[%s320] sm:$0xff] %vm319, %v318

// kernel: multiview_gnn_forward.1
$region0: #{multiview_gnn_forward.1}
  #allocation0 [shape = 'u32[]', space=smem, size = 0x4, offset = 0x4, fixed_abs, tag = 'smem constant byte address 0x4 - core index']
  #allocation1 [shape = 'u32[144,128]{1,0:T(1,128)}', space=vmem, size = 0x12000, scoped, tag = 'internal scratch']
  %s0 = inlined_call_operand.vmem [shape: f32[32,8], index: 0, kind: input, shape index: {}]
  %s1 = inlined_call_operand.vmem [shape: f32[32,32], index: 1, kind: input, shape index: {}]
  %s2 = inlined_call_operand.vmem [shape: f32[32,32], index: 2, kind: input, shape index: {}]
  %s3 = inlined_call_operand.vmem [shape: f32[32,128], index: 3, kind: input, shape index: {}]
  %s4 = inlined_call_operand.vmem [shape: f32[32,128], index: 4, kind: input, shape index: {}]
  %s5 = inlined_call_operand.vmem [shape: f32[32,128], index: 5, kind: input, shape index: {}]
  %s6 = inlined_call_operand.vmem [shape: f32[128,128], index: 6, kind: input, shape index: {}]
  %s7 = inlined_call_operand.vmem [shape: f32[128,64], index: 7, kind: input, shape index: {}]
  %s8 = inlined_call_operand.vmem [shape: f32[64,128], index: 8, kind: input, shape index: {}]
  %s9 = inlined_call_operand.vmem [shape: f32[8,320], index: 9, kind: input, shape index: {}]
  %s10 = inlined_call_operand.vmem [shape: f32[1,64], index: 10, kind: input, shape index: {}]
  %s11 = inlined_call_operand.vmem [shape: f32[64,320], index: 11, kind: input, shape index: {}]
  %s12 = inlined_call_operand.vmem [shape: f32[1,64], index: 12, kind: input, shape index: {}]
  %s13 = inlined_call_operand.vmem [shape: f32[64,18], index: 13, kind: input, shape index: {}]
  %s14 = inlined_call_operand.vmem [shape: f32[1,16], index: 14, kind: input, shape index: {}]
  %s15 = inlined_call_operand.vmem [shape: f32[8,256], index: 15, kind: input, shape index: {}]
  %s16 = inlined_call_operand.vmem [shape: f32[1,256], index: 16, kind: input, shape index: {}]
  %s17 = inlined_call_operand.vmem [shape: f32[64,256], index: 17, kind: input, shape index: {}]
  %s18 = inlined_call_operand.vmem [shape: f32[1,256], index: 18, kind: input, shape index: {}]
  %s19 = inlined_call_operand.vmem [shape: f32[64,64], index: 19, kind: input, shape index: {}]
  %s20 = inlined_call_operand.vmem [shape: f32[1,64], index: 20, kind: input, shape index: {}]
  %s21 = inlined_call_operand.vmem [shape: f32[16,16], index: 21, kind: input, shape index: {}]
  %s22 = inlined_call_operand.vmem [shape: f32[16,16], index: 22, kind: input, shape index: {}]
  %s23 = inlined_call_operand.vmem [shape: f32[1,16], index: 23, kind: input, shape index: {}]
  %s24 = inlined_call_operand.vmem [shape: f32[16,128], index: 24, kind: input, shape index: {}]
  %s25 = inlined_call_operand.vmem [shape: f32[1,128], index: 25, kind: input, shape index: {}]
  %s26 = inlined_call_operand.vmem [shape: f32[32,128], index: 26, kind: output, shape index: {}]
  %s27 = sld [smem:[#allocation0]]
  $region114: #{multiview_gnn_forward.1} parent=0
    _
  %s29 = ssub.s32 1, %s27
  %s30 = scalar_select 0, %s29, %s27
  // Predicated region
  $region2: #{multiview_gnn_forward.1} parent=0 // pred_check
    _
  $region3: #{multiview_gnn_forward.1} parent=0 // pred_check_branch
    %32 = sbr.rel (0) target = $region5
  $region4: #{multiview_gnn_forward.1} parent=0 // pred_region
    _
  $region5: #{multiview_gnn_forward.1} parent=0 // pred_fallthru
    _
  // Predicated region
  $region6: #{multiview_gnn_forward.1} parent=0 // pred_check
    _
  $region7: #{multiview_gnn_forward.1} parent=0 // pred_check_branch
    %34 = sbr.rel (0) target = $region9
  $region8: #{multiview_gnn_forward.1} parent=0 // pred_region
    _
  $region9: #{multiview_gnn_forward.1} parent=0 // pred_fallthru
    _
  // Predicated region
  $region10: #{multiview_gnn_forward.1} parent=0 // pred_check
    _
  $region11: #{multiview_gnn_forward.1} parent=0 // pred_check_branch
    %36 = sbr.rel (0) target = $region13
  $region12: #{multiview_gnn_forward.1} parent=0 // pred_region
    _
  $region13: #{multiview_gnn_forward.1} parent=0 // pred_fallthru
    _
  // Predicated region
  $region14: #{multiview_gnn_forward.1} parent=0 // pred_check
    _
  $region15: #{multiview_gnn_forward.1} parent=0 // pred_check_branch
    %38 = sbr.rel (0) target = $region17
  $region16: #{multiview_gnn_forward.1} parent=0 // pred_region
    _
  $region17: #{multiview_gnn_forward.1} parent=0 // pred_fallthru
    _
  // Predicated region
  $region18: #{multiview_gnn_forward.1} parent=0 // pred_check
    _
  $region19: #{multiview_gnn_forward.1} parent=0 // pred_check_branch
    %40 = sbr.rel (0) target = $region21
  $region20: #{multiview_gnn_forward.1} parent=0 // pred_region
    _
  $region21: #{multiview_gnn_forward.1} parent=0 // pred_fallthru
    _
  // Predicated region
  $region22: #{multiview_gnn_forward.1} parent=0 // pred_check
    _
  $region23: #{multiview_gnn_forward.1} parent=0 // pred_check_branch
    %42 = sbr.rel (0) target = $region25
  $region24: #{multiview_gnn_forward.1} parent=0 // pred_region
    _
  $region25: #{multiview_gnn_forward.1} parent=0 // pred_fallthru
    _
  // Predicated region
  $region26: #{multiview_gnn_forward.1} parent=0 // pred_check
    _
  $region27: #{multiview_gnn_forward.1} parent=0 // pred_check_branch
    %44 = sbr.rel (0) target = $region29
  $region28: #{multiview_gnn_forward.1} parent=0 // pred_region
    _
  $region29: #{multiview_gnn_forward.1} parent=0 // pred_fallthru
    _
  // Predicated region
  $region30: #{multiview_gnn_forward.1} parent=0 // pred_check
    _
  $region31: #{multiview_gnn_forward.1} parent=0 // pred_check_branch
    %46 = sbr.rel (0) target = $region33
  $region32: #{multiview_gnn_forward.1} parent=0 // pred_region
    _
  $region33: #{multiview_gnn_forward.1} parent=0 // pred_fallthru
    _
  // Predicated region
  $region34: #{multiview_gnn_forward.1} parent=0 // pred_check
    _
  $region35: #{multiview_gnn_forward.1} parent=0 // pred_check_branch
    %48 = sbr.rel (0) target = $region37
  $region36: #{multiview_gnn_forward.1} parent=0 // pred_region
    _
  $region37: #{multiview_gnn_forward.1} parent=0 // pred_fallthru
    _
  // Predicated region
  $region38: #{multiview_gnn_forward.1} parent=0 // pred_check
    _
  $region39: #{multiview_gnn_forward.1} parent=0 // pred_check_branch
    %50 = sbr.rel (0) target = $region41
  $region40: #{multiview_gnn_forward.1} parent=0 // pred_region
    _
  $region41: #{multiview_gnn_forward.1} parent=0 // pred_fallthru
    _
  // Predicated region
  $region42: #{multiview_gnn_forward.1} parent=0 // pred_check
    _
  $region43: #{multiview_gnn_forward.1} parent=0 // pred_check_branch
    %52 = sbr.rel (0) target = $region45
  $region44: #{multiview_gnn_forward.1} parent=0 // pred_region
    _
  $region45: #{multiview_gnn_forward.1} parent=0 // pred_fallthru
    _
  // Predicated region
  $region46: #{multiview_gnn_forward.1} parent=0 // pred_check
    _
  $region47: #{multiview_gnn_forward.1} parent=0 // pred_check_branch
    %54 = sbr.rel (0) target = $region49
  $region48: #{multiview_gnn_forward.1} parent=0 // pred_region
    _
  $region49: #{multiview_gnn_forward.1} parent=0 // pred_fallthru
    _
  // Predicated region
  $region50: #{multiview_gnn_forward.1} parent=0 // pred_check
    _
  $region51: #{multiview_gnn_forward.1} parent=0 // pred_check_branch
    %56 = sbr.rel (0) target = $region53
  $region52: #{multiview_gnn_forward.1} parent=0 // pred_region
    _
  $region53: #{multiview_gnn_forward.1} parent=0 // pred_fallthru
    _
  // Predicated region
  $region54: #{multiview_gnn_forward.1} parent=0 // pred_check
    _
  $region55: #{multiview_gnn_forward.1} parent=0 // pred_check_branch
    %58 = sbr.rel (0) target = $region57
  $region56: #{multiview_gnn_forward.1} parent=0 // pred_region
    _
  $region57: #{multiview_gnn_forward.1} parent=0 // pred_fallthru
    _
  // Predicated region
  $region58: #{multiview_gnn_forward.1} parent=0 // pred_check
    _
  $region59: #{multiview_gnn_forward.1} parent=0 // pred_check_branch
    %60 = sbr.rel (0) target = $region61
  $region60: #{multiview_gnn_forward.1} parent=0 // pred_region
    _
  $region61: #{multiview_gnn_forward.1} parent=0 // pred_fallthru
    _
  // Predicated region
  $region62: #{multiview_gnn_forward.1} parent=0 // pred_check
    _
  $region63: #{multiview_gnn_forward.1} parent=0 // pred_check_branch
    %62 = sbr.rel (0) target = $region65
  $region64: #{multiview_gnn_forward.1} parent=0 // pred_region
    _
  $region65: #{multiview_gnn_forward.1} parent=0 // pred_fallthru
    _
  // Predicated region
  $region66: #{multiview_gnn_forward.1} parent=0 // pred_check
    _
  $region67: #{multiview_gnn_forward.1} parent=0 // pred_check_branch
    %64 = sbr.rel (0) target = $region69
  $region68: #{multiview_gnn_forward.1} parent=0 // pred_region
    _
  $region69: #{multiview_gnn_forward.1} parent=0 // pred_fallthru
    _
  // Predicated region
  $region70: #{multiview_gnn_forward.1} parent=0 // pred_check
    _
  $region71: #{multiview_gnn_forward.1} parent=0 // pred_check_branch
    %66 = sbr.rel (0) target = $region73
  $region72: #{multiview_gnn_forward.1} parent=0 // pred_region
    _
  $region73: #{multiview_gnn_forward.1} parent=0 // pred_fallthru
    _
  // Predicated region
  $region74: #{multiview_gnn_forward.1} parent=0 // pred_check
    _
  $region75: #{multiview_gnn_forward.1} parent=0 // pred_check_branch
    %68 = sbr.rel (0) target = $region77
  $region76: #{multiview_gnn_forward.1} parent=0 // pred_region
    _
  $region77: #{multiview_gnn_forward.1} parent=0 // pred_fallthru
    _
  // Predicated region
  $region78: #{multiview_gnn_forward.1} parent=0 // pred_check
    _
  $region79: #{multiview_gnn_forward.1} parent=0 // pred_check_branch
    %70 = sbr.rel (0) target = $region81
  $region80: #{multiview_gnn_forward.1} parent=0 // pred_region
    _
  $region81: #{multiview_gnn_forward.1} parent=0 // pred_fallthru
    _
  // Predicated region
  $region82: #{multiview_gnn_forward.1} parent=0 // pred_check
    _
  $region83: #{multiview_gnn_forward.1} parent=0 // pred_check_branch
    %72 = sbr.rel (0) target = $region85
  $region84: #{multiview_gnn_forward.1} parent=0 // pred_region
    _
  $region85: #{multiview_gnn_forward.1} parent=0 // pred_fallthru
    _
  // Predicated region
  $region86: #{multiview_gnn_forward.1} parent=0 // pred_check
    _
  $region87: #{multiview_gnn_forward.1} parent=0 // pred_check_branch
    %74 = sbr.rel (0) target = $region89
  $region88: #{multiview_gnn_forward.1} parent=0 // pred_region
    _
  $region89: #{multiview_gnn_forward.1} parent=0 // pred_fallthru
    _
  // Predicated region
  $region90: #{multiview_gnn_forward.1} parent=0 // pred_check
    _
  $region91: #{multiview_gnn_forward.1} parent=0 // pred_check_branch
    %76 = sbr.rel (0) target = $region93
  $region92: #{multiview_gnn_forward.1} parent=0 // pred_region
    _
  $region93: #{multiview_gnn_forward.1} parent=0 // pred_fallthru
    _
  // Predicated region
  $region94: #{multiview_gnn_forward.1} parent=0 // pred_check
    _
  $region95: #{multiview_gnn_forward.1} parent=0 // pred_check_branch
    %78 = sbr.rel (0) target = $region97
  $region96: #{multiview_gnn_forward.1} parent=0 // pred_region
    _
  $region97: #{multiview_gnn_forward.1} parent=0 // pred_fallthru
    _
  // Predicated region
  $region98: #{multiview_gnn_forward.1} parent=0 // pred_check
    _
  $region99: #{multiview_gnn_forward.1} parent=0 // pred_check_branch
    %80 = sbr.rel (0) target = $region101
  $region100: #{multiview_gnn_forward.1} parent=0 // pred_region
    _
  $region101: #{multiview_gnn_forward.1} parent=0 // pred_fallthru
    _
  // Predicated region
  $region102: #{multiview_gnn_forward.1} parent=0 // pred_check
    _
  $region103: #{multiview_gnn_forward.1} parent=0 // pred_check_branch
    %82 = sbr.rel (0) target = $region105
  $region104: #{multiview_gnn_forward.1} parent=0 // pred_region
    _
  $region105: #{multiview_gnn_forward.1} parent=0 // pred_fallthru
    _
  %v83 = vld [vmem:[%s0] sm:$0xff]
  %v84 = vld [vmem:[%s0 + $0x8] sm:$0xff]
  %v85 = vld [vmem:[%s0 + $0x10] sm:$0xff]
  %v86 = vld [vmem:[%s0 + $0x18] sm:$0xff]
  %v87 = vld [vmem:[%s1] sm:$0xff]
  %v88 = vld [vmem:[%s1 + $0x8] sm:$0xff]
  %v89 = vld [vmem:[%s1 + $0x10] sm:$0xff]
  %v90 = vld [vmem:[%s1 + $0x18] sm:$0xff]
  %v91 = vld [vmem:[%s2] sm:$0xff]
  %v92 = vld [vmem:[%s2 + $0x8] sm:$0xff]
  %v93 = vld [vmem:[%s2 + $0x10] sm:$0xff]
  %v94 = vld [vmem:[%s2 + $0x18] sm:$0xff]
  %v95 = vld [vmem:[%s3] sm:$0xff]
  %v96 = vld [vmem:[%s3 + $0x8] sm:$0xff]
  %v97 = vld [vmem:[%s3 + $0x10] sm:$0xff]
  %v98 = vld [vmem:[%s3 + $0x18] sm:$0xff]
  %v99 = vld [vmem:[%s4] sm:$0xff]
  %v100 = vld [vmem:[%s4 + $0x8] sm:$0xff]
  %v101 = vld [vmem:[%s4 + $0x10] sm:$0xff]
  %v102 = vld [vmem:[%s4 + $0x18] sm:$0xff]
  %v103 = vld [vmem:[%s5] sm:$0xff]
  %v104 = vld [vmem:[%s5 + $0x8] sm:$0xff]
  %v105 = vld [vmem:[%s5 + $0x10] sm:$0xff]
  %v106 = vld [vmem:[%s5 + $0x18] sm:$0xff]
  %v107 = vld [vmem:[%s6] sm:$0xff]
  %v108 = vld [vmem:[%s6 + $0x8] sm:$0xff]
  %v109 = vld [vmem:[%s6 + $0x10] sm:$0xff]
  %v110 = vld [vmem:[%s6 + $0x18] sm:$0xff]
  %v111 = vld [vmem:[%s6 + $0x20] sm:$0xff]
  %v112 = vld [vmem:[%s6 + $0x28] sm:$0xff]
  %v113 = vld [vmem:[%s6 + $0x30] sm:$0xff]
  %v114 = vld [vmem:[%s6 + $0x38] sm:$0xff]
  %v115 = vld [vmem:[%s6 + $0x40] sm:$0xff]
  %v116 = vld [vmem:[%s6 + $0x48] sm:$0xff]
  %v117 = vld [vmem:[%s6 + $0x50] sm:$0xff]
  %v118 = vld [vmem:[%s6 + $0x58] sm:$0xff]
  %v119 = vld [vmem:[%s6 + $0x60] sm:$0xff]
  %v120 = vld [vmem:[%s6 + $0x68] sm:$0xff]
  %v121 = vld [vmem:[%s6 + $0x70] sm:$0xff]
  %v122 = vld [vmem:[%s6 + $0x78] sm:$0xff]
  %v123 = vld [vmem:[%s7] sm:$0xff]
  %v124 = vld [vmem:[%s7 + $0x8] sm:$0xff]
  %v125 = vld [vmem:[%s7 + $0x10] sm:$0xff]
  %v126 = vld [vmem:[%s7 + $0x18] sm:$0xff]
  %v127 = vld [vmem:[%s7 + $0x20] sm:$0xff]
  %v128 = vld [vmem:[%s7 + $0x28] sm:$0xff]
  %v129 = vld [vmem:[%s7 + $0x30] sm:$0xff]
  %v130 = vld [vmem:[%s7 + $0x38] sm:$0xff]
  %v131 = vld [vmem:[%s7 + $0x40] sm:$0xff]
  %v132 = vld [vmem:[%s7 + $0x48] sm:$0xff]
  %v133 = vld [vmem:[%s7 + $0x50] sm:$0xff]
  %v134 = vld [vmem:[%s7 + $0x58] sm:$0xff]
  %v135 = vld [vmem:[%s7 + $0x60] sm:$0xff]
  %v136 = vld [vmem:[%s7 + $0x68] sm:$0xff]
  %v137 = vld [vmem:[%s7 + $0x70] sm:$0xff]
  %v138 = vld [vmem:[%s7 + $0x78] sm:$0xff]
  %v139 = vld [vmem:[%s8] sm:$0xff]
  %v140 = vld [vmem:[%s8 + $0x8] sm:$0xff]
  %v141 = vld [vmem:[%s8 + $0x10] sm:$0xff]
  %v142 = vld [vmem:[%s8 + $0x18] sm:$0xff]
  %v143 = vld [vmem:[%s8 + $0x20] sm:$0xff]
  %v144 = vld [vmem:[%s8 + $0x28] sm:$0xff]
  %v145 = vld [vmem:[%s8 + $0x30] sm:$0xff]
  %v146 = vld [vmem:[%s8 + $0x38] sm:$0xff]
  %v147 = vld [vmem:[%s9] sm:$0xff]
  %v148 = vld [vmem:[%s9 + $0x8] sm:$0xff]
  %v149 = vld [vmem:[%s9 + $0x10] sm:$0xff]
  %v150 = vld [vmem:[%s10] sm:$0x1]
  %vm151 = vcmask 64512
  %v153 = vsel %vm151, %v83, 0
  %v156 = vsel %vm151, %v84, 0
  %v159 = vsel %vm151, %v85, 0
  %v162 = vsel %vm151, %v86, 0
  %164 = vmatprep.subr.mxu0 %v148
  %165 = vmatpush1.msra.mxu0 %v147
  %166 = vmatprep.subr.mxu0 0.0
  %167 = vmatpush1.msra.mxu0 0.0
  %168 = vmatprep.subr.mxu0 0.0
  %169 = vmatpush1.msra.mxu0 0.0
  %170 = vmatprep.subr.mxu0 0.0
  %171 = vmatpush1.msra.mxu0 0.0
  %172 = vmatprep.subr.mxu0 0.0
  %173 = vmatpush1.msra.mxu0 0.0
  %174 = vmatprep.subr.mxu0 0.0
  %175 = vmatpush1.msra.mxu0 0.0
  %176 = vmatprep.subr.mxu0 0.0
  %177 = vmatpush1.msra.mxu0 0.0
  %178 = vmatprep.subr.mxu0 0.0
  %179 = vmatpush1.msra.mxu0 0.0
  %180 = vmatprep.subr.mxu0 0.0
  %181 = vmatpush1.msra.mxu0 0.0
  %182 = vmatprep.subr.mxu0 0.0
  %183 = vmatpush1.msra.mxu0 0.0
  %184 = vmatprep.subr.mxu0 0.0
  %185 = vmatpush1.msra.mxu0 0.0
  %186 = vmatprep.subr.mxu0 0.0
  %187 = vmatpush1.msra.mxu0 0.0
  %188 = vmatprep.subr.mxu0 0.0
  %189 = vmatpush1.msra.mxu0 0.0
  %190 = vmatprep.subr.mxu0 0.0
  %191 = vmatpush1.msra.mxu0 0.0
  %192 = vmatprep.subr.mxu0 0.0
  %193 = vmatpush1.msra.mxu0 0.0
  %194 = vmatprep.subr.mxu0 0.0
  %195 = vmatpush1.msra.mxu0 0.0
  %196 = vmatprep.subr.mxu0 0.0
  %197 = vmatpush1.msra.mxu0 0.0
  %198 = vmatprep.subr.mxu0 0.0
  %199 = vmatpush1.msra.mxu0 0.0
  %200 = vmatprep.subr.mxu0 0.0
  %201 = vmatpush1.msra.mxu0 0.0
  %202 = vmatprep.subr.mxu0 0.0
  %203 = vmatpush1.msra.mxu0 0.0
  %204 = vmatprep.subr.mxu0 0.0
  %205 = vmatpush1.msra.mxu0 0.0
  %206 = vmatprep.subr.mxu0 0.0
  %207 = vmatpush1.msra.mxu0 0.0
  %208 = vmatprep.subr.mxu0 0.0
  %209 = vmatpush1.msra.mxu0 0.0
  %210 = vmatprep.subr.mxu0 0.0
  %211 = vmatpush1.msra.mxu0 0.0
  %212 = vmatprep.subr.mxu0 0.0
  %213 = vmatpush1.msra.mxu0 0.0
  %214 = vmatprep.subr.mxu0 0.0
  %215 = vmatpush1.msra.mxu0 0.0
  %216 = vmatprep.subr.mxu0 0.0
  %217 = vmatpush1.msra.mxu0 0.0
  %218 = vmatprep.subr.mxu0 0.0
  %219 = vmatpush1.msra.mxu0 0.0
  %220 = vmatprep.subr.mxu0 0.0
  %221 = vmatpush1.msra.mxu0 0.0
  %222 = vmatprep.subr.mxu0 0.0
  %223 = vmatpush1.msra.mxu0 0.0
  %224 = vmatprep.subr.mxu0 0.0
  %225 = vmatpush1.msra.mxu0 0.0
  %226 = vmatprep.subr.mxu0 0.0
  %227 = vmatpush1.msra.mxu0 0.0
  %228 = vmatprep.mubr.f32.mxu0 0.0
  %229 = vmatmul.mubr.f32.gmra.mrb[0].mxu0 %v153
  %v230 = vpop.f32.mrb[0].mxu0
  %v231 = vadd.f32 0.0, %v230
  %v232 = vpop.f32.mrb[0].mxu0
  %v233 = vadd.f32 0.0, %v232
  %234 = vmatprep.mubr.f32.mxu0 0.0
  %235 = vmatmul.mubr.f32.gmra.mrb[0].mxu0 %v156
  %v236 = vpop.f32.mrb[0].mxu0
  %v237 = vadd.f32 0.0, %v236
  %v238 = vpop.f32.mrb[0].mxu0
  %v239 = vadd.f32 0.0, %v238
  %240 = vmatprep.mubr.f32.mxu0 0.0
  %241 = vmatmul.mubr.f32.gmra.mrb[0].mxu0 %v159
  %v242 = vpop.f32.mrb[0].mxu0
  %v243 = vadd.f32 0.0, %v242
  %v244 = vpop.f32.mrb[0].mxu0
  %v245 = vadd.f32 0.0, %v244
  %246 = vmatprep.mubr.f32.mxu0 0.0
  %247 = vmatmul.mubr.f32.gmra.mrb[0].mxu0 %v162
  %v248 = vpop.f32.mrb[0].mxu0
  %v249 = vadd.f32 0.0, %v248
  %v250 = vpop.f32.mrb[0].mxu0
  %v251 = vadd.f32 0.0, %v250
  %252 = vdwg.mxu0
  %253 = vmatprep.subr.mxu0 0.0
  %254 = vmatpush1.msra.mxu0 %v149
  %255 = vmatprep.subr.mxu0 0.0
  %256 = vmatpush1.msra.mxu0 0.0
  %257 = vmatprep.subr.mxu0 0.0
  %258 = vmatpush1.msra.mxu0 0.0
  %259 = vmatprep.subr.mxu0 0.0
  %260 = vmatpush1.msra.mxu0 0.0
  %261 = vmatprep.subr.mxu0 0.0
  %262 = vmatpush1.msra.mxu0 0.0
  %263 = vmatprep.subr.mxu0 0.0
  %264 = vmatpush1.msra.mxu0 0.0
  %265 = vmatprep.subr.mxu0 0.0
  %266 = vmatpush1.msra.mxu0 0.0
  %267 = vmatprep.subr.mxu0 0.0
  %268 = vmatpush1.msra.mxu0 0.0
  %269 = vmatprep.subr.mxu0 0.0
  %270 = vmatpush1.msra.mxu0 0.0
  %271 = vmatprep.subr.mxu0 0.0
  %272 = vmatpush1.msra.mxu0 0.0
  %273 = vmatprep.subr.mxu0 0.0
  %274 = vmatpush1.msra.mxu0 0.0
  %275 = vmatprep.subr.mxu0 0.0
  %276 = vmatpush1.msra.mxu0 0.0
  %277 = vmatprep.subr.mxu0 0.0
  %278 = vmatpush1.msra.mxu0 0.0
  %279 = vmatprep.subr.mxu0 0.0
  %280 = vmatpush1.msra.mxu0 0.0
  %281 = vmatprep.subr.mxu0 0.0
  %282 = vmatpush1.msra.mxu0 0.0
  %283 = vmatprep.subr.mxu0 0.0
  %284 = vmatpush1.msra.mxu0 0.0
  %285 = vmatprep.subr.mxu0 0.0
  %286 = vmatpush1.msra.mxu0 0.0
  %287 = vmatprep.subr.mxu0 0.0
  %288 = vmatpush1.msra.mxu0 0.0
  %289 = vmatprep.subr.mxu0 0.0
  %290 = vmatpush1.msra.mxu0 0.0
  %291 = vmatprep.subr.mxu0 0.0
  %292 = vmatpush1.msra.mxu0 0.0
  %293 = vmatprep.subr.mxu0 0.0
  %294 = vmatpush1.msra.mxu0 0.0
  %295 = vmatprep.subr.mxu0 0.0
  %296 = vmatpush1.msra.mxu0 0.0
  %297 = vmatprep.subr.mxu0 0.0
  %298 = vmatpush1.msra.mxu0 0.0
  %299 = vmatprep.subr.mxu0 0.0
  %300 = vmatpush1.msra.mxu0 0.0
  %301 = vmatprep.subr.mxu0 0.0
  %302 = vmatpush1.msra.mxu0 0.0
  %303 = vmatprep.subr.mxu0 0.0
  %304 = vmatpush1.msra.mxu0 0.0
  %305 = vmatprep.subr.mxu0 0.0
  %306 = vmatpush1.msra.mxu0 0.0
  %307 = vmatprep.subr.mxu0 0.0
  %308 = vmatpush1.msra.mxu0 0.0
  %309 = vmatprep.subr.mxu0 0.0
  %310 = vmatpush1.msra.mxu0 0.0
  %311 = vmatprep.subr.mxu0 0.0
  %312 = vmatpush1.msra.mxu0 0.0
  %313 = vmatprep.subr.mxu0 0.0
  %314 = vmatpush1.msra.mxu0 0.0
  %315 = vmatprep.subr.mxu0 0.0
  %316 = vmatpush1.msra.mxu0 0.0
  %317 = vmatprep.mubr.f32.mxu0 0.0
  %318 = vmatmul.mubr.f32.gmra.mrb[0].mxu0 %v153
  %v319 = vpop.f32.mrb[0].mxu0
  %v320 = vadd.f32 0.0, %v319
  %v321 = vpop.f32.mrb[0].mxu0
  %322 = vmatprep.mubr.f32.mxu0 0.0
  %323 = vmatmul.mubr.f32.gmra.mrb[0].mxu0 %v156
  %v324 = vpop.f32.mrb[0].mxu0
  %v325 = vadd.f32 0.0, %v324
  %v326 = vpop.f32.mrb[0].mxu0
  %327 = vmatprep.mubr.f32.mxu0 0.0
  %328 = vmatmul.mubr.f32.gmra.mrb[0].mxu0 %v159
  %v329 = vpop.f32.mrb[0].mxu0
  %v330 = vadd.f32 0.0, %v329
  %v331 = vpop.f32.mrb[0].mxu0
  %332 = vmatprep.mubr.f32.mxu0 0.0
  %333 = vmatmul.mubr.f32.gmra.mrb[0].mxu0 %v162
  %v334 = vpop.f32.mrb[0].mxu0
  %v335 = vadd.f32 0.0, %v334
  %v336 = vpop.f32.mrb[0].mxu0
  %337 = vdwg.mxu0
  %v338 = vmul.f32 %v233, %v103
  %v339 = vmul.f32 %v239, %v104
  %v340 = vmul.f32 %v245, %v105
  %v341 = vmul.f32 %v251, %v106
  %v342 = vadd.f32 %v338, %v339
  %v343 = vadd.f32 %v342, %v340
  %v344 = vadd.f32 %v343, %v341
  %v345 = vrot.slane %v344, 4
  %v346 = vadd.f32 %v344, %v345
  %v347 = vrot.slane %v346, 2
  %v348 = vadd.f32 %v346, %v347
  %v349 = vrot.slane %v348, 1
  %v350 = vadd.f32 %v348, %v349
  %v351 = vadd.f32 %v231, %v350
  %v352 = vadd.f32 %v237, %v350
  %v353 = vadd.f32 %v243, %v350
  %v354 = vadd.f32 %v249, %v350
  %vm355 = vcmp.gt.f32.partialorder %v351, 0.0
  %vm356 = vcmp.gt.f32.partialorder %v352, 0.0
  %vm357 = vcmp.gt.f32.partialorder %v353, 0.0
  %vm358 = vcmp.gt.f32.partialorder %v354, 0.0
  %v359 = vmul.f32 %v351, 0.2
  %v360 = vmul.f32 %v352, 0.2
  %v361 = vmul.f32 %v353, 0.2
  %v362 = vmul.f32 %v354, 0.2
  %v363 = vsel %vm355, %v351, %v359
  %v364 = vsel %vm356, %v352, %v360
  %v365 = vsel %vm357, %v353, %v361
  %v366 = vsel %vm358, %v354, %v362
  %vm367 = vcmp.gt.f32.partialorder %v95, 0.0
  %vm368 = vcmp.gt.f32.partialorder %v96, 0.0
  %vm369 = vcmp.gt.f32.partialorder %v97, 0.0
  %vm370 = vcmp.gt.f32.partialorder %v98, 0.0
  %v371 = vsel %vm367, %v363, -1e+30
  %v372 = vsel %vm368, %v364, -1e+30
  %v373 = vsel %vm369, %v365, -1e+30
  %v374 = vsel %vm370, %v366, -1e+30
  %vm375 = vcmask 261120
  %v376 = vsel %vm375, %v371, -inf
  %377 = vmax.xlane.f32.xlu0 %v376
  %v378 = vpop.xlane.xlu0 %377
  %v379 = vsel %vm375, %v372, -inf
  %380 = vmax.xlane.f32.xlu0 %v379
  %v381 = vpop.xlane.xlu0 %380
  %v382 = vsel %vm375, %v373, -inf
  %383 = vmax.xlane.f32.xlu0 %v382
  %v384 = vpop.xlane.xlu0 %383
  %v385 = vsel %vm375, %v374, -inf
  %386 = vmax.xlane.f32.xlu0 %v385
  %v387 = vpop.xlane.xlu0 %386
  %vm388 = vcmask 523520
  %v389 = vsel %vm388, %v371, -inf
  %390 = vmax.xlane.f32.xlu0 %v389
  %v391 = vpop.xlane.xlu0 %390
  %v392 = vsel %vm388, %v372, -inf
  %393 = vmax.xlane.f32.xlu0 %v392
  %v394 = vpop.xlane.xlu0 %393
  %v395 = vsel %vm388, %v373, -inf
  %396 = vmax.xlane.f32.xlu0 %v395
  %v397 = vpop.xlane.xlu0 %396
  %v398 = vsel %vm388, %v374, -inf
  %399 = vmax.xlane.f32.xlu0 %v398
  %v400 = vpop.xlane.xlu0 %399
  %vm401 = vcmask 785920
  %v402 = vsel %vm401, %v371, -inf
  %403 = vmax.xlane.f32.xlu0 %v402
  %v404 = vpop.xlane.xlu0 %403
  %v405 = vsel %vm401, %v372, -inf
  %406 = vmax.xlane.f32.xlu0 %v405
  %v407 = vpop.xlane.xlu0 %406
  %v408 = vsel %vm401, %v373, -inf
  %409 = vmax.xlane.f32.xlu0 %v408
  %v410 = vpop.xlane.xlu0 %409
  %v411 = vsel %vm401, %v374, -inf
  %412 = vmax.xlane.f32.xlu0 %v411
  %v413 = vpop.xlane.xlu0 %412
  %vm414 = vcmask 1048320
  %v415 = vsel %vm414, %v371, -inf
  %416 = vmax.xlane.f32.xlu0 %v415
  %v417 = vpop.xlane.xlu0 %416
  %v418 = vsel %vm414, %v372, -inf
  %419 = vmax.xlane.f32.xlu0 %v418
  %v420 = vpop.xlane.xlu0 %419
  %v421 = vsel %vm414, %v373, -inf
  %422 = vmax.xlane.f32.xlu0 %v421
  %v423 = vpop.xlane.xlu0 %422
  %v424 = vsel %vm414, %v374, -inf
  %425 = vmax.xlane.f32.xlu0 %v424
  %v426 = vpop.xlane.xlu0 %425
  %v427 = vsel %vm375, %v378, %v391
  %v428 = vsel %vm375, %v381, %v394
  %v429 = vsel %vm375, %v384, %v397
  %v430 = vsel %vm375, %v387, %v400
  %vm431 = vcmask 523264
  %v432 = vsel %vm431, %v427, %v404
  %v433 = vsel %vm431, %v428, %v407
  %v434 = vsel %vm431, %v429, %v410
  %v435 = vsel %vm431, %v430, %v413
  %vm436 = vcmask 785408
  %v437 = vsel %vm436, %v432, %v417
  %v438 = vsel %vm436, %v433, %v420
  %v439 = vsel %vm436, %v434, %v423
  %v440 = vsel %vm436, %v435, %v426
  %v441 = vsub.f32 %v371, %v437
  %v442 = vsub.f32 %v372, %v438
  %v443 = vsub.f32 %v373, %v439
  %v444 = vsub.f32 %v374, %v440
  %v445 = vmul.f32 %v441, 1.442695
  %v446 = vpow.pop %v445
  %v447 = vmul.f32 %v442, 1.442695
  %v448 = vpow.pop %v447
  %v449 = vmul.f32 %v443, 1.442695
  %v450 = vpow.pop %v449
  %v451 = vmul.f32 %v444, 1.442695
  %v452 = vpow.pop %v451
  %v453 = vmul.f32 %v446, %v95
  %v454 = vmul.f32 %v448, %v96
  %v455 = vmul.f32 %v450, %v97
  %v456 = vmul.f32 %v452, %v98
  %457 = vmatprep.subr.mxu0 0.0
  %458 = vmatpush1.msra.mxu0 %v107
  %459 = vmatprep.subr.mxu0 0.0
  %460 = vmatpush1.msra.mxu0 %v108
  %461 = vmatprep.subr.mxu0 0.0
  %462 = vmatpush1.msra.mxu0 %v109
  %463 = vmatprep.subr.mxu0 0.0
  %464 = vmatpush1.msra.mxu0 %v110
  %465 = vmatprep.subr.mxu0 0.0
  %466 = vmatpush1.msra.mxu0 %v111
  %467 = vmatprep.subr.mxu0 0.0
  %468 = vmatpush1.msra.mxu0 %v112
  %469 = vmatprep.subr.mxu0 0.0
  %470 = vmatpush1.msra.mxu0 %v113
  %471 = vmatprep.subr.mxu0 0.0
  %472 = vmatpush1.msra.mxu0 %v114
  %473 = vmatprep.subr.mxu0 0.0
  %474 = vmatpush1.msra.mxu0 %v115
  %475 = vmatprep.subr.mxu0 0.0
  %476 = vmatpush1.msra.mxu0 %v116
  %477 = vmatprep.subr.mxu0 0.0
  %478 = vmatpush1.msra.mxu0 %v117
  %479 = vmatprep.subr.mxu0 0.0
  %480 = vmatpush1.msra.mxu0 %v118
  %481 = vmatprep.subr.mxu0 0.0
  %482 = vmatpush1.msra.mxu0 %v119
  %483 = vmatprep.subr.mxu0 0.0
  %484 = vmatpush1.msra.mxu0 %v120
  %485 = vmatprep.subr.mxu0 0.0
  %486 = vmatpush1.msra.mxu0 %v121
  %487 = vmatprep.subr.mxu0 0.0
  %488 = vmatpush1.msra.mxu0 %v122
  %489 = vmatprep.subr.mxu0 0.0
  %490 = vmatpush1.msra.mxu0 0.0
  %491 = vmatprep.subr.mxu0 0.0
  %492 = vmatpush1.msra.mxu0 0.0
  %493 = vmatprep.subr.mxu0 0.0
  %494 = vmatpush1.msra.mxu0 0.0
  %495 = vmatprep.subr.mxu0 0.0
  %496 = vmatpush1.msra.mxu0 0.0
  %497 = vmatprep.subr.mxu0 0.0
  %498 = vmatpush1.msra.mxu0 0.0
  %499 = vmatprep.subr.mxu0 0.0
  %500 = vmatpush1.msra.mxu0 0.0
  %501 = vmatprep.subr.mxu0 0.0
  %502 = vmatpush1.msra.mxu0 0.0
  %503 = vmatprep.subr.mxu0 0.0
  %504 = vmatpush1.msra.mxu0 0.0
  %505 = vmatprep.subr.mxu0 0.0
  %506 = vmatpush1.msra.mxu0 0.0
  %507 = vmatprep.subr.mxu0 0.0
  %508 = vmatpush1.msra.mxu0 0.0
  %509 = vmatprep.subr.mxu0 0.0
  %510 = vmatpush1.msra.mxu0 0.0
  %511 = vmatprep.subr.mxu0 0.0
  %512 = vmatpush1.msra.mxu0 0.0
  %513 = vmatprep.subr.mxu0 0.0
  %514 = vmatpush1.msra.mxu0 0.0
  %515 = vmatprep.subr.mxu0 0.0
  %516 = vmatpush1.msra.mxu0 0.0
  %517 = vmatprep.subr.mxu0 0.0
  %518 = vmatpush1.msra.mxu0 0.0
  %519 = vmatprep.subr.mxu0 0.0
  %520 = vmatpush1.msra.mxu0 0.0
  %521 = vmatprep.mubr.f32.mxu0 0.0
  %522 = vmatmul.mubr.f32.gmra.mrb[0].mxu0 %v453
  %v523 = vpop.f32.mrb[0].mxu0
  %v524 = vadd.f32 1e-16, %v523
  %v525 = vpop.f32.mrb[0].mxu0
  %526 = vmatprep.mubr.f32.mxu0 0.0
  %527 = vmatmul.mubr.f32.gmra.mrb[0].mxu0 %v454
  %v528 = vpop.f32.mrb[0].mxu0
  %v529 = vadd.f32 1e-16, %v528
  %v530 = vpop.f32.mrb[0].mxu0
  %531 = vmatprep.mubr.f32.mxu0 0.0
  %532 = vmatmul.mubr.f32.gmra.mrb[0].mxu0 %v455
  %v533 = vpop.f32.mrb[0].mxu0
  %v534 = vadd.f32 1e-16, %v533
  %v535 = vpop.f32.mrb[0].mxu0
  %536 = vmatprep.mubr.f32.mxu0 0.0
  %537 = vmatmul.mubr.f32.gmra.mrb[0].mxu0 %v456
  %v538 = vpop.f32.mrb[0].mxu0
  %v539 = vadd.f32 1e-16, %v538
  %v540 = vpop.f32.mrb[0].mxu0
  %541 = vdwg.mxu0
  %v542 = vrcp.pop %v524
  %v543 = vrcp.pop %v529
  %v544 = vrcp.pop %v534
  %v545 = vrcp.pop %v539
  %v546 = vmul.f32 %v453, %v542
  %v547 = vmul.f32 %v454, %v543
  %v548 = vmul.f32 %v455, %v544
  %v549 = vmul.f32 %v456, %v545
  %v550 = vmul.f32 %v320, %v123
  %v551 = vmul.f32 %v325, %v124
  %v552 = vmul.f32 %v330, %v125
  %v553 = vmul.f32 %v335, %v126
  %v554 = vmul.f32 %v320, %v127
  %v555 = vmul.f32 %v325, %v128
  %v556 = vmul.f32 %v330, %v129
  %v557 = vmul.f32 %v335, %v130
  %v558 = vmul.f32 %v320, %v131
  %v559 = vmul.f32 %v325, %v132
  %v560 = vmul.f32 %v330, %v133
  %v561 = vmul.f32 %v335, %v134
  %v562 = vmul.f32 %v320, %v135
  %v563 = vmul.f32 %v325, %v136
  %v564 = vmul.f32 %v330, %v137
  %v565 = vmul.f32 %v335, %v138
  %v567 = vlaneseq
  %v568 = vshrl.u32 %v567, 7
  %v569 = vsub.s32 0, %v568
  %v570 = vrot.slane %v150, %v569
  %572 = vmatprep.subr.mxu0 0.0
  %573 = vmatpush1.msra.mxu0 %v550
  %574 = vmatprep.subr.mxu0 0.0
  %575 = vmatpush1.msra.mxu0 %v551
  %576 = vmatprep.subr.mxu0 0.0
  %577 = vmatpush1.msra.mxu0 %v552
  %578 = vmatprep.subr.mxu0 0.0
  %579 = vmatpush1.msra.mxu0 %v553
  %580 = vmatprep.subr.mxu0 0.0
  %581 = vmatpush1.msra.mxu0 %v554
  %582 = vmatprep.subr.mxu0 0.0
  %583 = vmatpush1.msra.mxu0 %v555
  %584 = vmatprep.subr.mxu0 0.0
  %585 = vmatpush1.msra.mxu0 %v556
  %586 = vmatprep.subr.mxu0 0.0
  %587 = vmatpush1.msra.mxu0 %v557
  %588 = vmatprep.subr.mxu0 0.0
  %589 = vmatpush1.msra.mxu0 %v558
  %590 = vmatprep.subr.mxu0 0.0
  %591 = vmatpush1.msra.mxu0 %v559
  %592 = vmatprep.subr.mxu0 0.0
  %593 = vmatpush1.msra.mxu0 %v560
  %594 = vmatprep.subr.mxu0 0.0
  %595 = vmatpush1.msra.mxu0 %v561
  %596 = vmatprep.subr.mxu0 0.0
  %597 = vmatpush1.msra.mxu0 %v562
  %598 = vmatprep.subr.mxu0 0.0
  %599 = vmatpush1.msra.mxu0 %v563
  %600 = vmatprep.subr.mxu0 0.0
  %601 = vmatpush1.msra.mxu0 %v564
  %602 = vmatprep.subr.mxu0 0.0
  %603 = vmatpush1.msra.mxu0 %v565
  %604 = vmatprep.subr.mxu0 0.0
  %605 = vmatpush1.msra.mxu0 0.0
  %606 = vmatprep.subr.mxu0 0.0
  %607 = vmatpush1.msra.mxu0 0.0
  %608 = vmatprep.subr.mxu0 0.0
  %609 = vmatpush1.msra.mxu0 0.0
  %610 = vmatprep.subr.mxu0 0.0
  %611 = vmatpush1.msra.mxu0 0.0
  %612 = vmatprep.subr.mxu0 0.0
  %613 = vmatpush1.msra.mxu0 0.0
  %614 = vmatprep.subr.mxu0 0.0
  %615 = vmatpush1.msra.mxu0 0.0
  %616 = vmatprep.subr.mxu0 0.0
  %617 = vmatpush1.msra.mxu0 0.0
  %618 = vmatprep.subr.mxu0 0.0
  %619 = vmatpush1.msra.mxu0 0.0
  %620 = vmatprep.subr.mxu0 0.0
  %621 = vmatpush1.msra.mxu0 0.0
  %622 = vmatprep.subr.mxu0 0.0
  %623 = vmatpush1.msra.mxu0 0.0
  %624 = vmatprep.subr.mxu0 0.0
  %625 = vmatpush1.msra.mxu0 0.0
  %626 = vmatprep.subr.mxu0 0.0
  %627 = vmatpush1.msra.mxu0 0.0
  %628 = vmatprep.subr.mxu0 0.0
  %629 = vmatpush1.msra.mxu0 0.0
  %630 = vmatprep.subr.mxu0 0.0
  %631 = vmatpush1.msra.mxu0 0.0
  %632 = vmatprep.subr.mxu0 0.0
  %633 = vmatpush1.msra.mxu0 0.0
  %634 = vmatprep.subr.mxu0 0.0
  %635 = vmatpush1.msra.mxu0 0.0
  %636 = vmatprep.mubr.f32.mxu0 0.0
  %637 = vmatmul.mubr.f32.gmra.mrb[0].mxu0 %v546
  %v638 = vpop.f32.mrb[0].mxu0
  %v639 = vadd.f32 %v570, %v638
  %v640 = vpop.f32.mrb[0].mxu0
  %641 = vmatprep.mubr.f32.mxu0 0.0
  %642 = vmatmul.mubr.f32.gmra.mrb[0].mxu0 %v547
  %v643 = vpop.f32.mrb[0].mxu0
  %v644 = vadd.f32 %v570, %v643
  %v645 = vpop.f32.mrb[0].mxu0
  %646 = vmatprep.mubr.f32.mxu0 0.0
  %647 = vmatmul.mubr.f32.gmra.mrb[0].mxu0 %v548
  %v648 = vpop.f32.mrb[0].mxu0
  %v649 = vadd.f32 %v570, %v648
  %v650 = vpop.f32.mrb[0].mxu0
  %651 = vmatprep.mubr.f32.mxu0 0.0
  %652 = vmatmul.mubr.f32.gmra.mrb[0].mxu0 %v549
  %v653 = vpop.f32.mrb[0].mxu0
  %v654 = vadd.f32 %v570, %v653
  %v655 = vpop.f32.mrb[0].mxu0
  %656 = vdwg.mxu0
  %vm657 = vcmp.gt.f32.partialorder %v639, 0.0
  %vm658 = vcmp.gt.f32.partialorder %v644, 0.0
  %vm659 = vcmp.gt.f32.partialorder %v649, 0.0
  %vm660 = vcmp.gt.f32.partialorder %v654, 0.0
  %v661 = vmin.f32 %v639, 0.0
  %v662 = vmin.f32 %v644, 0.0
  %v663 = vmin.f32 %v649, 0.0
  %v664 = vmin.f32 %v654, 0.0
  %v665 = vmul.f32 %v661, 1.442695
  %v666 = vpow.pop %v665
  %v667 = vmul.f32 %v662, 1.442695
  %v668 = vpow.pop %v667
  %v669 = vmul.f32 %v663, 1.442695
  %v670 = vpow.pop %v669
  %v671 = vmul.f32 %v664, 1.442695
  %v672 = vpow.pop %v671
  %v673 = vsub.f32 %v666, 1.0
  %v674 = vsub.f32 %v668, 1.0
  %v675 = vsub.f32 %v670, 1.0
  %v676 = vsub.f32 %v672, 1.0
  %v677 = vsel %vm657, %v639, %v673
  %v678 = vsel %vm658, %v644, %v674
  %v679 = vsel %vm659, %v649, %v675
  %v680 = vsel %vm660, %v654, %v676
  %v681 = vld [vmem:[%s11] sm:$0xff]
  %v682 = vld [vmem:[%s11 + $0x8] sm:$0xff]
  %v683 = vld [vmem:[%s11 + $0x10] sm:$0xff]
  %v684 = vld [vmem:[%s11 + $0x18] sm:$0xff]
  %v685 = vld [vmem:[%s11 + $0x20] sm:$0xff]
  %v686 = vld [vmem:[%s11 + $0x28] sm:$0xff]
  %v687 = vld [vmem:[%s11 + $0x30] sm:$0xff]
  %v688 = vld [vmem:[%s11 + $0x38] sm:$0xff]
  %v689 = vld [vmem:[%s11 + $0x40] sm:$0xff]
  %v690 = vld [vmem:[%s11 + $0x48] sm:$0xff]
  %v691 = vld [vmem:[%s11 + $0x50] sm:$0xff]
  %v692 = vld [vmem:[%s11 + $0x58] sm:$0xff]
  %v693 = vld [vmem:[%s11 + $0x60] sm:$0xff]
  %v694 = vld [vmem:[%s11 + $0x68] sm:$0xff]
  %v695 = vld [vmem:[%s11 + $0x70] sm:$0xff]
  %v696 = vld [vmem:[%s11 + $0x78] sm:$0xff]
  %v697 = vld [vmem:[%s11 + $0x80] sm:$0xff]
  %v698 = vld [vmem:[%s11 + $0x88] sm:$0xff]
  %v699 = vld [vmem:[%s11 + $0x90] sm:$0xff]
  %v700 = vld [vmem:[%s11 + $0x98] sm:$0xff]
  %v701 = vld [vmem:[%s11 + $0xa0] sm:$0xff]
  %v702 = vld [vmem:[%s11 + $0xa8] sm:$0xff]
  %v703 = vld [vmem:[%s11 + $0xb0] sm:$0xff]
  %v704 = vld [vmem:[%s11 + $0xb8] sm:$0xff]
  %v705 = vld [vmem:[%s12] sm:$0x1]
  %v707 = vsel %vm431, %v677, 0
  %v710 = vsel %vm431, %v678, 0
  %v713 = vsel %vm431, %v679, 0
  %v716 = vsel %vm431, %v680, 0
  %718 = vmatprep.subr.mxu0 %v682
  %719 = vmatpush1.msra.mxu0 %v681
  %720 = vmatprep.subr.mxu0 %v685
  %721 = vmatpush1.msra.mxu0 %v684
  %722 = vmatprep.subr.mxu0 %v688
  %723 = vmatpush1.msra.mxu0 %v687
  %724 = vmatprep.subr.mxu0 %v691
  %725 = vmatpush1.msra.mxu0 %v690
  %726 = vmatprep.subr.mxu0 %v694
  %727 = vmatpush1.msra.mxu0 %v693
  %728 = vmatprep.subr.mxu0 %v697
  %729 = vmatpush1.msra.mxu0 %v696
  %730 = vmatprep.subr.mxu0 %v700
  %731 = vmatpush1.msra.mxu0 %v699
  %732 = vmatprep.subr.mxu0 %v703
  %733 = vmatpush1.msra.mxu0 %v702
  %734 = vmatprep.subr.mxu0 0.0
  %735 = vmatpush1.msra.mxu0 0.0
  %736 = vmatprep.subr.mxu0 0.0
  %737 = vmatpush1.msra.mxu0 0.0
  %738 = vmatprep.subr.mxu0 0.0
  %739 = vmatpush1.msra.mxu0 0.0
  %740 = vmatprep.subr.mxu0 0.0
  %741 = vmatpush1.msra.mxu0 0.0
  %742 = vmatprep.subr.mxu0 0.0
  %743 = vmatpush1.msra.mxu0 0.0
  %744 = vmatprep.subr.mxu0 0.0
  %745 = vmatpush1.msra.mxu0 0.0
  %746 = vmatprep.subr.mxu0 0.0
  %747 = vmatpush1.msra.mxu0 0.0
  %748 = vmatprep.subr.mxu0 0.0
  %749 = vmatpush1.msra.mxu0 0.0
  %750 = vmatprep.subr.mxu0 0.0
  %751 = vmatpush1.msra.mxu0 0.0
  %752 = vmatprep.subr.mxu0 0.0
  %753 = vmatpush1.msra.mxu0 0.0
  %754 = vmatprep.subr.mxu0 0.0
  %755 = vmatpush1.msra.mxu0 0.0
  %756 = vmatprep.subr.mxu0 0.0
  %757 = vmatpush1.msra.mxu0 0.0
  %758 = vmatprep.subr.mxu0 0.0
  %759 = vmatpush1.msra.mxu0 0.0
  %760 = vmatprep.subr.mxu0 0.0
  %761 = vmatpush1.msra.mxu0 0.0
  %762 = vmatprep.subr.mxu0 0.0
  %763 = vmatpush1.msra.mxu0 0.0
  %764 = vmatprep.subr.mxu0 0.0
  %765 = vmatpush1.msra.mxu0 0.0
  %766 = vmatprep.subr.mxu0 0.0
  %767 = vmatpush1.msra.mxu0 0.0
  %768 = vmatprep.subr.mxu0 0.0
  %769 = vmatpush1.msra.mxu0 0.0
  %770 = vmatprep.subr.mxu0 0.0
  %771 = vmatpush1.msra.mxu0 0.0
  %772 = vmatprep.subr.mxu0 0.0
  %773 = vmatpush1.msra.mxu0 0.0
  %774 = vmatprep.subr.mxu0 0.0
  %775 = vmatpush1.msra.mxu0 0.0
  %776 = vmatprep.subr.mxu0 0.0
  %777 = vmatpush1.msra.mxu0 0.0
  %778 = vmatprep.subr.mxu0 0.0
  %779 = vmatpush1.msra.mxu0 0.0
  %780 = vmatprep.subr.mxu0 0.0
  %781 = vmatpush1.msra.mxu0 0.0
  %782 = vmatprep.mubr.f32.mxu0 0.0
  %783 = vmatmul.mubr.f32.gmra.mrb[0].mxu0 %v707
  %v784 = vpop.f32.mrb[0].mxu0
  %v785 = vadd.f32 0.0, %v784
  %v786 = vpop.f32.mrb[0].mxu0
  %v787 = vadd.f32 0.0, %v786
  %788 = vmatprep.mubr.f32.mxu0 0.0
  %789 = vmatmul.mubr.f32.gmra.mrb[0].mxu0 %v710
  %v790 = vpop.f32.mrb[0].mxu0
  %v791 = vadd.f32 0.0, %v790
  %v792 = vpop.f32.mrb[0].mxu0
  %v793 = vadd.f32 0.0, %v792
  %794 = vmatprep.mubr.f32.mxu0 0.0
  %795 = vmatmul.mubr.f32.gmra.mrb[0].mxu0 %v713
  %v796 = vpop.f32.mrb[0].mxu0
  %v797 = vadd.f32 0.0, %v796
  %v798 = vpop.f32.mrb[0].mxu0
  %v799 = vadd.f32 0.0, %v798
  %800 = vmatprep.mubr.f32.mxu0 0.0
  %801 = vmatmul.mubr.f32.gmra.mrb[0].mxu0 %v716
  %v802 = vpop.f32.mrb[0].mxu0
  %v803 = vadd.f32 0.0, %v802
  %v804 = vpop.f32.mrb[0].mxu0
  %v805 = vadd.f32 0.0, %v804
  %806 = vdwg.mxu0
  %807 = vmatprep.subr.mxu0 0.0
  %808 = vmatpush1.msra.mxu0 %v683
  %809 = vmatprep.subr.mxu0 0.0
  %810 = vmatpush1.msra.mxu0 %v686
  %811 = vmatprep.subr.mxu0 0.0
  %812 = vmatpush1.msra.mxu0 %v689
  %813 = vmatprep.subr.mxu0 0.0
  %814 = vmatpush1.msra.mxu0 %v692
  %815 = vmatprep.subr.mxu0 0.0
  %816 = vmatpush1.msra.mxu0 %v695
  %817 = vmatprep.subr.mxu0 0.0
  %818 = vmatpush1.msra.mxu0 %v698
  %819 = vmatprep.subr.mxu0 0.0
  %820 = vmatpush1.msra.mxu0 %v701
  %821 = vmatprep.subr.mxu0 0.0
  %822 = vmatpush1.msra.mxu0 %v704
  %823 = vmatprep.subr.mxu0 0.0
  %824 = vmatpush1.msra.mxu0 0.0
  %825 = vmatprep.subr.mxu0 0.0
  %826 = vmatpush1.msra.mxu0 0.0
  %827 = vmatprep.subr.mxu0 0.0
  %828 = vmatpush1.msra.mxu0 0.0
  %829 = vmatprep.subr.mxu0 0.0
  %830 = vmatpush1.msra.mxu0 0.0
  %831 = vmatprep.subr.mxu0 0.0
  %832 = vmatpush1.msra.mxu0 0.0
  %833 = vmatprep.subr.mxu0 0.0
  %834 = vmatpush1.msra.mxu0 0.0
  %835 = vmatprep.subr.mxu0 0.0
  %836 = vmatpush1.msra.mxu0 0.0
  %837 = vmatprep.subr.mxu0 0.0
  %838 = vmatpush1.msra.mxu0 0.0
  %839 = vmatprep.subr.mxu0 0.0
  %840 = vmatpush1.msra.mxu0 0.0
  %841 = vmatprep.subr.mxu0 0.0
  %842 = vmatpush1.msra.mxu0 0.0
  %843 = vmatprep.subr.mxu0 0.0
  %844 = vmatpush1.msra.mxu0 0.0
  %845 = vmatprep.subr.mxu0 0.0
  %846 = vmatpush1.msra.mxu0 0.0
  %847 = vmatprep.subr.mxu0 0.0
  %848 = vmatpush1.msra.mxu0 0.0
  %849 = vmatprep.subr.mxu0 0.0
  %850 = vmatpush1.msra.mxu0 0.0
  %851 = vmatprep.subr.mxu0 0.0
  %852 = vmatpush1.msra.mxu0 0.0
  %853 = vmatprep.subr.mxu0 0.0
  %854 = vmatpush1.msra.mxu0 0.0
  %855 = vmatprep.subr.mxu0 0.0
  %856 = vmatpush1.msra.mxu0 0.0
  %857 = vmatprep.subr.mxu0 0.0
  %858 = vmatpush1.msra.mxu0 0.0
  %859 = vmatprep.subr.mxu0 0.0
  %860 = vmatpush1.msra.mxu0 0.0
  %861 = vmatprep.subr.mxu0 0.0
  %862 = vmatpush1.msra.mxu0 0.0
  %863 = vmatprep.subr.mxu0 0.0
  %864 = vmatpush1.msra.mxu0 0.0
  %865 = vmatprep.subr.mxu0 0.0
  %866 = vmatpush1.msra.mxu0 0.0
  %867 = vmatprep.subr.mxu0 0.0
  %868 = vmatpush1.msra.mxu0 0.0
  %869 = vmatprep.subr.mxu0 0.0
  %870 = vmatpush1.msra.mxu0 0.0
  %871 = vmatprep.mubr.f32.mxu0 0.0
  %872 = vmatmul.mubr.f32.gmra.mrb[0].mxu0 %v707
  %v873 = vpop.f32.mrb[0].mxu0
  %v874 = vadd.f32 0.0, %v873
  %v875 = vpop.f32.mrb[0].mxu0
  %876 = vmatprep.mubr.f32.mxu0 0.0
  %877 = vmatmul.mubr.f32.gmra.mrb[0].mxu0 %v710
  %v878 = vpop.f32.mrb[0].mxu0
  %v879 = vadd.f32 0.0, %v878
  %v880 = vpop.f32.mrb[0].mxu0
  %881 = vmatprep.mubr.f32.mxu0 0.0
  %882 = vmatmul.mubr.f32.gmra.mrb[0].mxu0 %v713
  %v883 = vpop.f32.mrb[0].mxu0
  %v884 = vadd.f32 0.0, %v883
  %v885 = vpop.f32.mrb[0].mxu0
  %886 = vmatprep.mubr.f32.mxu0 0.0
  %887 = vmatmul.mubr.f32.gmra.mrb[0].mxu0 %v716
  %v888 = vpop.f32.mrb[0].mxu0
  %v889 = vadd.f32 0.0, %v888
  %v890 = vpop.f32.mrb[0].mxu0
  %891 = vdwg.mxu0
  %v892 = vmul.f32 %v787, %v103
  %v893 = vmul.f32 %v793, %v104
  %v894 = vmul.f32 %v799, %v105
  %v895 = vmul.f32 %v805, %v106
  %v896 = vadd.f32 %v892, %v893
  %v897 = vadd.f32 %v896, %v894
  %v898 = vadd.f32 %v897, %v895
  %v899 = vrot.slane %v898, 4
  %v900 = vadd.f32 %v898, %v899
  %v901 = vrot.slane %v900, 2
  %v902 = vadd.f32 %v900, %v901
  %v903 = vrot.slane %v902, 1
  %v904 = vadd.f32 %v902, %v903
  %v905 = vadd.f32 %v785, %v904
  %v906 = vadd.f32 %v791, %v904
  %v907 = vadd.f32 %v797, %v904
  %v908 = vadd.f32 %v803, %v904
  %vm909 = vcmp.gt.f32.partialorder %v905, 0.0
  %vm910 = vcmp.gt.f32.partialorder %v906, 0.0
  %vm911 = vcmp.gt.f32.partialorder %v907, 0.0
  %vm912 = vcmp.gt.f32.partialorder %v908, 0.0
  %v913 = vmul.f32 %v905, 0.2
  %v914 = vmul.f32 %v906, 0.2
  %v915 = vmul.f32 %v907, 0.2
  %v916 = vmul.f32 %v908, 0.2
  %v917 = vsel %vm909, %v905, %v913
  %v918 = vsel %vm910, %v906, %v914
  %v919 = vsel %vm911, %v907, %v915
  %v920 = vsel %vm912, %v908, %v916
  %v921 = vsel %vm367, %v917, -1e+30
  %v922 = vsel %vm368, %v918, -1e+30
  %v923 = vsel %vm369, %v919, -1e+30
  %v924 = vsel %vm370, %v920, -1e+30
  %v925 = vsel %vm375, %v921, -inf
  %926 = vmax.xlane.f32.xlu0 %v925
  %v927 = vpop.xlane.xlu0 %926
  %v928 = vsel %vm375, %v922, -inf
  %929 = vmax.xlane.f32.xlu0 %v928
  %v930 = vpop.xlane.xlu0 %929
  %v931 = vsel %vm375, %v923, -inf
  %932 = vmax.xlane.f32.xlu0 %v931
  %v933 = vpop.xlane.xlu0 %932
  %v934 = vsel %vm375, %v924, -inf
  %935 = vmax.xlane.f32.xlu0 %v934
  %v936 = vpop.xlane.xlu0 %935
  %v937 = vsel %vm388, %v921, -inf
  %938 = vmax.xlane.f32.xlu0 %v937
  %v939 = vpop.xlane.xlu0 %938
  %v940 = vsel %vm388, %v922, -inf
  %941 = vmax.xlane.f32.xlu0 %v940
  %v942 = vpop.xlane.xlu0 %941
  %v943 = vsel %vm388, %v923, -inf
  %944 = vmax.xlane.f32.xlu0 %v943
  %v945 = vpop.xlane.xlu0 %944
  %v946 = vsel %vm388, %v924, -inf
  %947 = vmax.xlane.f32.xlu0 %v946
  %v948 = vpop.xlane.xlu0 %947
  %v949 = vsel %vm401, %v921, -inf
  %950 = vmax.xlane.f32.xlu0 %v949
  %v951 = vpop.xlane.xlu0 %950
  %v952 = vsel %vm401, %v922, -inf
  %953 = vmax.xlane.f32.xlu0 %v952
  %v954 = vpop.xlane.xlu0 %953
  %v955 = vsel %vm401, %v923, -inf
  %956 = vmax.xlane.f32.xlu0 %v955
  %v957 = vpop.xlane.xlu0 %956
  %v958 = vsel %vm401, %v924, -inf
  %959 = vmax.xlane.f32.xlu0 %v958
  %v960 = vpop.xlane.xlu0 %959
  %v961 = vsel %vm414, %v921, -inf
  %962 = vmax.xlane.f32.xlu0 %v961
  %v963 = vpop.xlane.xlu0 %962
  %v964 = vsel %vm414, %v922, -inf
  %965 = vmax.xlane.f32.xlu0 %v964
  %v966 = vpop.xlane.xlu0 %965
  %v967 = vsel %vm414, %v923, -inf
  %968 = vmax.xlane.f32.xlu0 %v967
  %v969 = vpop.xlane.xlu0 %968
  %v970 = vsel %vm414, %v924, -inf
  %971 = vmax.xlane.f32.xlu0 %v970
  %v972 = vpop.xlane.xlu0 %971
  %v973 = vsel %vm375, %v927, %v939
  %v974 = vsel %vm375, %v930, %v942
  %v975 = vsel %vm375, %v933, %v945
  %v976 = vsel %vm375, %v936, %v948
  %v977 = vsel %vm431, %v973, %v951
  %v978 = vsel %vm431, %v974, %v954
  %v979 = vsel %vm431, %v975, %v957
  %v980 = vsel %vm431, %v976, %v960
  %v981 = vsel %vm436, %v977, %v963
  %v982 = vsel %vm436, %v978, %v966
  %v983 = vsel %vm436, %v979, %v969
  %v984 = vsel %vm436, %v980, %v972
  %v985 = vsub.f32 %v921, %v981
  %v986 = vsub.f32 %v922, %v982
  %v987 = vsub.f32 %v923, %v983
  %v988 = vsub.f32 %v924, %v984
  %v989 = vmul.f32 %v985, 1.442695
  %v990 = vpow.pop %v989
  %v991 = vmul.f32 %v986, 1.442695
  %v992 = vpow.pop %v991
  %v993 = vmul.f32 %v987, 1.442695
  %v994 = vpow.pop %v993
  %v995 = vmul.f32 %v988, 1.442695
  %v996 = vpow.pop %v995
  %v997 = vmul.f32 %v990, %v95
  %v998 = vmul.f32 %v992, %v96
  %v999 = vmul.f32 %v994, %v97
  %v1000 = vmul.f32 %v996, %v98
  %1001 = vmatprep.subr.mxu0 0.0
  %1002 = vmatpush1.msra.mxu0 %v107
  %1003 = vmatprep.subr.mxu0 0.0
  %1004 = vmatpush1.msra.mxu0 %v108
  %1005 = vmatprep.subr.mxu0 0.0
  %1006 = vmatpush1.msra.mxu0 %v109
  %1007 = vmatprep.subr.mxu0 0.0
  %1008 = vmatpush1.msra.mxu0 %v110
  %1009 = vmatprep.subr.mxu0 0.0
  %1010 = vmatpush1.msra.mxu0 %v111
  %1011 = vmatprep.subr.mxu0 0.0
  %1012 = vmatpush1.msra.mxu0 %v112
  %1013 = vmatprep.subr.mxu0 0.0
  %1014 = vmatpush1.msra.mxu0 %v113
  %1015 = vmatprep.subr.mxu0 0.0
  %1016 = vmatpush1.msra.mxu0 %v114
  %1017 = vmatprep.subr.mxu0 0.0
  %1018 = vmatpush1.msra.mxu0 %v115
  %1019 = vmatprep.subr.mxu0 0.0
  %1020 = vmatpush1.msra.mxu0 %v116
  %1021 = vmatprep.subr.mxu0 0.0
  %1022 = vmatpush1.msra.mxu0 %v117
  %1023 = vmatprep.subr.mxu0 0.0
  %1024 = vmatpush1.msra.mxu0 %v118
  %1025 = vmatprep.subr.mxu0 0.0
  %1026 = vmatpush1.msra.mxu0 %v119
  %1027 = vmatprep.subr.mxu0 0.0
  %1028 = vmatpush1.msra.mxu0 %v120
  %1029 = vmatprep.subr.mxu0 0.0
  %1030 = vmatpush1.msra.mxu0 %v121
  %1031 = vmatprep.subr.mxu0 0.0
  %1032 = vmatpush1.msra.mxu0 %v122
  %1033 = vmatprep.subr.mxu0 0.0
  %1034 = vmatpush1.msra.mxu0 0.0
  %1035 = vmatprep.subr.mxu0 0.0
  %1036 = vmatpush1.msra.mxu0 0.0
  %1037 = vmatprep.subr.mxu0 0.0
  %1038 = vmatpush1.msra.mxu0 0.0
  %1039 = vmatprep.subr.mxu0 0.0
  %1040 = vmatpush1.msra.mxu0 0.0
  %1041 = vmatprep.subr.mxu0 0.0
  %1042 = vmatpush1.msra.mxu0 0.0
  %1043 = vmatprep.subr.mxu0 0.0
  %1044 = vmatpush1.msra.mxu0 0.0
  %1045 = vmatprep.subr.mxu0 0.0
  %1046 = vmatpush1.msra.mxu0 0.0
  %1047 = vmatprep.subr.mxu0 0.0
  %1048 = vmatpush1.msra.mxu0 0.0
  %1049 = vmatprep.subr.mxu0 0.0
  %1050 = vmatpush1.msra.mxu0 0.0
  %1051 = vmatprep.subr.mxu0 0.0
  %1052 = vmatpush1.msra.mxu0 0.0
  %1053 = vmatprep.subr.mxu0 0.0
  %1054 = vmatpush1.msra.mxu0 0.0
  %1055 = vmatprep.subr.mxu0 0.0
  %1056 = vmatpush1.msra.mxu0 0.0
  %1057 = vmatprep.subr.mxu0 0.0
  %1058 = vmatpush1.msra.mxu0 0.0
  %1059 = vmatprep.subr.mxu0 0.0
  %1060 = vmatpush1.msra.mxu0 0.0
  %1061 = vmatprep.subr.mxu0 0.0
  %1062 = vmatpush1.msra.mxu0 0.0
  %1063 = vmatprep.subr.mxu0 0.0
  %1064 = vmatpush1.msra.mxu0 0.0
  %1065 = vmatprep.mubr.f32.mxu0 0.0
  %1066 = vmatmul.mubr.f32.gmra.mrb[0].mxu0 %v997
  %v1067 = vpop.f32.mrb[0].mxu0
  %v1068 = vadd.f32 1e-16, %v1067
  %v1069 = vpop.f32.mrb[0].mxu0
  %1070 = vmatprep.mubr.f32.mxu0 0.0
  %1071 = vmatmul.mubr.f32.gmra.mrb[0].mxu0 %v998
  %v1072 = vpop.f32.mrb[0].mxu0
  %v1073 = vadd.f32 1e-16, %v1072
  %v1074 = vpop.f32.mrb[0].mxu0
  %1075 = vmatprep.mubr.f32.mxu0 0.0
  %1076 = vmatmul.mubr.f32.gmra.mrb[0].mxu0 %v999
  %v1077 = vpop.f32.mrb[0].mxu0
  %v1078 = vadd.f32 1e-16, %v1077
  %v1079 = vpop.f32.mrb[0].mxu0
  %1080 = vmatprep.mubr.f32.mxu0 0.0
  %1081 = vmatmul.mubr.f32.gmra.mrb[0].mxu0 %v1000
  %v1082 = vpop.f32.mrb[0].mxu0
  %v1083 = vadd.f32 1e-16, %v1082
  %v1084 = vpop.f32.mrb[0].mxu0
  %1085 = vdwg.mxu0
  %v1086 = vrcp.pop %v1068
  %v1087 = vrcp.pop %v1073
  %v1088 = vrcp.pop %v1078
  %v1089 = vrcp.pop %v1083
  %v1090 = vmul.f32 %v997, %v1086
  %v1091 = vmul.f32 %v998, %v1087
  %v1092 = vmul.f32 %v999, %v1088
  %v1093 = vmul.f32 %v1000, %v1089
  %v1094 = vmul.f32 %v874, %v123
  %v1095 = vmul.f32 %v879, %v124
  %v1096 = vmul.f32 %v884, %v125
  %v1097 = vmul.f32 %v889, %v126
  %v1098 = vmul.f32 %v874, %v127
  %v1099 = vmul.f32 %v879, %v128
  %v1100 = vmul.f32 %v884, %v129
  %v1101 = vmul.f32 %v889, %v130
  %v1102 = vmul.f32 %v874, %v131
  %v1103 = vmul.f32 %v879, %v132
  %v1104 = vmul.f32 %v884, %v133
  %v1105 = vmul.f32 %v889, %v134
  %v1106 = vmul.f32 %v874, %v135
  %v1107 = vmul.f32 %v879, %v136
  %v1108 = vmul.f32 %v884, %v137
  %v1109 = vmul.f32 %v889, %v138
  %v1111 = vlaneseq
  %v1112 = vshrl.u32 %v1111, 7
  %v1113 = vsub.s32 0, %v1112
  %v1114 = vrot.slane %v705, %v1113
  %1116 = vmatprep.subr.mxu0 0.0
  %1117 = vmatpush1.msra.mxu0 %v1094
  %1118 = vmatprep.subr.mxu0 0.0
  %1119 = vmatpush1.msra.mxu0 %v1095
  %1120 = vmatprep.subr.mxu0 0.0
  %1121 = vmatpush1.msra.mxu0 %v1096
  %1122 = vmatprep.subr.mxu0 0.0
  %1123 = vmatpush1.msra.mxu0 %v1097
  %1124 = vmatprep.subr.mxu0 0.0
  %1125 = vmatpush1.msra.mxu0 %v1098
  %1126 = vmatprep.subr.mxu0 0.0
  %1127 = vmatpush1.msra.mxu0 %v1099
  %1128 = vmatprep.subr.mxu0 0.0
  %1129 = vmatpush1.msra.mxu0 %v1100
  %1130 = vmatprep.subr.mxu0 0.0
  %1131 = vmatpush1.msra.mxu0 %v1101
  %1132 = vmatprep.subr.mxu0 0.0
  %1133 = vmatpush1.msra.mxu0 %v1102
  %1134 = vmatprep.subr.mxu0 0.0
  %1135 = vmatpush1.msra.mxu0 %v1103
  %1136 = vmatprep.subr.mxu0 0.0
  %1137 = vmatpush1.msra.mxu0 %v1104
  %1138 = vmatprep.subr.mxu0 0.0
  %1139 = vmatpush1.msra.mxu0 %v1105
  %1140 = vmatprep.subr.mxu0 0.0
  %1141 = vmatpush1.msra.mxu0 %v1106
  %1142 = vmatprep.subr.mxu0 0.0
  %1143 = vmatpush1.msra.mxu0 %v1107
  %1144 = vmatprep.subr.mxu0 0.0
  %1145 = vmatpush1.msra.mxu0 %v1108
  %1146 = vmatprep.subr.mxu0 0.0
  %1147 = vmatpush1.msra.mxu0 %v1109
  %1148 = vmatprep.subr.mxu0 0.0
  %1149 = vmatpush1.msra.mxu0 0.0
  %1150 = vmatprep.subr.mxu0 0.0
  %1151 = vmatpush1.msra.mxu0 0.0
  %1152 = vmatprep.subr.mxu0 0.0
  %1153 = vmatpush1.msra.mxu0 0.0
  %1154 = vmatprep.subr.mxu0 0.0
  %1155 = vmatpush1.msra.mxu0 0.0
  %1156 = vmatprep.subr.mxu0 0.0
  %1157 = vmatpush1.msra.mxu0 0.0
  %1158 = vmatprep.subr.mxu0 0.0
  %1159 = vmatpush1.msra.mxu0 0.0
  %1160 = vmatprep.subr.mxu0 0.0
  %1161 = vmatpush1.msra.mxu0 0.0
  %1162 = vmatprep.subr.mxu0 0.0
  %1163 = vmatpush1.msra.mxu0 0.0
  %1164 = vmatprep.subr.mxu0 0.0
  %1165 = vmatpush1.msra.mxu0 0.0
  %1166 = vmatprep.subr.mxu0 0.0
  %1167 = vmatpush1.msra.mxu0 0.0
  %1168 = vmatprep.subr.mxu0 0.0
  %1169 = vmatpush1.msra.mxu0 0.0
  %1170 = vmatprep.subr.mxu0 0.0
  %1171 = vmatpush1.msra.mxu0 0.0
  %1172 = vmatprep.subr.mxu0 0.0
  %1173 = vmatpush1.msra.mxu0 0.0
  %1174 = vmatprep.subr.mxu0 0.0
  %1175 = vmatpush1.msra.mxu0 0.0
  %1176 = vmatprep.subr.mxu0 0.0
  %1177 = vmatpush1.msra.mxu0 0.0
  %1178 = vmatprep.subr.mxu0 0.0
  %1179 = vmatpush1.msra.mxu0 0.0
  %1180 = vmatprep.mubr.f32.mxu0 0.0
  %1181 = vmatmul.mubr.f32.gmra.mrb[0].mxu0 %v1090
  %v1182 = vpop.f32.mrb[0].mxu0
  %v1183 = vadd.f32 %v1114, %v1182
  %v1184 = vpop.f32.mrb[0].mxu0
  %1185 = vmatprep.mubr.f32.mxu0 0.0
  %1186 = vmatmul.mubr.f32.gmra.mrb[0].mxu0 %v1091
  %v1187 = vpop.f32.mrb[0].mxu0
  %v1188 = vadd.f32 %v1114, %v1187
  %v1189 = vpop.f32.mrb[0].mxu0
  %1190 = vmatprep.mubr.f32.mxu0 0.0
  %1191 = vmatmul.mubr.f32.gmra.mrb[0].mxu0 %v1092
  %v1192 = vpop.f32.mrb[0].mxu0
  %v1193 = vadd.f32 %v1114, %v1192
  %v1194 = vpop.f32.mrb[0].mxu0
  %1195 = vmatprep.mubr.f32.mxu0 0.0
  %1196 = vmatmul.mubr.f32.gmra.mrb[0].mxu0 %v1093
  %v1197 = vpop.f32.mrb[0].mxu0
  %v1198 = vadd.f32 %v1114, %v1197
  %v1199 = vpop.f32.mrb[0].mxu0
  %1200 = vdwg.mxu0
  %vm1201 = vcmp.gt.f32.partialorder %v1183, 0.0
  %vm1202 = vcmp.gt.f32.partialorder %v1188, 0.0
  %vm1203 = vcmp.gt.f32.partialorder %v1193, 0.0
  %vm1204 = vcmp.gt.f32.partialorder %v1198, 0.0
  %v1205 = vmin.f32 %v1183, 0.0
  %v1206 = vmin.f32 %v1188, 0.0
  %v1207 = vmin.f32 %v1193, 0.0
  %v1208 = vmin.f32 %v1198, 0.0
  %v1209 = vmul.f32 %v1205, 1.442695
  %v1210 = vpow.pop %v1209
  %v1211 = vmul.f32 %v1206, 1.442695
  %v1212 = vpow.pop %v1211
  %v1213 = vmul.f32 %v1207, 1.442695
  %v1214 = vpow.pop %v1213
  %v1215 = vmul.f32 %v1208, 1.442695
  %v1216 = vpow.pop %v1215
  %v1217 = vsub.f32 %v1210, 1.0
  %v1218 = vsub.f32 %v1212, 1.0
  %v1219 = vsub.f32 %v1214, 1.0
  %v1220 = vsub.f32 %v1216, 1.0
  %v1221 = vsel %vm1201, %v1183, %v1217
  %v1222 = vsel %vm1202, %v1188, %v1218
  %v1223 = vsel %vm1203, %v1193, %v1219
  %v1224 = vsel %vm1204, %v1198, %v1220
  %v1225 = vld [vmem:[%s13] sm:$0xff]
  %v1226 = vld [vmem:[%s13 + $0x8] sm:$0xff]
  %v1227 = vld [vmem:[%s13 + $0x10] sm:$0xff]
  %v1228 = vld [vmem:[%s13 + $0x18] sm:$0xff]
  %v1229 = vld [vmem:[%s13 + $0x20] sm:$0xff]
  %v1230 = vld [vmem:[%s13 + $0x28] sm:$0xff]
  %v1231 = vld [vmem:[%s13 + $0x30] sm:$0xff]
  %v1232 = vld [vmem:[%s13 + $0x38] sm:$0xff]
  %v1233 = vld [vmem:[%s14] sm:$0x1]
  %v1235 = vsel %vm431, %v1221, 0
  %v1238 = vsel %vm431, %v1222, 0
  %v1241 = vsel %vm431, %v1223, 0
  %v1244 = vsel %vm431, %v1224, 0
  %1246 = vmatprep.subr.mxu0 0.0
  %1247 = vmatpush1.msra.mxu0 %v1225
  %1248 = vmatprep.subr.mxu0 0.0
  %1249 = vmatpush1.msra.mxu0 %v1226
  %1250 = vmatprep.subr.mxu0 0.0
  %1251 = vmatpush1.msra.mxu0 %v1227
  %1252 = vmatprep.subr.mxu0 0.0
  %1253 = vmatpush1.msra.mxu0 %v1228
  %1254 = vmatprep.subr.mxu0 0.0
  %1255 = vmatpush1.msra.mxu0 %v1229
  %1256 = vmatprep.subr.mxu0 0.0
  %1257 = vmatpush1.msra.mxu0 %v1230
  %1258 = vmatprep.subr.mxu0 0.0
  %1259 = vmatpush1.msra.mxu0 %v1231
  %1260 = vmatprep.subr.mxu0 0.0
  %1261 = vmatpush1.msra.mxu0 %v1232
  %1262 = vmatprep.subr.mxu0 0.0
  %1263 = vmatpush1.msra.mxu0 0.0
  %1264 = vmatprep.subr.mxu0 0.0
  %1265 = vmatpush1.msra.mxu0 0.0
  %1266 = vmatprep.subr.mxu0 0.0
  %1267 = vmatpush1.msra.mxu0 0.0
  %1268 = vmatprep.subr.mxu0 0.0
  %1269 = vmatpush1.msra.mxu0 0.0
  %1270 = vmatprep.subr.mxu0 0.0
  %1271 = vmatpush1.msra.mxu0 0.0
  %1272 = vmatprep.subr.mxu0 0.0
  %1273 = vmatpush1.msra.mxu0 0.0
  %1274 = vmatprep.subr.mxu0 0.0
  %1275 = vmatpush1.msra.mxu0 0.0
  %1276 = vmatprep.subr.mxu0 0.0
  %1277 = vmatpush1.msra.mxu0 0.0
  %1278 = vmatprep.subr.mxu0 0.0
  %1279 = vmatpush1.msra.mxu0 0.0
  %1280 = vmatprep.subr.mxu0 0.0
  %1281 = vmatpush1.msra.mxu0 0.0
  %1282 = vmatprep.subr.mxu0 0.0
  %1283 = vmatpush1.msra.mxu0 0.0
  %1284 = vmatprep.subr.mxu0 0.0
  %1285 = vmatpush1.msra.mxu0 0.0
  %1286 = vmatprep.subr.mxu0 0.0
  %1287 = vmatpush1.msra.mxu0 0.0
  %1288 = vmatprep.subr.mxu0 0.0
  %1289 = vmatpush1.msra.mxu0 0.0
  %1290 = vmatprep.subr.mxu0 0.0
  %1291 = vmatpush1.msra.mxu0 0.0
  %1292 = vmatprep.subr.mxu0 0.0
  %1293 = vmatpush1.msra.mxu0 0.0
  %1294 = vmatprep.subr.mxu0 0.0
  %1295 = vmatpush1.msra.mxu0 0.0
  %1296 = vmatprep.subr.mxu0 0.0
  %1297 = vmatpush1.msra.mxu0 0.0
  %1298 = vmatprep.subr.mxu0 0.0
  %1299 = vmatpush1.msra.mxu0 0.0
  %1300 = vmatprep.subr.mxu0 0.0
  %1301 = vmatpush1.msra.mxu0 0.0
  %1302 = vmatprep.subr.mxu0 0.0
  %1303 = vmatpush1.msra.mxu0 0.0
  %1304 = vmatprep.subr.mxu0 0.0
  %1305 = vmatpush1.msra.mxu0 0.0
  %1306 = vmatprep.subr.mxu0 0.0
  %1307 = vmatpush1.msra.mxu0 0.0
  %1308 = vmatprep.subr.mxu0 0.0
  %1309 = vmatpush1.msra.mxu0 0.0
  %1310 = vmatprep.mubr.f32.mxu0 0.0
  %1311 = vmatmul.mubr.f32.gmra.mrb[0].mxu0 %v1235
  %v1312 = vpop.f32.mrb[0].mxu0
  %v1313 = vadd.f32 0.0, %v1312
  %v1314 = vpop.f32.mrb[0].mxu0
  %1315 = vmatprep.mubr.f32.mxu0 0.0
  %1316 = vmatmul.mubr.f32.gmra.mrb[0].mxu0 %v1238
  %v1317 = vpop.f32.mrb[0].mxu0
  %v1318 = vadd.f32 0.0, %v1317
  %v1319 = vpop.f32.mrb[0].mxu0
  %1320 = vmatprep.mubr.f32.mxu0 0.0
  %1321 = vmatmul.mubr.f32.gmra.mrb[0].mxu0 %v1241
  %v1322 = vpop.f32.mrb[0].mxu0
  %v1323 = vadd.f32 0.0, %v1322
  %v1324 = vpop.f32.mrb[0].mxu0
  %1325 = vmatprep.mubr.f32.mxu0 0.0
  %1326 = vmatmul.mubr.f32.gmra.mrb[0].mxu0 %v1244
  %v1327 = vpop.f32.mrb[0].mxu0
  %v1328 = vadd.f32 0.0, %v1327
  %v1329 = vpop.f32.mrb[0].mxu0
  %1330 = vdwg.mxu0
  %1335 = vrot.lane.b32.xlu0 %v1313, 111
  %v1336 = vpop.permute.xlu0 %1335
  %1337 = vrot.lane.b32.xlu0 %v1318, 111
  %v1338 = vpop.permute.xlu0 %1337
  %1339 = vrot.lane.b32.xlu0 %v1323, 111
  %v1340 = vpop.permute.xlu0 %1339
  %1341 = vrot.lane.b32.xlu0 %v1328, 111
  %v1342 = vpop.permute.xlu0 %1341
  %1347 = vxpose.xlu0.b32.start [1/16] %v1336, 128
  %1348 = vxpose.xlu0.b32.cont [2/16] %v1338, 128
  %1349 = vxpose.xlu0.b32.cont [3/16] %v1340, 128
  %1350 = vxpose.xlu0.b32.cont [4/16] %v1342, 128
  %1351 = vxpose.xlu0.b32.cont [5/16] 0.0, 128
  %1352 = vxpose.xlu0.b32.cont [6/16] 0.0, 128
  %1353 = vxpose.xlu0.b32.cont [7/16] 0.0, 128
  %1354 = vxpose.xlu0.b32.cont [8/16] 0.0, 128
  %1355 = vxpose.xlu0.b32.cont [9/16] 0.0, 128
  %1356 = vxpose.xlu0.b32.cont [10/16] 0.0, 128
  %1357 = vxpose.xlu0.b32.cont [11/16] 0.0, 128
  %1358 = vxpose.xlu0.b32.cont [12/16] 0.0, 128
  %1359 = vxpose.xlu0.b32.cont [13/16] 0.0, 128
  %1360 = vxpose.xlu0.b32.cont [14/16] 0.0, 128
  %1361 = vxpose.xlu0.b32.cont [15/16] 0.0, 128
  %1362 = vxpose.xlu0.b32.end [16/16] 0.0, 128
  %v1363 = vpop.trf.xlu0
  %v1364 = vpop.trf.xlu0
  %v1365 = vpop.trf.xlu0
  %v1366 = vpop.trf.xlu0
  %v1367 = vpop.trf.xlu0
  %v1368 = vpop.trf.xlu0
  %v1369 = vpop.trf.xlu0
  %v1370 = vpop.trf.xlu0
  %v1371 = vpop.trf.xlu0
  %v1372 = vpop.trf.xlu0
  %v1373 = vpop.trf.xlu0
  %v1374 = vpop.trf.xlu0
  %v1375 = vpop.trf.xlu0
  %v1376 = vpop.trf.xlu0
  %v1377 = vpop.trf.xlu0
  %v1378 = vpop.trf.xlu0
  %1379 = vset.pattern.permute.xlu0 16
  %1380 = vperm.xlu0 %1379, %v1313
  %v1381 = vpop.permute.xlu0 %1380
  %1383 = vset.pattern.permute.xlu0 16
  %1384 = vperm.xlu0 %1383, %v1318
  %v1385 = vpop.permute.xlu0 %1384
  %1387 = vset.pattern.permute.xlu0 16
  %1388 = vperm.xlu0 %1387, %v1323
  %v1389 = vpop.permute.xlu0 %1388
  %1391 = vset.pattern.permute.xlu0 16
  %1392 = vperm.xlu0 %1391, %v1328
  %v1393 = vpop.permute.xlu0 %1392
  %v1395 = vlaneseq
  %v1396 = vshrl.u32 %v1395, 7
  %v1397 = vsub.s32 0, %v1396
  %v1398 = vrot.slane %v1363, %v1397
  %v1399 = vadd.f32 %v1381, %v1398
  %v1400 = vadd.f32 %v1385, %v1398
  %v1401 = vadd.f32 %v1389, %v1398
  %v1402 = vadd.f32 %v1393, %v1398
  %vm1403 = vcmp.gt.f32.partialorder %v1399, 0.0
  %vm1404 = vcmp.gt.f32.partialorder %v1400, 0.0
  %vm1405 = vcmp.gt.f32.partialorder %v1401, 0.0
  %vm1406 = vcmp.gt.f32.partialorder %v1402, 0.0
  %v1407 = vmul.f32 %v1399, 0.2
  %v1408 = vmul.f32 %v1400, 0.2
  %v1409 = vmul.f32 %v1401, 0.2
  %v1410 = vmul.f32 %v1402, 0.2
  %v1411 = vsel %vm1403, %v1399, %v1407
  %v1412 = vsel %vm1404, %v1400, %v1408
  %v1413 = vsel %vm1405, %v1401, %v1409
  %v1414 = vsel %vm1406, %v1402, %v1410
  %vm1415 = vcmp.gt.f32.partialorder %v87, 0.0
  %vm1416 = vcmp.gt.f32.partialorder %v88, 0.0
  %vm1417 = vcmp.gt.f32.partialorder %v89, 0.0
  %vm1418 = vcmp.gt.f32.partialorder %v90, 0.0
  %v1419 = vsel %vm1415, %v1411, -1e+30
  %v1420 = vsel %vm1416, %v1412, -1e+30
  %v1421 = vsel %vm1417, %v1413, -1e+30
  %v1422 = vsel %vm1418, %v1414, -1e+30
  %v1423 = vsel %vm375, %v1419, -inf
  %1424 = vmax.xlane.f32.xlu0 %v1423
  %v1425 = vpop.xlane.xlu0 %1424
  %v1426 = vsel %vm375, %v1420, -inf
  %1427 = vmax.xlane.f32.xlu0 %v1426
  %v1428 = vpop.xlane.xlu0 %1427
  %v1429 = vsel %vm375, %v1421, -inf
  %1430 = vmax.xlane.f32.xlu0 %v1429
  %v1431 = vpop.xlane.xlu0 %1430
  %v1432 = vsel %vm375, %v1422, -inf
  %1433 = vmax.xlane.f32.xlu0 %v1432
  %v1434 = vpop.xlane.xlu0 %1433
  %v1435 = vsub.f32 %v1419, %v1425
  %v1436 = vsub.f32 %v1420, %v1428
  %v1437 = vsub.f32 %v1421, %v1431
  %v1438 = vsub.f32 %v1422, %v1434
  %v1439 = vmul.f32 %v1435, 1.442695
  %v1440 = vpow.pop %v1439
  %v1441 = vmul.f32 %v1436, 1.442695
  %v1442 = vpow.pop %v1441
  %v1443 = vmul.f32 %v1437, 1.442695
  %v1444 = vpow.pop %v1443
  %v1445 = vmul.f32 %v1438, 1.442695
  %v1446 = vpow.pop %v1445
  %v1447 = vmul.f32 %v1440, %v87
  %v1448 = vmul.f32 %v1442, %v88
  %v1449 = vmul.f32 %v1444, %v89
  %v1450 = vmul.f32 %v1446, %v90
  %v1451 = vsel %vm375, %v1447, 0.0
  %1452 = vadd.xlane.f32.xlu0 %v1451
  %v1453 = vpop.xlane.xlu0 %1452
  %v1454 = vsel %vm375, %v1448, 0.0
  %1455 = vadd.xlane.f32.xlu0 %v1454
  %v1456 = vpop.xlane.xlu0 %1455
  %v1457 = vsel %vm375, %v1449, 0.0
  %1458 = vadd.xlane.f32.xlu0 %v1457
  %v1459 = vpop.xlane.xlu0 %1458
  %v1460 = vsel %vm375, %v1450, 0.0
  %1461 = vadd.xlane.f32.xlu0 %v1460
  %v1462 = vpop.xlane.xlu0 %1461
  %v1463 = vadd.f32 %v1453, 1e-16
  %v1464 = vadd.f32 %v1456, 1e-16
  %v1465 = vadd.f32 %v1459, 1e-16
  %v1466 = vadd.f32 %v1462, 1e-16
  %v1467 = vrcp.pop %v1463
  %v1468 = vrcp.pop %v1464
  %v1469 = vrcp.pop %v1465
  %v1470 = vrcp.pop %v1466
  %v1471 = vmul.f32 %v1447, %v1467
  %v1472 = vmul.f32 %v1448, %v1468
  %v1473 = vmul.f32 %v1449, %v1469
  %v1474 = vmul.f32 %v1450, %v1470
  %v1476 = vlaneseq
  %v1477 = vshrl.u32 %v1476, 7
  %v1478 = vsub.s32 0, %v1477
  %v1479 = vrot.slane %v1233, %v1478
  %v1482 = vsel %vm375, %v1471, 0
  %v1485 = vsel %vm375, %v1472, 0
  %v1488 = vsel %vm375, %v1473, 0
  %v1491 = vsel %vm375, %v1474, 0
  %1493 = vmatprep.subr.mxu0 0.0
  %1494 = vmatpush1.msra.mxu0 %v1313
  %1495 = vmatprep.subr.mxu0 0.0
  %1496 = vmatpush1.msra.mxu0 %v1318
  %1497 = vmatprep.subr.mxu0 0.0
  %1498 = vmatpush1.msra.mxu0 %v1323
  %1499 = vmatprep.subr.mxu0 0.0
  %1500 = vmatpush1.msra.mxu0 %v1328
  %1501 = vmatprep.subr.mxu0 0.0
  %1502 = vmatpush1.msra.mxu0 0.0
  %1503 = vmatprep.subr.mxu0 0.0
  %1504 = vmatpush1.msra.mxu0 0.0
  %1505 = vmatprep.subr.mxu0 0.0
  %1506 = vmatpush1.msra.mxu0 0.0
  %1507 = vmatprep.subr.mxu0 0.0
  %1508 = vmatpush1.msra.mxu0 0.0
  %1509 = vmatprep.subr.mxu0 0.0
  %1510 = vmatpush1.msra.mxu0 0.0
  %1511 = vmatprep.subr.mxu0 0.0
  %1512 = vmatpush1.msra.mxu0 0.0
  %1513 = vmatprep.subr.mxu0 0.0
  %1514 = vmatpush1.msra.mxu0 0.0
  %1515 = vmatprep.subr.mxu0 0.0
  %1516 = vmatpush1.msra.mxu0 0.0
  %1517 = vmatprep.subr.mxu0 0.0
  %1518 = vmatpush1.msra.mxu0 0.0
  %1519 = vmatprep.subr.mxu0 0.0
  %1520 = vmatpush1.msra.mxu0 0.0
  %1521 = vmatprep.subr.mxu0 0.0
  %1522 = vmatpush1.msra.mxu0 0.0
  %1523 = vmatprep.subr.mxu0 0.0
  %1524 = vmatpush1.msra.mxu0 0.0
  %1525 = vmatprep.subr.mxu0 0.0
  %1526 = vmatpush1.msra.mxu0 0.0
  %1527 = vmatprep.subr.mxu0 0.0
  %1528 = vmatpush1.msra.mxu0 0.0
  %1529 = vmatprep.subr.mxu0 0.0
  %1530 = vmatpush1.msra.mxu0 0.0
  %1531 = vmatprep.subr.mxu0 0.0
  %1532 = vmatpush1.msra.mxu0 0.0
  %1533 = vmatprep.subr.mxu0 0.0
  %1534 = vmatpush1.msra.mxu0 0.0
  %1535 = vmatprep.subr.mxu0 0.0
  %1536 = vmatpush1.msra.mxu0 0.0
  %1537 = vmatprep.subr.mxu0 0.0
  %1538 = vmatpush1.msra.mxu0 0.0
  %1539 = vmatprep.subr.mxu0 0.0
  %1540 = vmatpush1.msra.mxu0 0.0
  %1541 = vmatprep.subr.mxu0 0.0
  %1542 = vmatpush1.msra.mxu0 0.0
  %1543 = vmatprep.subr.mxu0 0.0
  %1544 = vmatpush1.msra.mxu0 0.0
  %1545 = vmatprep.subr.mxu0 0.0
  %1546 = vmatpush1.msra.mxu0 0.0
  %1547 = vmatprep.subr.mxu0 0.0
  %1548 = vmatpush1.msra.mxu0 0.0
  %1549 = vmatprep.subr.mxu0 0.0
  %1550 = vmatpush1.msra.mxu0 0.0
  %1551 = vmatprep.subr.mxu0 0.0
  %1552 = vmatpush1.msra.mxu0 0.0
  %1553 = vmatprep.subr.mxu0 0.0
  %1554 = vmatpush1.msra.mxu0 0.0
  %1555 = vmatprep.subr.mxu0 0.0
  %1556 = vmatpush1.msra.mxu0 0.0
  %1557 = vmatprep.mubr.f32.mxu0 0.0
  %1558 = vmatmul.mubr.f32.gmra.mrb[0].mxu0 %v1482
  %v1559 = vpop.f32.mrb[0].mxu0
  %v1560 = vadd.f32 %v1479, %v1559
  %v1561 = vpop.f32.mrb[0].mxu0
  %1562 = vmatprep.mubr.f32.mxu0 0.0
  %1563 = vmatmul.mubr.f32.gmra.mrb[0].mxu0 %v1485
  %v1564 = vpop.f32.mrb[0].mxu0
  %v1565 = vadd.f32 %v1479, %v1564
  %v1566 = vpop.f32.mrb[0].mxu0
  %1567 = vmatprep.mubr.f32.mxu0 0.0
  %1568 = vmatmul.mubr.f32.gmra.mrb[0].mxu0 %v1488
  %v1569 = vpop.f32.mrb[0].mxu0
  %v1570 = vadd.f32 %v1479, %v1569
  %v1571 = vpop.f32.mrb[0].mxu0
  %1572 = vmatprep.mubr.f32.mxu0 0.0
  %1573 = vmatmul.mubr.f32.gmra.mrb[0].mxu0 %v1491
  %v1574 = vpop.f32.mrb[0].mxu0
  %v1575 = vadd.f32 %v1479, %v1574
  %v1576 = vpop.f32.mrb[0].mxu0
  %1577 = vdwg.mxu0
  %v1578 = vld [vmem:[%s15] sm:$0xff]
  %v1579 = vld [vmem:[%s15 + $0x8] sm:$0xff]
  %v1580 = vld [vmem:[%s16] sm:$0x3]
  %v1582 = vlaneseq
  %v1583 = vshrl.u32 %v1582, 7
  %v1584 = vsub.s32 0, %v1583
  %v1585 = vrot.slane %v1580, %v1584
  %v1586 = vlaneseq
  %v1587 = vshrl.u32 %v1586, 7
  %v1588 = vsub.s32 1, %v1587
  %v1589 = vrot.slane %v1580, %v1588
  %1592 = vmatprep.subr.mxu0 %v1579
  %1593 = vmatpush1.msra.mxu0 %v1578
  %1594 = vmatprep.subr.mxu0 0.0
  %1595 = vmatpush1.msra.mxu0 0.0
  %1596 = vmatprep.subr.mxu0 0.0
  %1597 = vmatpush1.msra.mxu0 0.0
  %1598 = vmatprep.subr.mxu0 0.0
  %1599 = vmatpush1.msra.mxu0 0.0
  %1600 = vmatprep.subr.mxu0 0.0
  %1601 = vmatpush1.msra.mxu0 0.0
  %1602 = vmatprep.subr.mxu0 0.0
  %1603 = vmatpush1.msra.mxu0 0.0
  %1604 = vmatprep.subr.mxu0 0.0
  %1605 = vmatpush1.msra.mxu0 0.0
  %1606 = vmatprep.subr.mxu0 0.0
  %1607 = vmatpush1.msra.mxu0 0.0
  %1608 = vmatprep.subr.mxu0 0.0
  %1609 = vmatpush1.msra.mxu0 0.0
  %1610 = vmatprep.subr.mxu0 0.0
  %1611 = vmatpush1.msra.mxu0 0.0
  %1612 = vmatprep.subr.mxu0 0.0
  %1613 = vmatpush1.msra.mxu0 0.0
  %1614 = vmatprep.subr.mxu0 0.0
  %1615 = vmatpush1.msra.mxu0 0.0
  %1616 = vmatprep.subr.mxu0 0.0
  %1617 = vmatpush1.msra.mxu0 0.0
  %1618 = vmatprep.subr.mxu0 0.0
  %1619 = vmatpush1.msra.mxu0 0.0
  %1620 = vmatprep.subr.mxu0 0.0
  %1621 = vmatpush1.msra.mxu0 0.0
  %1622 = vmatprep.subr.mxu0 0.0
  %1623 = vmatpush1.msra.mxu0 0.0
  %1624 = vmatprep.subr.mxu0 0.0
  %1625 = vmatpush1.msra.mxu0 0.0
  %1626 = vmatprep.subr.mxu0 0.0
  %1627 = vmatpush1.msra.mxu0 0.0
  %1628 = vmatprep.subr.mxu0 0.0
  %1629 = vmatpush1.msra.mxu0 0.0
  %1630 = vmatprep.subr.mxu0 0.0
  %1631 = vmatpush1.msra.mxu0 0.0
  %1632 = vmatprep.subr.mxu0 0.0
  %1633 = vmatpush1.msra.mxu0 0.0
  %1634 = vmatprep.subr.mxu0 0.0
  %1635 = vmatpush1.msra.mxu0 0.0
  %1636 = vmatprep.subr.mxu0 0.0
  %1637 = vmatpush1.msra.mxu0 0.0
  %1638 = vmatprep.subr.mxu0 0.0
  %1639 = vmatpush1.msra.mxu0 0.0
  %1640 = vmatprep.subr.mxu0 0.0
  %1641 = vmatpush1.msra.mxu0 0.0
  %1642 = vmatprep.subr.mxu0 0.0
  %1643 = vmatpush1.msra.mxu0 0.0
  %1644 = vmatprep.subr.mxu0 0.0
  %1645 = vmatpush1.msra.mxu0 0.0
  %1646 = vmatprep.subr.mxu0 0.0
  %1647 = vmatpush1.msra.mxu0 0.0
  %1648 = vmatprep.subr.mxu0 0.0
  %1649 = vmatpush1.msra.mxu0 0.0
  %1650 = vmatprep.subr.mxu0 0.0
  %1651 = vmatpush1.msra.mxu0 0.0
  %1652 = vmatprep.subr.mxu0 0.0
  %1653 = vmatpush1.msra.mxu0 0.0
  %1654 = vmatprep.subr.mxu0 0.0
  %1655 = vmatpush1.msra.mxu0 0.0
  %1656 = vmatprep.mubr.f32.mxu0 0.0
  %1657 = vmatmul.mubr.f32.gmra.mrb[0].mxu0 %v153
  %v1658 = vpop.f32.mrb[0].mxu0
  %v1659 = vadd.f32 %v1585, %v1658
  %v1660 = vpop.f32.mrb[0].mxu0
  %v1661 = vadd.f32 %v1589, %v1660
  %1662 = vmatprep.mubr.f32.mxu0 0.0
  %1663 = vmatmul.mubr.f32.gmra.mrb[0].mxu0 %v156
  %v1664 = vpop.f32.mrb[0].mxu0
  %v1665 = vadd.f32 %v1585, %v1664
  %v1666 = vpop.f32.mrb[0].mxu0
  %v1667 = vadd.f32 %v1589, %v1666
  %1668 = vmatprep.mubr.f32.mxu0 0.0
  %1669 = vmatmul.mubr.f32.gmra.mrb[0].mxu0 %v159
  %v1670 = vpop.f32.mrb[0].mxu0
  %v1671 = vadd.f32 %v1585, %v1670
  %v1672 = vpop.f32.mrb[0].mxu0
  %v1673 = vadd.f32 %v1589, %v1672
  %1674 = vmatprep.mubr.f32.mxu0 0.0
  %1675 = vmatmul.mubr.f32.gmra.mrb[0].mxu0 %v162
  %v1676 = vpop.f32.mrb[0].mxu0
  %v1677 = vadd.f32 %v1585, %v1676
  %v1678 = vpop.f32.mrb[0].mxu0
  %v1679 = vadd.f32 %v1589, %v1678
  %1680 = vdwg.mxu0
  %1685 = vrot.lane.b32.xlu0 %v1659, 64
  %v1686 = vpop.permute.xlu0 %1685
  %1687 = vrot.lane.b32.xlu0 %v1665, 64
  %v1688 = vpop.permute.xlu0 %1687
  %1689 = vrot.lane.b32.xlu0 %v1671, 64
  %v1690 = vpop.permute.xlu0 %1689
  %1691 = vrot.lane.b32.xlu0 %v1677, 64
  %v1692 = vpop.permute.xlu0 %1691
  %1697 = vxpose.xlu0.b32.start [1/16] %v1686, 128
  %1698 = vxpose.xlu0.b32.cont [2/16] %v1688, 128
  %1699 = vxpose.xlu0.b32.cont [3/16] %v1690, 128
  %1700 = vxpose.xlu0.b32.cont [4/16] %v1692, 128
  %1701 = vxpose.xlu0.b32.cont [5/16] 0.0, 128
  %1702 = vxpose.xlu0.b32.cont [6/16] 0.0, 128
  %1703 = vxpose.xlu0.b32.cont [7/16] 0.0, 128
  %1704 = vxpose.xlu0.b32.cont [8/16] 0.0, 128
  %1705 = vxpose.xlu0.b32.cont [9/16] 0.0, 128
  %1706 = vxpose.xlu0.b32.cont [10/16] 0.0, 128
  %1707 = vxpose.xlu0.b32.cont [11/16] 0.0, 128
  %1708 = vxpose.xlu0.b32.cont [12/16] 0.0, 128
  %1709 = vxpose.xlu0.b32.cont [13/16] 0.0, 128
  %1710 = vxpose.xlu0.b32.cont [14/16] 0.0, 128
  %1711 = vxpose.xlu0.b32.cont [15/16] 0.0, 128
  %1712 = vxpose.xlu0.b32.end [16/16] 0.0, 128
  %v1713 = vpop.trf.xlu0
  %v1714 = vpop.trf.xlu0
  %v1715 = vpop.trf.xlu0
  %v1716 = vpop.trf.xlu0
  %v1717 = vpop.trf.xlu0
  %v1718 = vpop.trf.xlu0
  %v1719 = vpop.trf.xlu0
  %v1720 = vpop.trf.xlu0
  %v1721 = vpop.trf.xlu0
  %v1722 = vpop.trf.xlu0
  %v1723 = vpop.trf.xlu0
  %v1724 = vpop.trf.xlu0
  %v1725 = vpop.trf.xlu0
  %v1726 = vpop.trf.xlu0
  %v1727 = vpop.trf.xlu0
  %v1728 = vpop.trf.xlu0
  %1737 = vrot.lane.b32.xlu0 %v1713, 32
  %v1738 = vpop.permute.xlu0 %1737
  %1739 = vrot.lane.b32.xlu0 %v1714, 32
  %v1740 = vpop.permute.xlu0 %1739
  %1741 = vrot.lane.b32.xlu0 %v1715, 32
  %v1742 = vpop.permute.xlu0 %1741
  %1743 = vrot.lane.b32.xlu0 %v1716, 32
  %v1744 = vpop.permute.xlu0 %1743
  %1745 = vrot.lane.b32.xlu0 %v1717, 32
  %v1746 = vpop.permute.xlu0 %1745
  %1747 = vrot.lane.b32.xlu0 %v1718, 32
  %v1748 = vpop.permute.xlu0 %1747
  %1749 = vrot.lane.b32.xlu0 %v1719, 32
  %v1750 = vpop.permute.xlu0 %1749
  %1751 = vrot.lane.b32.xlu0 %v1720, 32
  %v1752 = vpop.permute.xlu0 %1751
  %1761 = vrot.lane.b32.xlu0 %v1713, 64
  %v1762 = vpop.permute.xlu0 %1761
  %1763 = vrot.lane.b32.xlu0 %v1714, 64
  %v1764 = vpop.permute.xlu0 %1763
  %1765 = vrot.lane.b32.xlu0 %v1715, 64
  %v1766 = vpop.permute.xlu0 %1765
  %1767 = vrot.lane.b32.xlu0 %v1716, 64
  %v1768 = vpop.permute.xlu0 %1767
  %1769 = vrot.lane.b32.xlu0 %v1717, 64
  %v1770 = vpop.permute.xlu0 %1769
  %1771 = vrot.lane.b32.xlu0 %v1718, 64
  %v1772 = vpop.permute.xlu0 %1771
  %1773 = vrot.lane.b32.xlu0 %v1719, 64
  %v1774 = vpop.permute.xlu0 %1773
  %1775 = vrot.lane.b32.xlu0 %v1720, 64
  %v1776 = vpop.permute.xlu0 %1775
  %1785 = vrot.lane.b32.xlu0 %v1713, 96
  %v1786 = vpop.permute.xlu0 %1785
  %1787 = vrot.lane.b32.xlu0 %v1714, 96
  %v1788 = vpop.permute.xlu0 %1787
  %1789 = vrot.lane.b32.xlu0 %v1715, 96
  %v1790 = vpop.permute.xlu0 %1789
  %1791 = vrot.lane.b32.xlu0 %v1716, 96
  %v1792 = vpop.permute.xlu0 %1791
  %1793 = vrot.lane.b32.xlu0 %v1717, 96
  %v1794 = vpop.permute.xlu0 %1793
  %1795 = vrot.lane.b32.xlu0 %v1718, 96
  %v1796 = vpop.permute.xlu0 %1795
  %1797 = vrot.lane.b32.xlu0 %v1719, 96
  %v1798 = vpop.permute.xlu0 %1797
  %1799 = vrot.lane.b32.xlu0 %v1720, 96
  %v1800 = vpop.permute.xlu0 %1799
  %v1809 = vsel %vm375, %v1713, %v1738
  %v1810 = vsel %vm375, %v1714, %v1740
  %v1811 = vsel %vm375, %v1715, %v1742
  %v1812 = vsel %vm375, %v1716, %v1744
  %v1813 = vsel %vm375, %v1717, %v1746
  %v1814 = vsel %vm375, %v1718, %v1748
  %v1815 = vsel %vm375, %v1719, %v1750
  %v1816 = vsel %vm375, %v1720, %v1752
  %v1817 = vsel %vm431, %v1809, %v1762
  %v1818 = vsel %vm431, %v1810, %v1764
  %v1819 = vsel %vm431, %v1811, %v1766
  %v1820 = vsel %vm431, %v1812, %v1768
  %v1821 = vsel %vm431, %v1813, %v1770
  %v1822 = vsel %vm431, %v1814, %v1772
  %v1823 = vsel %vm431, %v1815, %v1774
  %v1824 = vsel %vm431, %v1816, %v1776
  %v1825 = vsel %vm436, %v1817, %v1786
  %v1826 = vsel %vm436, %v1818, %v1788
  %v1827 = vsel %vm436, %v1819, %v1790
  %v1828 = vsel %vm436, %v1820, %v1792
  %v1829 = vsel %vm436, %v1821, %v1794
  %v1830 = vsel %vm436, %v1822, %v1796
  %v1831 = vsel %vm436, %v1823, %v1798
  %v1832 = vsel %vm436, %v1824, %v1800
  %v1833 = vmul.f32 %v1825, %v139
  %v1834 = vmul.f32 %v1826, %v140
  %v1835 = vmul.f32 %v1827, %v141
  %v1836 = vmul.f32 %v1828, %v142
  %v1837 = vmul.f32 %v1829, %v143
  %v1838 = vmul.f32 %v1830, %v144
  %v1839 = vmul.f32 %v1831, %v145
  %v1840 = vmul.f32 %v1832, %v146
  %v1841 = vsel %vm431, %v1659, 0
  %v1843 = vsel %vm431, %v1665, 0
  %v1845 = vsel %vm431, %v1671, 0
  %v1847 = vsel %vm431, %v1677, 0
  %1849 = vmatprep.subr.mxu0 0.0
  %1850 = vmatpush1.msra.mxu0 %v1833
  %1851 = vmatprep.subr.mxu0 0.0
  %1852 = vmatpush1.msra.mxu0 %v1834
  %1853 = vmatprep.subr.mxu0 0.0
  %1854 = vmatpush1.msra.mxu0 %v1835
  %1855 = vmatprep.subr.mxu0 0.0
  %1856 = vmatpush1.msra.mxu0 %v1836
  %1857 = vmatprep.subr.mxu0 0.0
  %1858 = vmatpush1.msra.mxu0 %v1837
  %1859 = vmatprep.subr.mxu0 0.0
  %1860 = vmatpush1.msra.mxu0 %v1838
  %1861 = vmatprep.subr.mxu0 0.0
  %1862 = vmatpush1.msra.mxu0 %v1839
  %1863 = vmatprep.subr.mxu0 0.0
  %1864 = vmatpush1.msra.mxu0 %v1840
  %1865 = vmatprep.subr.mxu0 0.0
  %1866 = vmatpush1.msra.mxu0 0.0
  %1867 = vmatprep.subr.mxu0 0.0
  %1868 = vmatpush1.msra.mxu0 0.0
  %1869 = vmatprep.subr.mxu0 0.0
  %1870 = vmatpush1.msra.mxu0 0.0
  %1871 = vmatprep.subr.mxu0 0.0
  %1872 = vmatpush1.msra.mxu0 0.0
  %1873 = vmatprep.subr.mxu0 0.0
  %1874 = vmatpush1.msra.mxu0 0.0
  %1875 = vmatprep.subr.mxu0 0.0
  %1876 = vmatpush1.msra.mxu0 0.0
  %1877 = vmatprep.subr.mxu0 0.0
  %1878 = vmatpush1.msra.mxu0 0.0
  %1879 = vmatprep.subr.mxu0 0.0
  %1880 = vmatpush1.msra.mxu0 0.0
  %1881 = vmatprep.subr.mxu0 0.0
  %1882 = vmatpush1.msra.mxu0 0.0
  %1883 = vmatprep.subr.mxu0 0.0
  %1884 = vmatpush1.msra.mxu0 0.0
  %1885 = vmatprep.subr.mxu0 0.0
  %1886 = vmatpush1.msra.mxu0 0.0
  %1887 = vmatprep.subr.mxu0 0.0
  %1888 = vmatpush1.msra.mxu0 0.0
  %1889 = vmatprep.subr.mxu0 0.0
  %1890 = vmatpush1.msra.mxu0 0.0
  %1891 = vmatprep.subr.mxu0 0.0
  %1892 = vmatpush1.msra.mxu0 0.0
  %1893 = vmatprep.subr.mxu0 0.0
  %1894 = vmatpush1.msra.mxu0 0.0
  %1895 = vmatprep.subr.mxu0 0.0
  %1896 = vmatpush1.msra.mxu0 0.0
  %1897 = vmatprep.subr.mxu0 0.0
  %1898 = vmatpush1.msra.mxu0 0.0
  %1899 = vmatprep.subr.mxu0 0.0
  %1900 = vmatpush1.msra.mxu0 0.0
  %1901 = vmatprep.subr.mxu0 0.0
  %1902 = vmatpush1.msra.mxu0 0.0
  %1903 = vmatprep.subr.mxu0 0.0
  %1904 = vmatpush1.msra.mxu0 0.0
  %1905 = vmatprep.subr.mxu0 0.0
  %1906 = vmatpush1.msra.mxu0 0.0
  %1907 = vmatprep.subr.mxu0 0.0
  %1908 = vmatpush1.msra.mxu0 0.0
  %1909 = vmatprep.subr.mxu0 0.0
  %1910 = vmatpush1.msra.mxu0 0.0
  %1911 = vmatprep.subr.mxu0 0.0
  %1912 = vmatpush1.msra.mxu0 0.0
  %1913 = vmatprep.mubr.f32.mxu0 0.0
  %1914 = vmatmul.mubr.f32.gmra.mrb[0].mxu0 %v1841
  %v1915 = vpop.f32.mrb[0].mxu0
  %v1916 = vadd.f32 0.0, %v1915
  %v1917 = vpop.f32.mrb[0].mxu0
  %1918 = vmatprep.mubr.f32.mxu0 0.0
  %1919 = vmatmul.mubr.f32.gmra.mrb[0].mxu0 %v1843
  %v1920 = vpop.f32.mrb[0].mxu0
  %v1921 = vadd.f32 0.0, %v1920
  %v1922 = vpop.f32.mrb[0].mxu0
  %1923 = vmatprep.mubr.f32.mxu0 0.0
  %1924 = vmatmul.mubr.f32.gmra.mrb[0].mxu0 %v1845
  %v1925 = vpop.f32.mrb[0].mxu0
  %v1926 = vadd.f32 0.0, %v1925
  %v1927 = vpop.f32.mrb[0].mxu0
  %1928 = vmatprep.mubr.f32.mxu0 0.0
  %1929 = vmatmul.mubr.f32.gmra.mrb[0].mxu0 %v1847
  %v1930 = vpop.f32.mrb[0].mxu0
  %v1931 = vadd.f32 0.0, %v1930
  %v1932 = vpop.f32.mrb[0].mxu0
  %1933 = vdwg.mxu0
  %vm1934 = vcmp.gt.f32.partialorder %v99, 0.0
  %vm1935 = vcmp.gt.f32.partialorder %v100, 0.0
  %vm1936 = vcmp.gt.f32.partialorder %v101, 0.0
  %vm1937 = vcmp.gt.f32.partialorder %v102, 0.0
  %v1938 = vsel %vm1934, %v1916, -1e+30
  %v1939 = vsel %vm1935, %v1921, -1e+30
  %v1940 = vsel %vm1936, %v1926, -1e+30
  %v1941 = vsel %vm1937, %v1931, -1e+30
  %v1942 = vsel %vm375, %v1938, -inf
  %1943 = vmax.xlane.f32.xlu0 %v1942
  %v1944 = vpop.xlane.xlu0 %1943
  %v1945 = vsel %vm375, %v1939, -inf
  %1946 = vmax.xlane.f32.xlu0 %v1945
  %v1947 = vpop.xlane.xlu0 %1946
  %v1948 = vsel %vm375, %v1940, -inf
  %1949 = vmax.xlane.f32.xlu0 %v1948
  %v1950 = vpop.xlane.xlu0 %1949
  %v1951 = vsel %vm375, %v1941, -inf
  %1952 = vmax.xlane.f32.xlu0 %v1951
  %v1953 = vpop.xlane.xlu0 %1952
  %v1954 = vsel %vm388, %v1938, -inf
  %1955 = vmax.xlane.f32.xlu0 %v1954
  %v1956 = vpop.xlane.xlu0 %1955
  %v1957 = vsel %vm388, %v1939, -inf
  %1958 = vmax.xlane.f32.xlu0 %v1957
  %v1959 = vpop.xlane.xlu0 %1958
  %v1960 = vsel %vm388, %v1940, -inf
  %1961 = vmax.xlane.f32.xlu0 %v1960
  %v1962 = vpop.xlane.xlu0 %1961
  %v1963 = vsel %vm388, %v1941, -inf
  %1964 = vmax.xlane.f32.xlu0 %v1963
  %v1965 = vpop.xlane.xlu0 %1964
  %v1966 = vsel %vm401, %v1938, -inf
  %1967 = vmax.xlane.f32.xlu0 %v1966
  %v1968 = vpop.xlane.xlu0 %1967
  %v1969 = vsel %vm401, %v1939, -inf
  %1970 = vmax.xlane.f32.xlu0 %v1969
  %v1971 = vpop.xlane.xlu0 %1970
  %v1972 = vsel %vm401, %v1940, -inf
  %1973 = vmax.xlane.f32.xlu0 %v1972
  %v1974 = vpop.xlane.xlu0 %1973
  %v1975 = vsel %vm401, %v1941, -inf
  %1976 = vmax.xlane.f32.xlu0 %v1975
  %v1977 = vpop.xlane.xlu0 %1976
  %v1978 = vsel %vm414, %v1938, -inf
  %1979 = vmax.xlane.f32.xlu0 %v1978
  %v1980 = vpop.xlane.xlu0 %1979
  %v1981 = vsel %vm414, %v1939, -inf
  %1982 = vmax.xlane.f32.xlu0 %v1981
  %v1983 = vpop.xlane.xlu0 %1982
  %v1984 = vsel %vm414, %v1940, -inf
  %1985 = vmax.xlane.f32.xlu0 %v1984
  %v1986 = vpop.xlane.xlu0 %1985
  %v1987 = vsel %vm414, %v1941, -inf
  %1988 = vmax.xlane.f32.xlu0 %v1987
  %v1989 = vpop.xlane.xlu0 %1988
  %v1990 = vsel %vm375, %v1944, %v1956
  %v1991 = vsel %vm375, %v1947, %v1959
  %v1992 = vsel %vm375, %v1950, %v1962
  %v1993 = vsel %vm375, %v1953, %v1965
  %v1994 = vsel %vm431, %v1990, %v1968
  %v1995 = vsel %vm431, %v1991, %v1971
  %v1996 = vsel %vm431, %v1992, %v1974
  %v1997 = vsel %vm431, %v1993, %v1977
  %v1998 = vsel %vm436, %v1994, %v1980
  %v1999 = vsel %vm436, %v1995, %v1983
  %v2000 = vsel %vm436, %v1996, %v1986
  %v2001 = vsel %vm436, %v1997, %v1989
  %v2002 = vsub.f32 %v1938, %v1998
  %v2003 = vsub.f32 %v1939, %v1999
  %v2004 = vsub.f32 %v1940, %v2000
  %v2005 = vsub.f32 %v1941, %v2001
  %v2006 = vmul.f32 %v2002, 1.442695
  %v2007 = vpow.pop %v2006
  %v2008 = vmul.f32 %v2003, 1.442695
  %v2009 = vpow.pop %v2008
  %v2010 = vmul.f32 %v2004, 1.442695
  %v2011 = vpow.pop %v2010
  %v2012 = vmul.f32 %v2005, 1.442695
  %v2013 = vpow.pop %v2012
  %v2014 = vmul.f32 %v2007, %v99
  %v2015 = vmul.f32 %v2009, %v100
  %v2016 = vmul.f32 %v2011, %v101
  %v2017 = vmul.f32 %v2013, %v102
  %2018 = vmatprep.subr.mxu0 0.0
  %2019 = vmatpush1.msra.mxu0 %v107
  %2020 = vmatprep.subr.mxu0 0.0
  %2021 = vmatpush1.msra.mxu0 %v108
  %2022 = vmatprep.subr.mxu0 0.0
  %2023 = vmatpush1.msra.mxu0 %v109
  %2024 = vmatprep.subr.mxu0 0.0
  %2025 = vmatpush1.msra.mxu0 %v110
  %2026 = vmatprep.subr.mxu0 0.0
  %2027 = vmatpush1.msra.mxu0 %v111
  %2028 = vmatprep.subr.mxu0 0.0
  %2029 = vmatpush1.msra.mxu0 %v112
  %2030 = vmatprep.subr.mxu0 0.0
  %2031 = vmatpush1.msra.mxu0 %v113
  %2032 = vmatprep.subr.mxu0 0.0
  %2033 = vmatpush1.msra.mxu0 %v114
  %2034 = vmatprep.subr.mxu0 0.0
  %2035 = vmatpush1.msra.mxu0 %v115
  %2036 = vmatprep.subr.mxu0 0.0
  %2037 = vmatpush1.msra.mxu0 %v116
  %2038 = vmatprep.subr.mxu0 0.0
  %2039 = vmatpush1.msra.mxu0 %v117
  %2040 = vmatprep.subr.mxu0 0.0
  %2041 = vmatpush1.msra.mxu0 %v118
  %2042 = vmatprep.subr.mxu0 0.0
  %2043 = vmatpush1.msra.mxu0 %v119
  %2044 = vmatprep.subr.mxu0 0.0
  %2045 = vmatpush1.msra.mxu0 %v120
  %2046 = vmatprep.subr.mxu0 0.0
  %2047 = vmatpush1.msra.mxu0 %v121
  %2048 = vmatprep.subr.mxu0 0.0
  %2049 = vmatpush1.msra.mxu0 %v122
  %2050 = vmatprep.subr.mxu0 0.0
  %2051 = vmatpush1.msra.mxu0 0.0
  %2052 = vmatprep.subr.mxu0 0.0
  %2053 = vmatpush1.msra.mxu0 0.0
  %2054 = vmatprep.subr.mxu0 0.0
  %2055 = vmatpush1.msra.mxu0 0.0
  %2056 = vmatprep.subr.mxu0 0.0
  %2057 = vmatpush1.msra.mxu0 0.0
  %2058 = vmatprep.subr.mxu0 0.0
  %2059 = vmatpush1.msra.mxu0 0.0
  %2060 = vmatprep.subr.mxu0 0.0
  %2061 = vmatpush1.msra.mxu0 0.0
  %2062 = vmatprep.subr.mxu0 0.0
  %2063 = vmatpush1.msra.mxu0 0.0
  %2064 = vmatprep.subr.mxu0 0.0
  %2065 = vmatpush1.msra.mxu0 0.0
  %2066 = vmatprep.subr.mxu0 0.0
  %2067 = vmatpush1.msra.mxu0 0.0
  %2068 = vmatprep.subr.mxu0 0.0
  %2069 = vmatpush1.msra.mxu0 0.0
  %2070 = vmatprep.subr.mxu0 0.0
  %2071 = vmatpush1.msra.mxu0 0.0
  %2072 = vmatprep.subr.mxu0 0.0
  %2073 = vmatpush1.msra.mxu0 0.0
  %2074 = vmatprep.subr.mxu0 0.0
  %2075 = vmatpush1.msra.mxu0 0.0
  %2076 = vmatprep.subr.mxu0 0.0
  %2077 = vmatpush1.msra.mxu0 0.0
  %2078 = vmatprep.subr.mxu0 0.0
  %2079 = vmatpush1.msra.mxu0 0.0
  %2080 = vmatprep.subr.mxu0 0.0
  %2081 = vmatpush1.msra.mxu0 0.0
  %2082 = vmatprep.mubr.f32.mxu0 0.0
  %2083 = vmatmul.mubr.f32.gmra.mrb[0].mxu0 %v2014
  %v2084 = vpop.f32.mrb[0].mxu0
  %v2085 = vadd.f32 1e-16, %v2084
  %v2086 = vpop.f32.mrb[0].mxu0
  %2087 = vmatprep.mubr.f32.mxu0 0.0
  %2088 = vmatmul.mubr.f32.gmra.mrb[0].mxu0 %v2015
  %v2089 = vpop.f32.mrb[0].mxu0
  %v2090 = vadd.f32 1e-16, %v2089
  %v2091 = vpop.f32.mrb[0].mxu0
  %2092 = vmatprep.mubr.f32.mxu0 0.0
  %2093 = vmatmul.mubr.f32.gmra.mrb[0].mxu0 %v2016
  %v2094 = vpop.f32.mrb[0].mxu0
  %v2095 = vadd.f32 1e-16, %v2094
  %v2096 = vpop.f32.mrb[0].mxu0
  %2097 = vmatprep.mubr.f32.mxu0 0.0
  %2098 = vmatmul.mubr.f32.gmra.mrb[0].mxu0 %v2017
  %v2099 = vpop.f32.mrb[0].mxu0
  %v2100 = vadd.f32 1e-16, %v2099
  %v2101 = vpop.f32.mrb[0].mxu0
  %2102 = vdwg.mxu0
  %v2103 = vrcp.pop %v2085
  %v2104 = vrcp.pop %v2090
  %v2105 = vrcp.pop %v2095
  %v2106 = vrcp.pop %v2100
  %v2107 = vmul.f32 %v2014, %v2103
  %v2108 = vmul.f32 %v2015, %v2104
  %v2109 = vmul.f32 %v2016, %v2105
  %v2110 = vmul.f32 %v2017, %v2106
  %v2111 = vmul.f32 %v1661, %v123
  %v2112 = vmul.f32 %v1667, %v124
  %v2113 = vmul.f32 %v1673, %v125
  %v2114 = vmul.f32 %v1679, %v126
  %v2115 = vmul.f32 %v1661, %v127
  %v2116 = vmul.f32 %v1667, %v128
  %v2117 = vmul.f32 %v1673, %v129
  %v2118 = vmul.f32 %v1679, %v130
  %v2119 = vmul.f32 %v1661, %v131
  %v2120 = vmul.f32 %v1667, %v132
  %v2121 = vmul.f32 %v1673, %v133
  %v2122 = vmul.f32 %v1679, %v134
  %v2123 = vmul.f32 %v1661, %v135
  %v2124 = vmul.f32 %v1667, %v136
  %v2125 = vmul.f32 %v1673, %v137
  %v2126 = vmul.f32 %v1679, %v138
  %2131 = vrot.lane.b32.xlu0 %v1661, 64
  %v2132 = vpop.permute.xlu0 %2131
  %2133 = vrot.lane.b32.xlu0 %v1667, 64
  %v2134 = vpop.permute.xlu0 %2133
  %2135 = vrot.lane.b32.xlu0 %v1673, 64
  %v2136 = vpop.permute.xlu0 %2135
  %2137 = vrot.lane.b32.xlu0 %v1679, 64
  %v2138 = vpop.permute.xlu0 %2137
  %2143 = vmatprep.subr.mxu0 0.0
  %2144 = vmatpush1.msra.mxu0 %v2111
  %2145 = vmatprep.subr.mxu0 0.0
  %2146 = vmatpush1.msra.mxu0 %v2112
  %2147 = vmatprep.subr.mxu0 0.0
  %2148 = vmatpush1.msra.mxu0 %v2113
  %2149 = vmatprep.subr.mxu0 0.0
  %2150 = vmatpush1.msra.mxu0 %v2114
  %2151 = vmatprep.subr.mxu0 0.0
  %2152 = vmatpush1.msra.mxu0 %v2115
  %2153 = vmatprep.subr.mxu0 0.0
  %2154 = vmatpush1.msra.mxu0 %v2116
  %2155 = vmatprep.subr.mxu0 0.0
  %2156 = vmatpush1.msra.mxu0 %v2117
  %2157 = vmatprep.subr.mxu0 0.0
  %2158 = vmatpush1.msra.mxu0 %v2118
  %2159 = vmatprep.subr.mxu0 0.0
  %2160 = vmatpush1.msra.mxu0 %v2119
  %2161 = vmatprep.subr.mxu0 0.0
  %2162 = vmatpush1.msra.mxu0 %v2120
  %2163 = vmatprep.subr.mxu0 0.0
  %2164 = vmatpush1.msra.mxu0 %v2121
  %2165 = vmatprep.subr.mxu0 0.0
  %2166 = vmatpush1.msra.mxu0 %v2122
  %2167 = vmatprep.subr.mxu0 0.0
  %2168 = vmatpush1.msra.mxu0 %v2123
  %2169 = vmatprep.subr.mxu0 0.0
  %2170 = vmatpush1.msra.mxu0 %v2124
  %2171 = vmatprep.subr.mxu0 0.0
  %2172 = vmatpush1.msra.mxu0 %v2125
  %2173 = vmatprep.subr.mxu0 0.0
  %2174 = vmatpush1.msra.mxu0 %v2126
  %2175 = vmatprep.subr.mxu0 0.0
  %2176 = vmatpush1.msra.mxu0 0.0
  %2177 = vmatprep.subr.mxu0 0.0
  %2178 = vmatpush1.msra.mxu0 0.0
  %2179 = vmatprep.subr.mxu0 0.0
  %2180 = vmatpush1.msra.mxu0 0.0
  %2181 = vmatprep.subr.mxu0 0.0
  %2182 = vmatpush1.msra.mxu0 0.0
  %2183 = vmatprep.subr.mxu0 0.0
  %2184 = vmatpush1.msra.mxu0 0.0
  %2185 = vmatprep.subr.mxu0 0.0
  %2186 = vmatpush1.msra.mxu0 0.0
  %2187 = vmatprep.subr.mxu0 0.0
  %2188 = vmatpush1.msra.mxu0 0.0
  %2189 = vmatprep.subr.mxu0 0.0
  %2190 = vmatpush1.msra.mxu0 0.0
  %2191 = vmatprep.subr.mxu0 0.0
  %2192 = vmatpush1.msra.mxu0 0.0
  %2193 = vmatprep.subr.mxu0 0.0
  %2194 = vmatpush1.msra.mxu0 0.0
  %2195 = vmatprep.subr.mxu0 0.0
  %2196 = vmatpush1.msra.mxu0 0.0
  %2197 = vmatprep.subr.mxu0 0.0
  %2198 = vmatpush1.msra.mxu0 0.0
  %2199 = vmatprep.subr.mxu0 0.0
  %2200 = vmatpush1.msra.mxu0 0.0
  %2201 = vmatprep.subr.mxu0 0.0
  %2202 = vmatpush1.msra.mxu0 0.0
  %2203 = vmatprep.subr.mxu0 0.0
  %2204 = vmatpush1.msra.mxu0 0.0
  %2205 = vmatprep.subr.mxu0 0.0
  %2206 = vmatpush1.msra.mxu0 0.0
  %2207 = vmatprep.mubr.f32.mxu0 0.0
  %2208 = vmatmul.mubr.f32.gmra.mrb[0].mxu0 %v2107
  %v2209 = vpop.f32.mrb[0].mxu0
  %v2210 = vadd.f32 %v2132, %v2209
  %v2211 = vpop.f32.mrb[0].mxu0
  %2212 = vmatprep.mubr.f32.mxu0 0.0
  %2213 = vmatmul.mubr.f32.gmra.mrb[0].mxu0 %v2108
  %v2214 = vpop.f32.mrb[0].mxu0
  %v2215 = vadd.f32 %v2134, %v2214
  %v2216 = vpop.f32.mrb[0].mxu0
  %2217 = vmatprep.mubr.f32.mxu0 0.0
  %2218 = vmatmul.mubr.f32.gmra.mrb[0].mxu0 %v2109
  %v2219 = vpop.f32.mrb[0].mxu0
  %v2220 = vadd.f32 %v2136, %v2219
  %v2221 = vpop.f32.mrb[0].mxu0
  %2222 = vmatprep.mubr.f32.mxu0 0.0
  %2223 = vmatmul.mubr.f32.gmra.mrb[0].mxu0 %v2110
  %v2224 = vpop.f32.mrb[0].mxu0
  %v2225 = vadd.f32 %v2138, %v2224
  %v2226 = vpop.f32.mrb[0].mxu0
  %2227 = vdwg.mxu0
  %v2228 = vmul.f32 %v2210, 0.5
  %v2229 = vmul.f32 %v2215, 0.5
  %v2230 = vmul.f32 %v2220, 0.5
  %v2231 = vmul.f32 %v2225, 0.5
  %v2232 = vmul.f32 %v2210, 0.044715
  %v2233 = vmul.f32 %v2215, 0.044715
  %v2234 = vmul.f32 %v2220, 0.044715
  %v2235 = vmul.f32 %v2225, 0.044715
  %v2236 = vmul.f32 %v2232, %v2210
  %v2237 = vmul.f32 %v2233, %v2215
  %v2238 = vmul.f32 %v2234, %v2220
  %v2239 = vmul.f32 %v2235, %v2225
  %v2240 = vmul.f32 %v2236, %v2210
  %v2241 = vmul.f32 %v2237, %v2215
  %v2242 = vmul.f32 %v2238, %v2220
  %v2243 = vmul.f32 %v2239, %v2225
  %v2244 = vadd.f32 %v2210, %v2240
  %v2245 = vadd.f32 %v2215, %v2241
  %v2246 = vadd.f32 %v2220, %v2242
  %v2247 = vadd.f32 %v2225, %v2243
  %v2248 = vmul.f32 %v2244, 0.7978846
  %v2249 = vmul.f32 %v2245, 0.7978846
  %v2250 = vmul.f32 %v2246, 0.7978846
  %v2251 = vmul.f32 %v2247, 0.7978846
  %v2252 = vtanh.pop %v2248
  %v2253 = vtanh.pop %v2249
  %v2254 = vtanh.pop %v2250
  %v2255 = vtanh.pop %v2251
  %v2256 = vadd.f32 %v2252, 1.0
  %v2257 = vadd.f32 %v2253, 1.0
  %v2258 = vadd.f32 %v2254, 1.0
  %v2259 = vadd.f32 %v2255, 1.0
  %v2260 = vmul.f32 %v2228, %v2256
  %v2261 = vmul.f32 %v2229, %v2257
  %v2262 = vmul.f32 %v2230, %v2258
  %v2263 = vmul.f32 %v2231, %v2259
  %v2264 = vld [vmem:[%s17] sm:$0xff]
  %v2265 = vld [vmem:[%s17 + $0x8] sm:$0xff]
  %v2266 = vld [vmem:[%s17 + $0x10] sm:$0xff]
  %v2267 = vld [vmem:[%s17 + $0x18] sm:$0xff]
  %v2268 = vld [vmem:[%s17 + $0x20] sm:$0xff]
  %v2269 = vld [vmem:[%s17 + $0x28] sm:$0xff]
  %v2270 = vld [vmem:[%s17 + $0x30] sm:$0xff]
  %v2271 = vld [vmem:[%s17 + $0x38] sm:$0xff]
  %v2272 = vld [vmem:[%s17 + $0x40] sm:$0xff]
  %v2273 = vld [vmem:[%s17 + $0x48] sm:$0xff]
  %v2274 = vld [vmem:[%s17 + $0x50] sm:$0xff]
  %v2275 = vld [vmem:[%s17 + $0x58] sm:$0xff]
  %v2276 = vld [vmem:[%s17 + $0x60] sm:$0xff]
  %v2277 = vld [vmem:[%s17 + $0x68] sm:$0xff]
  %v2278 = vld [vmem:[%s17 + $0x70] sm:$0xff]
  %v2279 = vld [vmem:[%s17 + $0x78] sm:$0xff]
  %v2280 = vld [vmem:[%s18] sm:$0x3]
  %v2282 = vlaneseq
  %v2283 = vshrl.u32 %v2282, 7
  %v2284 = vsub.s32 0, %v2283
  %v2285 = vrot.slane %v2280, %v2284
  %v2286 = vlaneseq
  %v2287 = vshrl.u32 %v2286, 7
  %v2288 = vsub.s32 1, %v2287
  %v2289 = vrot.slane %v2280, %v2288
  %v2293 = vsel %vm431, %v2260, 0
  %v2296 = vsel %vm431, %v2261, 0
  %v2299 = vsel %vm431, %v2262, 0
  %v2302 = vsel %vm431, %v2263, 0
  %2304 = vmatprep.subr.mxu0 %v2265
  %2305 = vmatpush1.msra.mxu0 %v2264
  %2306 = vmatprep.subr.mxu0 %v2267
  %2307 = vmatpush1.msra.mxu0 %v2266
  %2308 = vmatprep.subr.mxu0 %v2269
  %2309 = vmatpush1.msra.mxu0 %v2268
  %2310 = vmatprep.subr.mxu0 %v2271
  %2311 = vmatpush1.msra.mxu0 %v2270
  %2312 = vmatprep.subr.mxu0 %v2273
  %2313 = vmatpush1.msra.mxu0 %v2272
  %2314 = vmatprep.subr.mxu0 %v2275
  %2315 = vmatpush1.msra.mxu0 %v2274
  %2316 = vmatprep.subr.mxu0 %v2277
  %2317 = vmatpush1.msra.mxu0 %v2276
  %2318 = vmatprep.subr.mxu0 %v2279
  %2319 = vmatpush1.msra.mxu0 %v2278
  %2320 = vmatprep.subr.mxu0 0.0
  %2321 = vmatpush1.msra.mxu0 0.0
  %2322 = vmatprep.subr.mxu0 0.0
  %2323 = vmatpush1.msra.mxu0 0.0
  %2324 = vmatprep.subr.mxu0 0.0
  %2325 = vmatpush1.msra.mxu0 0.0
  %2326 = vmatprep.subr.mxu0 0.0
  %2327 = vmatpush1.msra.mxu0 0.0
  %2328 = vmatprep.subr.mxu0 0.0
  %2329 = vmatpush1.msra.mxu0 0.0
  %2330 = vmatprep.subr.mxu0 0.0
  %2331 = vmatpush1.msra.mxu0 0.0
  %2332 = vmatprep.subr.mxu0 0.0
  %2333 = vmatpush1.msra.mxu0 0.0
  %2334 = vmatprep.subr.mxu0 0.0
  %2335 = vmatpush1.msra.mxu0 0.0
  %2336 = vmatprep.subr.mxu0 0.0
  %2337 = vmatpush1.msra.mxu0 0.0
  %2338 = vmatprep.subr.mxu0 0.0
  %2339 = vmatpush1.msra.mxu0 0.0
  %2340 = vmatprep.subr.mxu0 0.0
  %2341 = vmatpush1.msra.mxu0 0.0
  %2342 = vmatprep.subr.mxu0 0.0
  %2343 = vmatpush1.msra.mxu0 0.0
  %2344 = vmatprep.subr.mxu0 0.0
  %2345 = vmatpush1.msra.mxu0 0.0
  %2346 = vmatprep.subr.mxu0 0.0
  %2347 = vmatpush1.msra.mxu0 0.0
  %2348 = vmatprep.subr.mxu0 0.0
  %2349 = vmatpush1.msra.mxu0 0.0
  %2350 = vmatprep.subr.mxu0 0.0
  %2351 = vmatpush1.msra.mxu0 0.0
  %2352 = vmatprep.subr.mxu0 0.0
  %2353 = vmatpush1.msra.mxu0 0.0
  %2354 = vmatprep.subr.mxu0 0.0
  %2355 = vmatpush1.msra.mxu0 0.0
  %2356 = vmatprep.subr.mxu0 0.0
  %2357 = vmatpush1.msra.mxu0 0.0
  %2358 = vmatprep.subr.mxu0 0.0
  %2359 = vmatpush1.msra.mxu0 0.0
  %2360 = vmatprep.subr.mxu0 0.0
  %2361 = vmatpush1.msra.mxu0 0.0
  %2362 = vmatprep.subr.mxu0 0.0
  %2363 = vmatpush1.msra.mxu0 0.0
  %2364 = vmatprep.subr.mxu0 0.0
  %2365 = vmatpush1.msra.mxu0 0.0
  %2366 = vmatprep.subr.mxu0 0.0
  %2367 = vmatpush1.msra.mxu0 0.0
  %2368 = vmatprep.mubr.f32.mxu0 0.0
  %2369 = vmatmul.mubr.f32.gmra.mrb[0].mxu0 %v2293
  %v2370 = vpop.f32.mrb[0].mxu0
  %v2371 = vadd.f32 %v2285, %v2370
  %v2372 = vpop.f32.mrb[0].mxu0
  %v2373 = vadd.f32 %v2289, %v2372
  %2374 = vmatprep.mubr.f32.mxu0 0.0
  %2375 = vmatmul.mubr.f32.gmra.mrb[0].mxu0 %v2296
  %v2376 = vpop.f32.mrb[0].mxu0
  %v2377 = vadd.f32 %v2285, %v2376
  %v2378 = vpop.f32.mrb[0].mxu0
  %v2379 = vadd.f32 %v2289, %v2378
  %2380 = vmatprep.mubr.f32.mxu0 0.0
  %2381 = vmatmul.mubr.f32.gmra.mrb[0].mxu0 %v2299
  %v2382 = vpop.f32.mrb[0].mxu0
  %v2383 = vadd.f32 %v2285, %v2382
  %v2384 = vpop.f32.mrb[0].mxu0
  %v2385 = vadd.f32 %v2289, %v2384
  %2386 = vmatprep.mubr.f32.mxu0 0.0
  %2387 = vmatmul.mubr.f32.gmra.mrb[0].mxu0 %v2302
  %v2388 = vpop.f32.mrb[0].mxu0
  %v2389 = vadd.f32 %v2285, %v2388
  %v2390 = vpop.f32.mrb[0].mxu0
  %v2391 = vadd.f32 %v2289, %v2390
  %2392 = vdwg.mxu0
  %2397 = vrot.lane.b32.xlu0 %v2371, 64
  %v2398 = vpop.permute.xlu0 %2397
  %2399 = vrot.lane.b32.xlu0 %v2377, 64
  %v2400 = vpop.permute.xlu0 %2399
  %2401 = vrot.lane.b32.xlu0 %v2383, 64
  %v2402 = vpop.permute.xlu0 %2401
  %2403 = vrot.lane.b32.xlu0 %v2389, 64
  %v2404 = vpop.permute.xlu0 %2403
  %2409 = vxpose.xlu0.b32.start [1/16] %v2398, 128
  %2410 = vxpose.xlu0.b32.cont [2/16] %v2400, 128
  %2411 = vxpose.xlu0.b32.cont [3/16] %v2402, 128
  %2412 = vxpose.xlu0.b32.cont [4/16] %v2404, 128
  %2413 = vxpose.xlu0.b32.cont [5/16] 0.0, 128
  %2414 = vxpose.xlu0.b32.cont [6/16] 0.0, 128
  %2415 = vxpose.xlu0.b32.cont [7/16] 0.0, 128
  %2416 = vxpose.xlu0.b32.cont [8/16] 0.0, 128
  %2417 = vxpose.xlu0.b32.cont [9/16] 0.0, 128
  %2418 = vxpose.xlu0.b32.cont [10/16] 0.0, 128
  %2419 = vxpose.xlu0.b32.cont [11/16] 0.0, 128
  %2420 = vxpose.xlu0.b32.cont [12/16] 0.0, 128
  %2421 = vxpose.xlu0.b32.cont [13/16] 0.0, 128
  %2422 = vxpose.xlu0.b32.cont [14/16] 0.0, 128
  %2423 = vxpose.xlu0.b32.cont [15/16] 0.0, 128
  %2424 = vxpose.xlu0.b32.end [16/16] 0.0, 128
  %v2425 = vpop.trf.xlu0
  %v2426 = vpop.trf.xlu0
  %v2427 = vpop.trf.xlu0
  %v2428 = vpop.trf.xlu0
  %v2429 = vpop.trf.xlu0
  %v2430 = vpop.trf.xlu0
  %v2431 = vpop.trf.xlu0
  %v2432 = vpop.trf.xlu0
  %v2433 = vpop.trf.xlu0
  %v2434 = vpop.trf.xlu0
  %v2435 = vpop.trf.xlu0
  %v2436 = vpop.trf.xlu0
  %v2437 = vpop.trf.xlu0
  %v2438 = vpop.trf.xlu0
  %v2439 = vpop.trf.xlu0
  %v2440 = vpop.trf.xlu0
  %2449 = vrot.lane.b32.xlu0 %v2425, 32
  %v2450 = vpop.permute.xlu0 %2449
  %2451 = vrot.lane.b32.xlu0 %v2426, 32
  %v2452 = vpop.permute.xlu0 %2451
  %2453 = vrot.lane.b32.xlu0 %v2427, 32
  %v2454 = vpop.permute.xlu0 %2453
  %2455 = vrot.lane.b32.xlu0 %v2428, 32
  %v2456 = vpop.permute.xlu0 %2455
  %2457 = vrot.lane.b32.xlu0 %v2429, 32
  %v2458 = vpop.permute.xlu0 %2457
  %2459 = vrot.lane.b32.xlu0 %v2430, 32
  %v2460 = vpop.permute.xlu0 %2459
  %2461 = vrot.lane.b32.xlu0 %v2431, 32
  %v2462 = vpop.permute.xlu0 %2461
  %2463 = vrot.lane.b32.xlu0 %v2432, 32
  %v2464 = vpop.permute.xlu0 %2463
  %2473 = vrot.lane.b32.xlu0 %v2425, 64
  %v2474 = vpop.permute.xlu0 %2473
  %2475 = vrot.lane.b32.xlu0 %v2426, 64
  %v2476 = vpop.permute.xlu0 %2475
  %2477 = vrot.lane.b32.xlu0 %v2427, 64
  %v2478 = vpop.permute.xlu0 %2477
  %2479 = vrot.lane.b32.xlu0 %v2428, 64
  %v2480 = vpop.permute.xlu0 %2479
  %2481 = vrot.lane.b32.xlu0 %v2429, 64
  %v2482 = vpop.permute.xlu0 %2481
  %2483 = vrot.lane.b32.xlu0 %v2430, 64
  %v2484 = vpop.permute.xlu0 %2483
  %2485 = vrot.lane.b32.xlu0 %v2431, 64
  %v2486 = vpop.permute.xlu0 %2485
  %2487 = vrot.lane.b32.xlu0 %v2432, 64
  %v2488 = vpop.permute.xlu0 %2487
  %2497 = vrot.lane.b32.xlu0 %v2425, 96
  %v2498 = vpop.permute.xlu0 %2497
  %2499 = vrot.lane.b32.xlu0 %v2426, 96
  %v2500 = vpop.permute.xlu0 %2499
  %2501 = vrot.lane.b32.xlu0 %v2427, 96
  %v2502 = vpop.permute.xlu0 %2501
  %2503 = vrot.lane.b32.xlu0 %v2428, 96
  %v2504 = vpop.permute.xlu0 %2503
  %2505 = vrot.lane.b32.xlu0 %v2429, 96
  %v2506 = vpop.permute.xlu0 %2505
  %2507 = vrot.lane.b32.xlu0 %v2430, 96
  %v2508 = vpop.permute.xlu0 %2507
  %2509 = vrot.lane.b32.xlu0 %v2431, 96
  %v2510 = vpop.permute.xlu0 %2509
  %2511 = vrot.lane.b32.xlu0 %v2432, 96
  %v2512 = vpop.permute.xlu0 %2511
  %v2521 = vsel %vm375, %v2425, %v2450
  %v2522 = vsel %vm375, %v2426, %v2452
  %v2523 = vsel %vm375, %v2427, %v2454
  %v2524 = vsel %vm375, %v2428, %v2456
  %v2525 = vsel %vm375, %v2429, %v2458
  %v2526 = vsel %vm375, %v2430, %v2460
  %v2527 = vsel %vm375, %v2431, %v2462
  %v2528 = vsel %vm375, %v2432, %v2464
  %v2529 = vsel %vm431, %v2521, %v2474
  %v2530 = vsel %vm431, %v2522, %v2476
  %v2531 = vsel %vm431, %v2523, %v2478
  %v2532 = vsel %vm431, %v2524, %v2480
  %v2533 = vsel %vm431, %v2525, %v2482
  %v2534 = vsel %vm431, %v2526, %v2484
  %v2535 = vsel %vm431, %v2527, %v2486
  %v2536 = vsel %vm431, %v2528, %v2488
  %v2537 = vsel %vm436, %v2529, %v2498
  %v2538 = vsel %vm436, %v2530, %v2500
  %v2539 = vsel %vm436, %v2531, %v2502
  %v2540 = vsel %vm436, %v2532, %v2504
  %v2541 = vsel %vm436, %v2533, %v2506
  %v2542 = vsel %vm436, %v2534, %v2508
  %v2543 = vsel %vm436, %v2535, %v2510
  %v2544 = vsel %vm436, %v2536, %v2512
  %v2545 = vmul.f32 %v2537, %v139
  %v2546 = vmul.f32 %v2538, %v140
  %v2547 = vmul.f32 %v2539, %v141
  %v2548 = vmul.f32 %v2540, %v142
  %v2549 = vmul.f32 %v2541, %v143
  %v2550 = vmul.f32 %v2542, %v144
  %v2551 = vmul.f32 %v2543, %v145
  %v2552 = vmul.f32 %v2544, %v146
  %v2553 = vsel %vm431, %v2371, 0
  %v2555 = vsel %vm431, %v2377, 0
  %v2557 = vsel %vm431, %v2383, 0
  %v2559 = vsel %vm431, %v2389, 0
  %2561 = vmatprep.subr.mxu0 0.0
  %2562 = vmatpush1.msra.mxu0 %v2545
  %2563 = vmatprep.subr.mxu0 0.0
  %2564 = vmatpush1.msra.mxu0 %v2546
  %2565 = vmatprep.subr.mxu0 0.0
  %2566 = vmatpush1.msra.mxu0 %v2547
  %2567 = vmatprep.subr.mxu0 0.0
  %2568 = vmatpush1.msra.mxu0 %v2548
  %2569 = vmatprep.subr.mxu0 0.0
  %2570 = vmatpush1.msra.mxu0 %v2549
  %2571 = vmatprep.subr.mxu0 0.0
  %2572 = vmatpush1.msra.mxu0 %v2550
  %2573 = vmatprep.subr.mxu0 0.0
  %2574 = vmatpush1.msra.mxu0 %v2551
  %2575 = vmatprep.subr.mxu0 0.0
  %2576 = vmatpush1.msra.mxu0 %v2552
  %2577 = vmatprep.subr.mxu0 0.0
  %2578 = vmatpush1.msra.mxu0 0.0
  %2579 = vmatprep.subr.mxu0 0.0
  %2580 = vmatpush1.msra.mxu0 0.0
  %2581 = vmatprep.subr.mxu0 0.0
  %2582 = vmatpush1.msra.mxu0 0.0
  %2583 = vmatprep.subr.mxu0 0.0
  %2584 = vmatpush1.msra.mxu0 0.0
  %2585 = vmatprep.subr.mxu0 0.0
  %2586 = vmatpush1.msra.mxu0 0.0
  %2587 = vmatprep.subr.mxu0 0.0
  %2588 = vmatpush1.msra.mxu0 0.0
  %2589 = vmatprep.subr.mxu0 0.0
  %2590 = vmatpush1.msra.mxu0 0.0
  %2591 = vmatprep.subr.mxu0 0.0
  %2592 = vmatpush1.msra.mxu0 0.0
  %2593 = vmatprep.subr.mxu0 0.0
  %2594 = vmatpush1.msra.mxu0 0.0
  %2595 = vmatprep.subr.mxu0 0.0
  %2596 = vmatpush1.msra.mxu0 0.0
  %2597 = vmatprep.subr.mxu0 0.0
  %2598 = vmatpush1.msra.mxu0 0.0
  %2599 = vmatprep.subr.mxu0 0.0
  %2600 = vmatpush1.msra.mxu0 0.0
  %2601 = vmatprep.subr.mxu0 0.0
  %2602 = vmatpush1.msra.mxu0 0.0
  %2603 = vmatprep.subr.mxu0 0.0
  %2604 = vmatpush1.msra.mxu0 0.0
  %2605 = vmatprep.subr.mxu0 0.0
  %2606 = vmatpush1.msra.mxu0 0.0
  %2607 = vmatprep.subr.mxu0 0.0
  %2608 = vmatpush1.msra.mxu0 0.0
  %2609 = vmatprep.subr.mxu0 0.0
  %2610 = vmatpush1.msra.mxu0 0.0
  %2611 = vmatprep.subr.mxu0 0.0
  %2612 = vmatpush1.msra.mxu0 0.0
  %2613 = vmatprep.subr.mxu0 0.0
  %2614 = vmatpush1.msra.mxu0 0.0
  %2615 = vmatprep.subr.mxu0 0.0
  %2616 = vmatpush1.msra.mxu0 0.0
  %2617 = vmatprep.subr.mxu0 0.0
  %2618 = vmatpush1.msra.mxu0 0.0
  %2619 = vmatprep.subr.mxu0 0.0
  %2620 = vmatpush1.msra.mxu0 0.0
  %2621 = vmatprep.subr.mxu0 0.0
  %2622 = vmatpush1.msra.mxu0 0.0
  %2623 = vmatprep.subr.mxu0 0.0
  %2624 = vmatpush1.msra.mxu0 0.0
  %2625 = vmatprep.mubr.f32.mxu0 0.0
  %2626 = vmatmul.mubr.f32.gmra.mrb[0].mxu0 %v2553
  %v2627 = vpop.f32.mrb[0].mxu0
  %v2628 = vadd.f32 0.0, %v2627
  %v2629 = vpop.f32.mrb[0].mxu0
  %2630 = vmatprep.mubr.f32.mxu0 0.0
  %2631 = vmatmul.mubr.f32.gmra.mrb[0].mxu0 %v2555
  %v2632 = vpop.f32.mrb[0].mxu0
  %v2633 = vadd.f32 0.0, %v2632
  %v2634 = vpop.f32.mrb[0].mxu0
  %2635 = vmatprep.mubr.f32.mxu0 0.0
  %2636 = vmatmul.mubr.f32.gmra.mrb[0].mxu0 %v2557
  %v2637 = vpop.f32.mrb[0].mxu0
  %v2638 = vadd.f32 0.0, %v2637
  %v2639 = vpop.f32.mrb[0].mxu0
  %2640 = vmatprep.mubr.f32.mxu0 0.0
  %2641 = vmatmul.mubr.f32.gmra.mrb[0].mxu0 %v2559
  %v2642 = vpop.f32.mrb[0].mxu0
  %v2643 = vadd.f32 0.0, %v2642
  %v2644 = vpop.f32.mrb[0].mxu0
  %2645 = vdwg.mxu0
  %v2646 = vsel %vm1934, %v2628, -1e+30
  %v2647 = vsel %vm1935, %v2633, -1e+30
  %v2648 = vsel %vm1936, %v2638, -1e+30
  %v2649 = vsel %vm1937, %v2643, -1e+30
  %v2650 = vsel %vm375, %v2646, -inf
  %2651 = vmax.xlane.f32.xlu0 %v2650
  %v2652 = vpop.xlane.xlu0 %2651
  %v2653 = vsel %vm375, %v2647, -inf
  %2654 = vmax.xlane.f32.xlu0 %v2653
  %v2655 = vpop.xlane.xlu0 %2654
  %v2656 = vsel %vm375, %v2648, -inf
  %2657 = vmax.xlane.f32.xlu0 %v2656
  %v2658 = vpop.xlane.xlu0 %2657
  %v2659 = vsel %vm375, %v2649, -inf
  %2660 = vmax.xlane.f32.xlu0 %v2659
  %v2661 = vpop.xlane.xlu0 %2660
  %v2662 = vsel %vm388, %v2646, -inf
  %2663 = vmax.xlane.f32.xlu0 %v2662
  %v2664 = vpop.xlane.xlu0 %2663
  %v2665 = vsel %vm388, %v2647, -inf
  %2666 = vmax.xlane.f32.xlu0 %v2665
  %v2667 = vpop.xlane.xlu0 %2666
  %v2668 = vsel %vm388, %v2648, -inf
  %2669 = vmax.xlane.f32.xlu0 %v2668
  %v2670 = vpop.xlane.xlu0 %2669
  %v2671 = vsel %vm388, %v2649, -inf
  %2672 = vmax.xlane.f32.xlu0 %v2671
  %v2673 = vpop.xlane.xlu0 %2672
  %v2674 = vsel %vm401, %v2646, -inf
  %2675 = vmax.xlane.f32.xlu0 %v2674
  %v2676 = vpop.xlane.xlu0 %2675
  %v2677 = vsel %vm401, %v2647, -inf
  %2678 = vmax.xlane.f32.xlu0 %v2677
  %v2679 = vpop.xlane.xlu0 %2678
  %v2680 = vsel %vm401, %v2648, -inf
  %2681 = vmax.xlane.f32.xlu0 %v2680
  %v2682 = vpop.xlane.xlu0 %2681
  %v2683 = vsel %vm401, %v2649, -inf
  %2684 = vmax.xlane.f32.xlu0 %v2683
  %v2685 = vpop.xlane.xlu0 %2684
  %v2686 = vsel %vm414, %v2646, -inf
  %2687 = vmax.xlane.f32.xlu0 %v2686
  %v2688 = vpop.xlane.xlu0 %2687
  %v2689 = vsel %vm414, %v2647, -inf
  %2690 = vmax.xlane.f32.xlu0 %v2689
  %v2691 = vpop.xlane.xlu0 %2690
  %v2692 = vsel %vm414, %v2648, -inf
  %2693 = vmax.xlane.f32.xlu0 %v2692
  %v2694 = vpop.xlane.xlu0 %2693
  %v2695 = vsel %vm414, %v2649, -inf
  %2696 = vmax.xlane.f32.xlu0 %v2695
  %v2697 = vpop.xlane.xlu0 %2696
  %v2698 = vsel %vm375, %v2652, %v2664
  %v2699 = vsel %vm375, %v2655, %v2667
  %v2700 = vsel %vm375, %v2658, %v2670
  %v2701 = vsel %vm375, %v2661, %v2673
  %v2702 = vsel %vm431, %v2698, %v2676
  %v2703 = vsel %vm431, %v2699, %v2679
  %v2704 = vsel %vm431, %v2700, %v2682
  %v2705 = vsel %vm431, %v2701, %v2685
  %v2706 = vsel %vm436, %v2702, %v2688
  %v2707 = vsel %vm436, %v2703, %v2691
  %v2708 = vsel %vm436, %v2704, %v2694
  %v2709 = vsel %vm436, %v2705, %v2697
  %v2710 = vsub.f32 %v2646, %v2706
  %v2711 = vsub.f32 %v2647, %v2707
  %v2712 = vsub.f32 %v2648, %v2708
  %v2713 = vsub.f32 %v2649, %v2709
  %v2714 = vmul.f32 %v2710, 1.442695
  %v2715 = vpow.pop %v2714
  %v2716 = vmul.f32 %v2711, 1.442695
  %v2717 = vpow.pop %v2716
  %v2718 = vmul.f32 %v2712, 1.442695
  %v2719 = vpow.pop %v2718
  %v2720 = vmul.f32 %v2713, 1.442695
  %v2721 = vpow.pop %v2720
  %v2722 = vmul.f32 %v2715, %v99
  %v2723 = vmul.f32 %v2717, %v100
  %v2724 = vmul.f32 %v2719, %v101
  %v2725 = vmul.f32 %v2721, %v102
  %2726 = vmatprep.subr.mxu0 0.0
  %2727 = vmatpush1.msra.mxu0 %v107
  %2728 = vmatprep.subr.mxu0 0.0
  %2729 = vmatpush1.msra.mxu0 %v108
  %2730 = vmatprep.subr.mxu0 0.0
  %2731 = vmatpush1.msra.mxu0 %v109
  %2732 = vmatprep.subr.mxu0 0.0
  %2733 = vmatpush1.msra.mxu0 %v110
  %2734 = vmatprep.subr.mxu0 0.0
  %2735 = vmatpush1.msra.mxu0 %v111
  %2736 = vmatprep.subr.mxu0 0.0
  %2737 = vmatpush1.msra.mxu0 %v112
  %2738 = vmatprep.subr.mxu0 0.0
  %2739 = vmatpush1.msra.mxu0 %v113
  %2740 = vmatprep.subr.mxu0 0.0
  %2741 = vmatpush1.msra.mxu0 %v114
  %2742 = vmatprep.subr.mxu0 0.0
  %2743 = vmatpush1.msra.mxu0 %v115
  %2744 = vmatprep.subr.mxu0 0.0
  %2745 = vmatpush1.msra.mxu0 %v116
  %2746 = vmatprep.subr.mxu0 0.0
  %2747 = vmatpush1.msra.mxu0 %v117
  %2748 = vmatprep.subr.mxu0 0.0
  %2749 = vmatpush1.msra.mxu0 %v118
  %2750 = vmatprep.subr.mxu0 0.0
  %2751 = vmatpush1.msra.mxu0 %v119
  %2752 = vmatprep.subr.mxu0 0.0
  %2753 = vmatpush1.msra.mxu0 %v120
  %2754 = vmatprep.subr.mxu0 0.0
  %2755 = vmatpush1.msra.mxu0 %v121
  %2756 = vmatprep.subr.mxu0 0.0
  %2757 = vmatpush1.msra.mxu0 %v122
  %2758 = vmatprep.subr.mxu0 0.0
  %2759 = vmatpush1.msra.mxu0 0.0
  %2760 = vmatprep.subr.mxu0 0.0
  %2761 = vmatpush1.msra.mxu0 0.0
  %2762 = vmatprep.subr.mxu0 0.0
  %2763 = vmatpush1.msra.mxu0 0.0
  %2764 = vmatprep.subr.mxu0 0.0
  %2765 = vmatpush1.msra.mxu0 0.0
  %2766 = vmatprep.subr.mxu0 0.0
  %2767 = vmatpush1.msra.mxu0 0.0
  %2768 = vmatprep.subr.mxu0 0.0
  %2769 = vmatpush1.msra.mxu0 0.0
  %2770 = vmatprep.subr.mxu0 0.0
  %2771 = vmatpush1.msra.mxu0 0.0
  %2772 = vmatprep.subr.mxu0 0.0
  %2773 = vmatpush1.msra.mxu0 0.0
  %2774 = vmatprep.subr.mxu0 0.0
  %2775 = vmatpush1.msra.mxu0 0.0
  %2776 = vmatprep.subr.mxu0 0.0
  %2777 = vmatpush1.msra.mxu0 0.0
  %2778 = vmatprep.subr.mxu0 0.0
  %2779 = vmatpush1.msra.mxu0 0.0
  %2780 = vmatprep.subr.mxu0 0.0
  %2781 = vmatpush1.msra.mxu0 0.0
  %2782 = vmatprep.subr.mxu0 0.0
  %2783 = vmatpush1.msra.mxu0 0.0
  %2784 = vmatprep.subr.mxu0 0.0
  %2785 = vmatpush1.msra.mxu0 0.0
  %2786 = vmatprep.subr.mxu0 0.0
  %2787 = vmatpush1.msra.mxu0 0.0
  %2788 = vmatprep.subr.mxu0 0.0
  %2789 = vmatpush1.msra.mxu0 0.0
  %2790 = vmatprep.mubr.f32.mxu0 0.0
  %2791 = vmatmul.mubr.f32.gmra.mrb[0].mxu0 %v2722
  %v2792 = vpop.f32.mrb[0].mxu0
  %v2793 = vadd.f32 1e-16, %v2792
  %v2794 = vpop.f32.mrb[0].mxu0
  %2795 = vmatprep.mubr.f32.mxu0 0.0
  %2796 = vmatmul.mubr.f32.gmra.mrb[0].mxu0 %v2723
  %v2797 = vpop.f32.mrb[0].mxu0
  %v2798 = vadd.f32 1e-16, %v2797
  %v2799 = vpop.f32.mrb[0].mxu0
  %2800 = vmatprep.mubr.f32.mxu0 0.0
  %2801 = vmatmul.mubr.f32.gmra.mrb[0].mxu0 %v2724
  %v2802 = vpop.f32.mrb[0].mxu0
  %v2803 = vadd.f32 1e-16, %v2802
  %v2804 = vpop.f32.mrb[0].mxu0
  %2805 = vmatprep.mubr.f32.mxu0 0.0
  %2806 = vmatmul.mubr.f32.gmra.mrb[0].mxu0 %v2725
  %v2807 = vpop.f32.mrb[0].mxu0
  %v2808 = vadd.f32 1e-16, %v2807
  %v2809 = vpop.f32.mrb[0].mxu0
  %2810 = vdwg.mxu0
  %v2811 = vrcp.pop %v2793
  %v2812 = vrcp.pop %v2798
  %v2813 = vrcp.pop %v2803
  %v2814 = vrcp.pop %v2808
  %v2815 = vmul.f32 %v2722, %v2811
  %v2816 = vmul.f32 %v2723, %v2812
  %v2817 = vmul.f32 %v2724, %v2813
  %v2818 = vmul.f32 %v2725, %v2814
  %v2819 = vmul.f32 %v2373, %v123
  %v2820 = vmul.f32 %v2379, %v124
  %v2821 = vmul.f32 %v2385, %v125
  %v2822 = vmul.f32 %v2391, %v126
  %v2823 = vmul.f32 %v2373, %v127
  %v2824 = vmul.f32 %v2379, %v128
  %v2825 = vmul.f32 %v2385, %v129
  %v2826 = vmul.f32 %v2391, %v130
  %v2827 = vmul.f32 %v2373, %v131
  %v2828 = vmul.f32 %v2379, %v132
  %v2829 = vmul.f32 %v2385, %v133
  %v2830 = vmul.f32 %v2391, %v134
  %v2831 = vmul.f32 %v2373, %v135
  %v2832 = vmul.f32 %v2379, %v136
  %v2833 = vmul.f32 %v2385, %v137
  %v2834 = vmul.f32 %v2391, %v138
  %2839 = vrot.lane.b32.xlu0 %v2373, 64
  %v2840 = vpop.permute.xlu0 %2839
  %2841 = vrot.lane.b32.xlu0 %v2379, 64
  %v2842 = vpop.permute.xlu0 %2841
  %2843 = vrot.lane.b32.xlu0 %v2385, 64
  %v2844 = vpop.permute.xlu0 %2843
  %2845 = vrot.lane.b32.xlu0 %v2391, 64
  %v2846 = vpop.permute.xlu0 %2845
  %2851 = vmatprep.subr.mxu0 0.0
  %2852 = vmatpush1.msra.mxu0 %v2819
  %2853 = vmatprep.subr.mxu0 0.0
  %2854 = vmatpush1.msra.mxu0 %v2820
  %2855 = vmatprep.subr.mxu0 0.0
  %2856 = vmatpush1.msra.mxu0 %v2821
  %2857 = vmatprep.subr.mxu0 0.0
  %2858 = vmatpush1.msra.mxu0 %v2822
  %2859 = vmatprep.subr.mxu0 0.0
  %2860 = vmatpush1.msra.mxu0 %v2823
  %2861 = vmatprep.subr.mxu0 0.0
  %2862 = vmatpush1.msra.mxu0 %v2824
  %2863 = vmatprep.subr.mxu0 0.0
  %2864 = vmatpush1.msra.mxu0 %v2825
  %2865 = vmatprep.subr.mxu0 0.0
  %2866 = vmatpush1.msra.mxu0 %v2826
  %2867 = vmatprep.subr.mxu0 0.0
  %2868 = vmatpush1.msra.mxu0 %v2827
  %2869 = vmatprep.subr.mxu0 0.0
  %2870 = vmatpush1.msra.mxu0 %v2828
  %2871 = vmatprep.subr.mxu0 0.0
  %2872 = vmatpush1.msra.mxu0 %v2829
  %2873 = vmatprep.subr.mxu0 0.0
  %2874 = vmatpush1.msra.mxu0 %v2830
  %2875 = vmatprep.subr.mxu0 0.0
  %2876 = vmatpush1.msra.mxu0 %v2831
  %2877 = vmatprep.subr.mxu0 0.0
  %2878 = vmatpush1.msra.mxu0 %v2832
  %2879 = vmatprep.subr.mxu0 0.0
  %2880 = vmatpush1.msra.mxu0 %v2833
  %2881 = vmatprep.subr.mxu0 0.0
  %2882 = vmatpush1.msra.mxu0 %v2834
  %2883 = vmatprep.subr.mxu0 0.0
  %2884 = vmatpush1.msra.mxu0 0.0
  %2885 = vmatprep.subr.mxu0 0.0
  %2886 = vmatpush1.msra.mxu0 0.0
  %2887 = vmatprep.subr.mxu0 0.0
  %2888 = vmatpush1.msra.mxu0 0.0
  %2889 = vmatprep.subr.mxu0 0.0
  %2890 = vmatpush1.msra.mxu0 0.0
  %2891 = vmatprep.subr.mxu0 0.0
  %2892 = vmatpush1.msra.mxu0 0.0
  %2893 = vmatprep.subr.mxu0 0.0
  %2894 = vmatpush1.msra.mxu0 0.0
  %2895 = vmatprep.subr.mxu0 0.0
  %2896 = vmatpush1.msra.mxu0 0.0
  %2897 = vmatprep.subr.mxu0 0.0
  %2898 = vmatpush1.msra.mxu0 0.0
  %2899 = vmatprep.subr.mxu0 0.0
  %2900 = vmatpush1.msra.mxu0 0.0
  %2901 = vmatprep.subr.mxu0 0.0
  %2902 = vmatpush1.msra.mxu0 0.0
  %2903 = vmatprep.subr.mxu0 0.0
  %2904 = vmatpush1.msra.mxu0 0.0
  %2905 = vmatprep.subr.mxu0 0.0
  %2906 = vmatpush1.msra.mxu0 0.0
  %2907 = vmatprep.subr.mxu0 0.0
  %2908 = vmatpush1.msra.mxu0 0.0
  %2909 = vmatprep.subr.mxu0 0.0
  %2910 = vmatpush1.msra.mxu0 0.0
  %2911 = vmatprep.subr.mxu0 0.0
  %2912 = vmatpush1.msra.mxu0 0.0
  %2913 = vmatprep.subr.mxu0 0.0
  %2914 = vmatpush1.msra.mxu0 0.0
  %2915 = vmatprep.mubr.f32.mxu0 0.0
  %2916 = vmatmul.mubr.f32.gmra.mrb[0].mxu0 %v2815
  %v2917 = vpop.f32.mrb[0].mxu0
  %v2918 = vadd.f32 %v2840, %v2917
  %v2919 = vpop.f32.mrb[0].mxu0
  %2920 = vmatprep.mubr.f32.mxu0 0.0
  %2921 = vmatmul.mubr.f32.gmra.mrb[0].mxu0 %v2816
  %v2922 = vpop.f32.mrb[0].mxu0
  %v2923 = vadd.f32 %v2842, %v2922
  %v2924 = vpop.f32.mrb[0].mxu0
  %2925 = vmatprep.mubr.f32.mxu0 0.0
  %2926 = vmatmul.mubr.f32.gmra.mrb[0].mxu0 %v2817
  %v2927 = vpop.f32.mrb[0].mxu0
  %v2928 = vadd.f32 %v2844, %v2927
  %v2929 = vpop.f32.mrb[0].mxu0
  %2930 = vmatprep.mubr.f32.mxu0 0.0
  %2931 = vmatmul.mubr.f32.gmra.mrb[0].mxu0 %v2818
  %v2932 = vpop.f32.mrb[0].mxu0
  %v2933 = vadd.f32 %v2846, %v2932
  %v2934 = vpop.f32.mrb[0].mxu0
  %2935 = vdwg.mxu0
  %v2936 = vmul.f32 %v2918, 0.5
  %v2937 = vmul.f32 %v2923, 0.5
  %v2938 = vmul.f32 %v2928, 0.5
  %v2939 = vmul.f32 %v2933, 0.5
  %v2940 = vmul.f32 %v2918, 0.044715
  %v2941 = vmul.f32 %v2923, 0.044715
  %v2942 = vmul.f32 %v2928, 0.044715
  %v2943 = vmul.f32 %v2933, 0.044715
  %v2944 = vmul.f32 %v2940, %v2918
  %v2945 = vmul.f32 %v2941, %v2923
  %v2946 = vmul.f32 %v2942, %v2928
  %v2947 = vmul.f32 %v2943, %v2933
  %v2948 = vmul.f32 %v2944, %v2918
  %v2949 = vmul.f32 %v2945, %v2923
  %v2950 = vmul.f32 %v2946, %v2928
  %v2951 = vmul.f32 %v2947, %v2933
  %v2952 = vadd.f32 %v2918, %v2948
  %v2953 = vadd.f32 %v2923, %v2949
  %v2954 = vadd.f32 %v2928, %v2950
  %v2955 = vadd.f32 %v2933, %v2951
  %v2956 = vmul.f32 %v2952, 0.7978846
  %v2957 = vmul.f32 %v2953, 0.7978846
  %v2958 = vmul.f32 %v2954, 0.7978846
  %v2959 = vmul.f32 %v2955, 0.7978846
  %v2960 = vtanh.pop %v2956
  %v2961 = vtanh.pop %v2957
  %v2962 = vtanh.pop %v2958
  %v2963 = vtanh.pop %v2959
  %v2964 = vadd.f32 %v2960, 1.0
  %v2965 = vadd.f32 %v2961, 1.0
  %v2966 = vadd.f32 %v2962, 1.0
  %v2967 = vadd.f32 %v2963, 1.0
  %v2968 = vmul.f32 %v2936, %v2964
  %v2969 = vmul.f32 %v2937, %v2965
  %v2970 = vmul.f32 %v2938, %v2966
  %v2971 = vmul.f32 %v2939, %v2967
  %v2972 = vld [vmem:[%s19] sm:$0xff]
  %v2973 = vld [vmem:[%s19 + $0x8] sm:$0xff]
  %v2974 = vld [vmem:[%s19 + $0x10] sm:$0xff]
  %v2975 = vld [vmem:[%s19 + $0x18] sm:$0xff]
  %v2976 = vld [vmem:[%s19 + $0x20] sm:$0xff]
  %v2977 = vld [vmem:[%s19 + $0x28] sm:$0xff]
  %v2978 = vld [vmem:[%s19 + $0x30] sm:$0xff]
  %v2979 = vld [vmem:[%s19 + $0x38] sm:$0xff]
  %v2980 = vld [vmem:[%s20] sm:$0x1]
  %v2982 = vlaneseq
  %v2983 = vshrl.u32 %v2982, 7
  %v2984 = vsub.s32 0, %v2983
  %v2985 = vrot.slane %v2980, %v2984
  %v2988 = vsel %vm431, %v2968, 0
  %v2991 = vsel %vm431, %v2969, 0
  %v2994 = vsel %vm431, %v2970, 0
  %v2997 = vsel %vm431, %v2971, 0
  %2999 = vmatprep.subr.mxu0 0.0
  %3000 = vmatpush1.msra.mxu0 %v2972
  %3001 = vmatprep.subr.mxu0 0.0
  %3002 = vmatpush1.msra.mxu0 %v2973
  %3003 = vmatprep.subr.mxu0 0.0
  %3004 = vmatpush1.msra.mxu0 %v2974
  %3005 = vmatprep.subr.mxu0 0.0
  %3006 = vmatpush1.msra.mxu0 %v2975
  %3007 = vmatprep.subr.mxu0 0.0
  %3008 = vmatpush1.msra.mxu0 %v2976
  %3009 = vmatprep.subr.mxu0 0.0
  %3010 = vmatpush1.msra.mxu0 %v2977
  %3011 = vmatprep.subr.mxu0 0.0
  %3012 = vmatpush1.msra.mxu0 %v2978
  %3013 = vmatprep.subr.mxu0 0.0
  %3014 = vmatpush1.msra.mxu0 %v2979
  %3015 = vmatprep.subr.mxu0 0.0
  %3016 = vmatpush1.msra.mxu0 0.0
  %3017 = vmatprep.subr.mxu0 0.0
  %3018 = vmatpush1.msra.mxu0 0.0
  %3019 = vmatprep.subr.mxu0 0.0
  %3020 = vmatpush1.msra.mxu0 0.0
  %3021 = vmatprep.subr.mxu0 0.0
  %3022 = vmatpush1.msra.mxu0 0.0
  %3023 = vmatprep.subr.mxu0 0.0
  %3024 = vmatpush1.msra.mxu0 0.0
  %3025 = vmatprep.subr.mxu0 0.0
  %3026 = vmatpush1.msra.mxu0 0.0
  %3027 = vmatprep.subr.mxu0 0.0
  %3028 = vmatpush1.msra.mxu0 0.0
  %3029 = vmatprep.subr.mxu0 0.0
  %3030 = vmatpush1.msra.mxu0 0.0
  %3031 = vmatprep.subr.mxu0 0.0
  %3032 = vmatpush1.msra.mxu0 0.0
  %3033 = vmatprep.subr.mxu0 0.0
  %3034 = vmatpush1.msra.mxu0 0.0
  %3035 = vmatprep.subr.mxu0 0.0
  %3036 = vmatpush1.msra.mxu0 0.0
  %3037 = vmatprep.subr.mxu0 0.0
  %3038 = vmatpush1.msra.mxu0 0.0
  %3039 = vmatprep.subr.mxu0 0.0
  %3040 = vmatpush1.msra.mxu0 0.0
  %3041 = vmatprep.subr.mxu0 0.0
  %3042 = vmatpush1.msra.mxu0 0.0
  %3043 = vmatprep.subr.mxu0 0.0
  %3044 = vmatpush1.msra.mxu0 0.0
  %3045 = vmatprep.subr.mxu0 0.0
  %3046 = vmatpush1.msra.mxu0 0.0
  %3047 = vmatprep.subr.mxu0 0.0
  %3048 = vmatpush1.msra.mxu0 0.0
  %3049 = vmatprep.subr.mxu0 0.0
  %3050 = vmatpush1.msra.mxu0 0.0
  %3051 = vmatprep.subr.mxu0 0.0
  %3052 = vmatpush1.msra.mxu0 0.0
  %3053 = vmatprep.subr.mxu0 0.0
  %3054 = vmatpush1.msra.mxu0 0.0
  %3055 = vmatprep.subr.mxu0 0.0
  %3056 = vmatpush1.msra.mxu0 0.0
  %3057 = vmatprep.subr.mxu0 0.0
  %3058 = vmatpush1.msra.mxu0 0.0
  %3059 = vmatprep.subr.mxu0 0.0
  %3060 = vmatpush1.msra.mxu0 0.0
  %3061 = vmatprep.subr.mxu0 0.0
  %3062 = vmatpush1.msra.mxu0 0.0
  %3063 = vmatprep.mubr.f32.mxu0 0.0
  %3064 = vmatmul.mubr.f32.gmra.mrb[0].mxu0 %v2988
  %v3065 = vpop.f32.mrb[0].mxu0
  %v3066 = vadd.f32 %v2985, %v3065
  %v3067 = vpop.f32.mrb[0].mxu0
  %3068 = vmatprep.mubr.f32.mxu0 0.0
  %3069 = vmatmul.mubr.f32.gmra.mrb[0].mxu0 %v2991
  %v3070 = vpop.f32.mrb[0].mxu0
  %v3071 = vadd.f32 %v2985, %v3070
  %v3072 = vpop.f32.mrb[0].mxu0
  %3073 = vmatprep.mubr.f32.mxu0 0.0
  %3074 = vmatmul.mubr.f32.gmra.mrb[0].mxu0 %v2994
  %v3075 = vpop.f32.mrb[0].mxu0
  %v3076 = vadd.f32 %v2985, %v3075
  %v3077 = vpop.f32.mrb[0].mxu0
  %3078 = vmatprep.mubr.f32.mxu0 0.0
  %3079 = vmatmul.mubr.f32.gmra.mrb[0].mxu0 %v2997
  %v3080 = vpop.f32.mrb[0].mxu0
  %v3081 = vadd.f32 %v2985, %v3080
  %v3082 = vpop.f32.mrb[0].mxu0
  %3083 = vdwg.mxu0
  %3088 = vrot.lane.b32.xlu0 %v3066, 112
  %v3089 = vpop.permute.xlu0 %3088
  %3090 = vrot.lane.b32.xlu0 %v3071, 112
  %v3091 = vpop.permute.xlu0 %3090
  %3092 = vrot.lane.b32.xlu0 %v3076, 112
  %v3093 = vpop.permute.xlu0 %3092
  %3094 = vrot.lane.b32.xlu0 %v3081, 112
  %v3095 = vpop.permute.xlu0 %3094
  %vm3096 = vcmask 130048
  %v3097 = vsel %vm3096, %v3066, 0
  %v3099 = vsel %vm3096, %v3071, 0
  %v3101 = vsel %vm3096, %v3076, 0
  %v3103 = vsel %vm3096, %v3081, 0
  %v3105 = vsel %vm3096, %v3089, 0
  %v3107 = vsel %vm3096, %v3091, 0
  %v3109 = vsel %vm3096, %v3093, 0
  %v3111 = vsel %vm3096, %v3095, 0
  %3113 = vmatprep.subr.mxu0 0.0
  %3114 = vmatpush1.xpose.msra.mxu0 %v3105
  %3115 = vmatprep.subr.mxu0 0.0
  %3116 = vmatpush1.xpose.msra.mxu0 %v3107
  %3117 = vmatprep.subr.mxu0 0.0
  %3118 = vmatpush1.xpose.msra.mxu0 %v3109
  %3119 = vmatprep.subr.mxu0 0.0
  %3120 = vmatpush1.xpose.msra.mxu0 %v3111
  %3121 = vmatprep.subr.mxu0 0.0
  %3122 = vmatpush1.xpose.msra.mxu0 0.0
  %3123 = vmatprep.subr.mxu0 0.0
  %3124 = vmatpush1.xpose.msra.mxu0 0.0
  %3125 = vmatprep.subr.mxu0 0.0
  %3126 = vmatpush1.xpose.msra.mxu0 0.0
  %3127 = vmatprep.subr.mxu0 0.0
  %3128 = vmatpush1.xpose.msra.mxu0 0.0
  %3129 = vmatprep.subr.mxu0 0.0
  %3130 = vmatpush1.xpose.msra.mxu0 0.0
  %3131 = vmatprep.subr.mxu0 0.0
  %3132 = vmatpush1.xpose.msra.mxu0 0.0
  %3133 = vmatprep.subr.mxu0 0.0
  %3134 = vmatpush1.xpose.msra.mxu0 0.0
  %3135 = vmatprep.subr.mxu0 0.0
  %3136 = vmatpush1.xpose.msra.mxu0 0.0
  %3137 = vmatprep.subr.mxu0 0.0
  %3138 = vmatpush1.xpose.msra.mxu0 0.0
  %3139 = vmatprep.subr.mxu0 0.0
  %3140 = vmatpush1.xpose.msra.mxu0 0.0
  %3141 = vmatprep.subr.mxu0 0.0
  %3142 = vmatpush1.xpose.msra.mxu0 0.0
  %3143 = vmatprep.subr.mxu0 0.0
  %3144 = vmatpush1.xpose.msra.mxu0 0.0
  %3145 = vmatprep.subr.mxu0 0.0
  %3146 = vmatpush1.xpose.msra.mxu0 0.0
  %3147 = vmatprep.subr.mxu0 0.0
  %3148 = vmatpush1.xpose.msra.mxu0 0.0
  %3149 = vmatprep.subr.mxu0 0.0
  %3150 = vmatpush1.xpose.msra.mxu0 0.0
  %3151 = vmatprep.subr.mxu0 0.0
  %3152 = vmatpush1.xpose.msra.mxu0 0.0
  %3153 = vmatprep.subr.mxu0 0.0
  %3154 = vmatpush1.xpose.msra.mxu0 0.0
  %3155 = vmatprep.subr.mxu0 0.0
  %3156 = vmatpush1.xpose.msra.mxu0 0.0
  %3157 = vmatprep.subr.mxu0 0.0
  %3158 = vmatpush1.xpose.msra.mxu0 0.0
  %3159 = vmatprep.subr.mxu0 0.0
  %3160 = vmatpush1.xpose.msra.mxu0 0.0
  %3161 = vmatprep.subr.mxu0 0.0
  %3162 = vmatpush1.xpose.msra.mxu0 0.0
  %3163 = vmatprep.subr.mxu0 0.0
  %3164 = vmatpush1.xpose.msra.mxu0 0.0
  %3165 = vmatprep.subr.mxu0 0.0
  %3166 = vmatpush1.xpose.msra.mxu0 0.0
  %3167 = vmatprep.subr.mxu0 0.0
  %3168 = vmatpush1.xpose.msra.mxu0 0.0
  %3169 = vmatprep.subr.mxu0 0.0
  %3170 = vmatpush1.xpose.msra.mxu0 0.0
  %3171 = vmatprep.subr.mxu0 0.0
  %3172 = vmatpush1.xpose.msra.mxu0 0.0
  %3173 = vmatprep.subr.mxu0 0.0
  %3174 = vmatpush1.xpose.msra.mxu0 0.0
  %3175 = vmatprep.subr.mxu0 0.0
  %3176 = vmatpush1.xpose.msra.mxu0 0.0
  %3177 = vmatprep.mubr.f32.mxu0 0.0
  %3178 = vmatmul.mubr.f32.gmra.mrb[0].mxu0 %v3097
  %v3179 = vpop.f32.mrb[0].mxu0
  %v3180 = vadd.f32 0.0, %v3179
  %v3181 = vpop.f32.mrb[0].mxu0
  %3182 = vmatprep.mubr.f32.mxu0 0.0
  %3183 = vmatmul.mubr.f32.gmra.mrb[0].mxu0 %v3099
  %v3184 = vpop.f32.mrb[0].mxu0
  %v3185 = vadd.f32 0.0, %v3184
  %v3186 = vpop.f32.mrb[0].mxu0
  %3187 = vmatprep.mubr.f32.mxu0 0.0
  %3188 = vmatmul.mubr.f32.gmra.mrb[0].mxu0 %v3101
  %v3189 = vpop.f32.mrb[0].mxu0
  %v3190 = vadd.f32 0.0, %v3189
  %v3191 = vpop.f32.mrb[0].mxu0
  %3192 = vmatprep.mubr.f32.mxu0 0.0
  %3193 = vmatmul.mubr.f32.gmra.mrb[0].mxu0 %v3103
  %v3194 = vpop.f32.mrb[0].mxu0
  %v3195 = vadd.f32 0.0, %v3194
  %v3196 = vpop.f32.mrb[0].mxu0
  %3197 = vdwg.mxu0
  %vm3198 = vcmp.gt.f32.partialorder %v91, 0.0
  %vm3199 = vcmp.gt.f32.partialorder %v92, 0.0
  %vm3200 = vcmp.gt.f32.partialorder %v93, 0.0
  %vm3201 = vcmp.gt.f32.partialorder %v94, 0.0
  %v3202 = vsel %vm3198, %v3180, -1e+30
  %v3203 = vsel %vm3199, %v3185, -1e+30
  %v3204 = vsel %vm3200, %v3190, -1e+30
  %v3205 = vsel %vm3201, %v3195, -1e+30
  %v3206 = vsel %vm375, %v3202, -inf
  %3207 = vmax.xlane.f32.xlu0 %v3206
  %v3208 = vpop.xlane.xlu0 %3207
  %v3209 = vsel %vm375, %v3203, -inf
  %3210 = vmax.xlane.f32.xlu0 %v3209
  %v3211 = vpop.xlane.xlu0 %3210
  %v3212 = vsel %vm375, %v3204, -inf
  %3213 = vmax.xlane.f32.xlu0 %v3212
  %v3214 = vpop.xlane.xlu0 %3213
  %v3215 = vsel %vm375, %v3205, -inf
  %3216 = vmax.xlane.f32.xlu0 %v3215
  %v3217 = vpop.xlane.xlu0 %3216
  %v3218 = vsub.f32 %v3202, %v3208
  %v3219 = vsub.f32 %v3203, %v3211
  %v3220 = vsub.f32 %v3204, %v3214
  %v3221 = vsub.f32 %v3205, %v3217
  %v3222 = vmul.f32 %v3218, 1.442695
  %v3223 = vpow.pop %v3222
  %v3224 = vmul.f32 %v3219, 1.442695
  %v3225 = vpow.pop %v3224
  %v3226 = vmul.f32 %v3220, 1.442695
  %v3227 = vpow.pop %v3226
  %v3228 = vmul.f32 %v3221, 1.442695
  %v3229 = vpow.pop %v3228
  %v3230 = vmul.f32 %v3223, %v91
  %v3231 = vmul.f32 %v3225, %v92
  %v3232 = vmul.f32 %v3227, %v93
  %v3233 = vmul.f32 %v3229, %v94
  %v3234 = vsel %vm375, %v3230, 0.0
  %3235 = vadd.xlane.f32.xlu0 %v3234
  %v3236 = vpop.xlane.xlu0 %3235
  %v3237 = vsel %vm375, %v3231, 0.0
  %3238 = vadd.xlane.f32.xlu0 %v3237
  %v3239 = vpop.xlane.xlu0 %3238
  %v3240 = vsel %vm375, %v3232, 0.0
  %3241 = vadd.xlane.f32.xlu0 %v3240
  %v3242 = vpop.xlane.xlu0 %3241
  %v3243 = vsel %vm375, %v3233, 0.0
  %3244 = vadd.xlane.f32.xlu0 %v3243
  %v3245 = vpop.xlane.xlu0 %3244
  %v3246 = vadd.f32 %v3236, 1e-16
  %v3247 = vadd.f32 %v3239, 1e-16
  %v3248 = vadd.f32 %v3242, 1e-16
  %v3249 = vadd.f32 %v3245, 1e-16
  %v3250 = vrcp.pop %v3246
  %v3251 = vrcp.pop %v3247
  %v3252 = vrcp.pop %v3248
  %v3253 = vrcp.pop %v3249
  %v3254 = vmul.f32 %v3230, %v3250
  %v3255 = vmul.f32 %v3231, %v3251
  %v3256 = vmul.f32 %v3232, %v3252
  %v3257 = vmul.f32 %v3233, %v3253
  %3258 = vrot.lane.b32.xlu0 %v3066, 96
  %v3259 = vpop.permute.xlu0 %3258
  %3260 = vrot.lane.b32.xlu0 %v3071, 96
  %v3261 = vpop.permute.xlu0 %3260
  %3262 = vrot.lane.b32.xlu0 %v3076, 96
  %v3263 = vpop.permute.xlu0 %3262
  %3264 = vrot.lane.b32.xlu0 %v3081, 96
  %v3265 = vpop.permute.xlu0 %3264
  %3270 = vrot.lane.b32.xlu0 %v3066, 80
  %v3271 = vpop.permute.xlu0 %3270
  %3272 = vrot.lane.b32.xlu0 %v3071, 80
  %v3273 = vpop.permute.xlu0 %3272
  %3274 = vrot.lane.b32.xlu0 %v3076, 80
  %v3275 = vpop.permute.xlu0 %3274
  %3276 = vrot.lane.b32.xlu0 %v3081, 80
  %v3277 = vpop.permute.xlu0 %3276
  %v3283 = vsel %vm375, %v3254, 0
  %v3286 = vsel %vm375, %v3255, 0
  %v3289 = vsel %vm375, %v3256, 0
  %v3292 = vsel %vm375, %v3257, 0
  %3294 = vmatprep.subr.mxu0 0.0
  %3295 = vmatpush1.msra.mxu0 %v3259
  %3296 = vmatprep.subr.mxu0 0.0
  %3297 = vmatpush1.msra.mxu0 %v3261
  %3298 = vmatprep.subr.mxu0 0.0
  %3299 = vmatpush1.msra.mxu0 %v3263
  %3300 = vmatprep.subr.mxu0 0.0
  %3301 = vmatpush1.msra.mxu0 %v3265
  %3302 = vmatprep.subr.mxu0 0.0
  %3303 = vmatpush1.msra.mxu0 0.0
  %3304 = vmatprep.subr.mxu0 0.0
  %3305 = vmatpush1.msra.mxu0 0.0
  %3306 = vmatprep.subr.mxu0 0.0
  %3307 = vmatpush1.msra.mxu0 0.0
  %3308 = vmatprep.subr.mxu0 0.0
  %3309 = vmatpush1.msra.mxu0 0.0
  %3310 = vmatprep.subr.mxu0 0.0
  %3311 = vmatpush1.msra.mxu0 0.0
  %3312 = vmatprep.subr.mxu0 0.0
  %3313 = vmatpush1.msra.mxu0 0.0
  %3314 = vmatprep.subr.mxu0 0.0
  %3315 = vmatpush1.msra.mxu0 0.0
  %3316 = vmatprep.subr.mxu0 0.0
  %3317 = vmatpush1.msra.mxu0 0.0
  %3318 = vmatprep.subr.mxu0 0.0
  %3319 = vmatpush1.msra.mxu0 0.0
  %3320 = vmatprep.subr.mxu0 0.0
  %3321 = vmatpush1.msra.mxu0 0.0
  %3322 = vmatprep.subr.mxu0 0.0
  %3323 = vmatpush1.msra.mxu0 0.0
  %3324 = vmatprep.subr.mxu0 0.0
  %3325 = vmatpush1.msra.mxu0 0.0
  %3326 = vmatprep.subr.mxu0 0.0
  %3327 = vmatpush1.msra.mxu0 0.0
  %3328 = vmatprep.subr.mxu0 0.0
  %3329 = vmatpush1.msra.mxu0 0.0
  %3330 = vmatprep.subr.mxu0 0.0
  %3331 = vmatpush1.msra.mxu0 0.0
  %3332 = vmatprep.subr.mxu0 0.0
  %3333 = vmatpush1.msra.mxu0 0.0
  %3334 = vmatprep.subr.mxu0 0.0
  %3335 = vmatpush1.msra.mxu0 0.0
  %3336 = vmatprep.subr.mxu0 0.0
  %3337 = vmatpush1.msra.mxu0 0.0
  %3338 = vmatprep.subr.mxu0 0.0
  %3339 = vmatpush1.msra.mxu0 0.0
  %3340 = vmatprep.subr.mxu0 0.0
  %3341 = vmatpush1.msra.mxu0 0.0
  %3342 = vmatprep.subr.mxu0 0.0
  %3343 = vmatpush1.msra.mxu0 0.0
  %3344 = vmatprep.subr.mxu0 0.0
  %3345 = vmatpush1.msra.mxu0 0.0
  %3346 = vmatprep.subr.mxu0 0.0
  %3347 = vmatpush1.msra.mxu0 0.0
  %3348 = vmatprep.subr.mxu0 0.0
  %3349 = vmatpush1.msra.mxu0 0.0
  %3350 = vmatprep.subr.mxu0 0.0
  %3351 = vmatpush1.msra.mxu0 0.0
  %3352 = vmatprep.subr.mxu0 0.0
  %3353 = vmatpush1.msra.mxu0 0.0
  %3354 = vmatprep.subr.mxu0 0.0
  %3355 = vmatpush1.msra.mxu0 0.0
  %3356 = vmatprep.subr.mxu0 0.0
  %3357 = vmatpush1.msra.mxu0 0.0
  %3358 = vmatprep.mubr.f32.mxu0 0.0
  %3359 = vmatmul.mubr.f32.gmra.mrb[0].mxu0 %v3283
  %v3360 = vpop.f32.mrb[0].mxu0
  %v3361 = vadd.f32 %v3271, %v3360
  %v3362 = vpop.f32.mrb[0].mxu0
  %3363 = vmatprep.mubr.f32.mxu0 0.0
  %3364 = vmatmul.mubr.f32.gmra.mrb[0].mxu0 %v3286
  %v3365 = vpop.f32.mrb[0].mxu0
  %v3366 = vadd.f32 %v3273, %v3365
  %v3367 = vpop.f32.mrb[0].mxu0
  %3368 = vmatprep.mubr.f32.mxu0 0.0
  %3369 = vmatmul.mubr.f32.gmra.mrb[0].mxu0 %v3289
  %v3370 = vpop.f32.mrb[0].mxu0
  %v3371 = vadd.f32 %v3275, %v3370
  %v3372 = vpop.f32.mrb[0].mxu0
  %3373 = vmatprep.mubr.f32.mxu0 0.0
  %3374 = vmatmul.mubr.f32.gmra.mrb[0].mxu0 %v3292
  %v3375 = vpop.f32.mrb[0].mxu0
  %v3376 = vadd.f32 %v3277, %v3375
  %v3377 = vpop.f32.mrb[0].mxu0
  %3378 = vdwg.mxu0
  %v3379 = vld [vmem:[%s21] sm:$0xff]
  %v3380 = vld [vmem:[%s21 + $0x8] sm:$0xff]
  %v3381 = vld [vmem:[%s22] sm:$0xff]
  %v3382 = vld [vmem:[%s22 + $0x8] sm:$0xff]
  %v3384 = vsel %vm3096, %v3361, 0
  %v3387 = vsel %vm3096, %v3366, 0
  %v3390 = vsel %vm3096, %v3371, 0
  %v3393 = vsel %vm3096, %v3376, 0
  %3395 = vmatprep.subr.mxu0 0.0
  %3396 = vmatpush1.msra.mxu0 %v3381
  %3397 = vmatprep.subr.mxu0 0.0
  %3398 = vmatpush1.msra.mxu0 %v3382
  %3399 = vmatprep.subr.mxu0 0.0
  %3400 = vmatpush1.msra.mxu0 0.0
  %3401 = vmatprep.subr.mxu0 0.0
  %3402 = vmatpush1.msra.mxu0 0.0
  %3403 = vmatprep.subr.mxu0 0.0
  %3404 = vmatpush1.msra.mxu0 0.0
  %3405 = vmatprep.subr.mxu0 0.0
  %3406 = vmatpush1.msra.mxu0 0.0
  %3407 = vmatprep.subr.mxu0 0.0
  %3408 = vmatpush1.msra.mxu0 0.0
  %3409 = vmatprep.subr.mxu0 0.0
  %3410 = vmatpush1.msra.mxu0 0.0
  %3411 = vmatprep.subr.mxu0 0.0
  %3412 = vmatpush1.msra.mxu0 0.0
  %3413 = vmatprep.subr.mxu0 0.0
  %3414 = vmatpush1.msra.mxu0 0.0
  %3415 = vmatprep.subr.mxu0 0.0
  %3416 = vmatpush1.msra.mxu0 0.0
  %3417 = vmatprep.subr.mxu0 0.0
  %3418 = vmatpush1.msra.mxu0 0.0
  %3419 = vmatprep.subr.mxu0 0.0
  %3420 = vmatpush1.msra.mxu0 0.0
  %3421 = vmatprep.subr.mxu0 0.0
  %3422 = vmatpush1.msra.mxu0 0.0
  %3423 = vmatprep.subr.mxu0 0.0
  %3424 = vmatpush1.msra.mxu0 0.0
  %3425 = vmatprep.subr.mxu0 0.0
  %3426 = vmatpush1.msra.mxu0 0.0
  %3427 = vmatprep.subr.mxu0 0.0
  %3428 = vmatpush1.msra.mxu0 0.0
  %3429 = vmatprep.subr.mxu0 0.0
  %3430 = vmatpush1.msra.mxu0 0.0
  %3431 = vmatprep.subr.mxu0 0.0
  %3432 = vmatpush1.msra.mxu0 0.0
  %3433 = vmatprep.subr.mxu0 0.0
  %3434 = vmatpush1.msra.mxu0 0.0
  %3435 = vmatprep.subr.mxu0 0.0
  %3436 = vmatpush1.msra.mxu0 0.0
  %3437 = vmatprep.subr.mxu0 0.0
  %3438 = vmatpush1.msra.mxu0 0.0
  %3439 = vmatprep.subr.mxu0 0.0
  %3440 = vmatpush1.msra.mxu0 0.0
  %3441 = vmatprep.subr.mxu0 0.0
  %3442 = vmatpush1.msra.mxu0 0.0
  %3443 = vmatprep.subr.mxu0 0.0
  %3444 = vmatpush1.msra.mxu0 0.0
  %3445 = vmatprep.subr.mxu0 0.0
  %3446 = vmatpush1.msra.mxu0 0.0
  %3447 = vmatprep.subr.mxu0 0.0
  %3448 = vmatpush1.msra.mxu0 0.0
  %3449 = vmatprep.subr.mxu0 0.0
  %3450 = vmatpush1.msra.mxu0 0.0
  %3451 = vmatprep.subr.mxu0 0.0
  %3452 = vmatpush1.msra.mxu0 0.0
  %3453 = vmatprep.subr.mxu0 0.0
  %3454 = vmatpush1.msra.mxu0 0.0
  %3455 = vmatprep.subr.mxu0 0.0
  %3456 = vmatpush1.msra.mxu0 0.0
  %3457 = vmatprep.subr.mxu0 0.0
  %3458 = vmatpush1.msra.mxu0 0.0
  %3459 = vmatprep.mubr.f32.mxu0 0.0
  %3460 = vmatmul.mubr.f32.gmra.mrb[0].mxu0 %v3384
  %v3461 = vpop.f32.mrb[0].mxu0
  %v3462 = vadd.f32 0.0, %v3461
  %v3463 = vpop.f32.mrb[0].mxu0
  %3464 = vmatprep.mubr.f32.mxu0 0.0
  %3465 = vmatmul.mubr.f32.gmra.mrb[0].mxu0 %v3387
  %v3466 = vpop.f32.mrb[0].mxu0
  %v3467 = vadd.f32 0.0, %v3466
  %v3468 = vpop.f32.mrb[0].mxu0
  %3469 = vmatprep.mubr.f32.mxu0 0.0
  %3470 = vmatmul.mubr.f32.gmra.mrb[0].mxu0 %v3390
  %v3471 = vpop.f32.mrb[0].mxu0
  %v3472 = vadd.f32 0.0, %v3471
  %v3473 = vpop.f32.mrb[0].mxu0
  %3474 = vmatprep.mubr.f32.mxu0 0.0
  %3475 = vmatmul.mubr.f32.gmra.mrb[0].mxu0 %v3393
  %v3476 = vpop.f32.mrb[0].mxu0
  %v3477 = vadd.f32 0.0, %v3476
  %v3478 = vpop.f32.mrb[0].mxu0
  %3479 = vdwg.mxu0
  %v3481 = vsel %vm3096, %v1560, 0
  %v3484 = vsel %vm3096, %v1565, 0
  %v3487 = vsel %vm3096, %v1570, 0
  %v3490 = vsel %vm3096, %v1575, 0
  %3492 = vmatprep.subr.mxu0 0.0
  %3493 = vmatpush1.msra.mxu0 %v3379
  %3494 = vmatprep.subr.mxu0 0.0
  %3495 = vmatpush1.msra.mxu0 %v3380
  %3496 = vmatprep.subr.mxu0 0.0
  %3497 = vmatpush1.msra.mxu0 0.0
  %3498 = vmatprep.subr.mxu0 0.0
  %3499 = vmatpush1.msra.mxu0 0.0
  %3500 = vmatprep.subr.mxu0 0.0
  %3501 = vmatpush1.msra.mxu0 0.0
  %3502 = vmatprep.subr.mxu0 0.0
  %3503 = vmatpush1.msra.mxu0 0.0
  %3504 = vmatprep.subr.mxu0 0.0
  %3505 = vmatpush1.msra.mxu0 0.0
  %3506 = vmatprep.subr.mxu0 0.0
  %3507 = vmatpush1.msra.mxu0 0.0
  %3508 = vmatprep.subr.mxu0 0.0
  %3509 = vmatpush1.msra.mxu0 0.0
  %3510 = vmatprep.subr.mxu0 0.0
  %3511 = vmatpush1.msra.mxu0 0.0
  %3512 = vmatprep.subr.mxu0 0.0
  %3513 = vmatpush1.msra.mxu0 0.0
  %3514 = vmatprep.subr.mxu0 0.0
  %3515 = vmatpush1.msra.mxu0 0.0
  %3516 = vmatprep.subr.mxu0 0.0
  %3517 = vmatpush1.msra.mxu0 0.0
  %3518 = vmatprep.subr.mxu0 0.0
  %3519 = vmatpush1.msra.mxu0 0.0
  %3520 = vmatprep.subr.mxu0 0.0
  %3521 = vmatpush1.msra.mxu0 0.0
  %3522 = vmatprep.subr.mxu0 0.0
  %3523 = vmatpush1.msra.mxu0 0.0
  %3524 = vmatprep.subr.mxu0 0.0
  %3525 = vmatpush1.msra.mxu0 0.0
  %3526 = vmatprep.subr.mxu0 0.0
  %3527 = vmatpush1.msra.mxu0 0.0
  %3528 = vmatprep.subr.mxu0 0.0
  %3529 = vmatpush1.msra.mxu0 0.0
  %3530 = vmatprep.subr.mxu0 0.0
  %3531 = vmatpush1.msra.mxu0 0.0
  %3532 = vmatprep.subr.mxu0 0.0
  %3533 = vmatpush1.msra.mxu0 0.0
  %3534 = vmatprep.subr.mxu0 0.0
  %3535 = vmatpush1.msra.mxu0 0.0
  %3536 = vmatprep.subr.mxu0 0.0
  %3537 = vmatpush1.msra.mxu0 0.0
  %3538 = vmatprep.subr.mxu0 0.0
  %3539 = vmatpush1.msra.mxu0 0.0
  %3540 = vmatprep.subr.mxu0 0.0
  %3541 = vmatpush1.msra.mxu0 0.0
  %3542 = vmatprep.subr.mxu0 0.0
  %3543 = vmatpush1.msra.mxu0 0.0
  %3544 = vmatprep.subr.mxu0 0.0
  %3545 = vmatpush1.msra.mxu0 0.0
  %3546 = vmatprep.subr.mxu0 0.0
  %3547 = vmatpush1.msra.mxu0 0.0
  %3548 = vmatprep.subr.mxu0 0.0
  %3549 = vmatpush1.msra.mxu0 0.0
  %3550 = vmatprep.subr.mxu0 0.0
  %3551 = vmatpush1.msra.mxu0 0.0
  %3552 = vmatprep.subr.mxu0 0.0
  %3553 = vmatpush1.msra.mxu0 0.0
  %3554 = vmatprep.subr.mxu0 0.0
  %3555 = vmatpush1.msra.mxu0 0.0
  %3556 = vmatprep.mubr.f32.mxu0 0.0
  %3557 = vmatmul.mubr.f32.gmra.mrb[0].mxu0 %v3481
  %v3558 = vpop.f32.mrb[0].mxu0
  %v3559 = vadd.f32 %v3462, %v3558
  %v3560 = vpop.f32.mrb[0].mxu0
  %3561 = vmatprep.mubr.f32.mxu0 0.0
  %3562 = vmatmul.mubr.f32.gmra.mrb[0].mxu0 %v3484
  %v3563 = vpop.f32.mrb[0].mxu0
  %v3564 = vadd.f32 %v3467, %v3563
  %v3565 = vpop.f32.mrb[0].mxu0
  %3566 = vmatprep.mubr.f32.mxu0 0.0
  %3567 = vmatmul.mubr.f32.gmra.mrb[0].mxu0 %v3487
  %v3568 = vpop.f32.mrb[0].mxu0
  %v3569 = vadd.f32 %v3472, %v3568
  %v3570 = vpop.f32.mrb[0].mxu0
  %3571 = vmatprep.mubr.f32.mxu0 0.0
  %3572 = vmatmul.mubr.f32.gmra.mrb[0].mxu0 %v3490
  %v3573 = vpop.f32.mrb[0].mxu0
  %v3574 = vadd.f32 %v3477, %v3573
  %v3575 = vpop.f32.mrb[0].mxu0
  %3576 = vdwg.mxu0
  %v3577 = vld [vmem:[%s23] sm:$0x1]
  %v3579 = vlaneseq
  %v3580 = vshrl.u32 %v3579, 7
  %v3581 = vsub.s32 0, %v3580
  %v3582 = vrot.slane %v3577, %v3581
  %v3584 = vadd.f32 %v3559, %v3582
  %v3585 = vadd.f32 %v3564, %v3582
  %v3586 = vadd.f32 %v3569, %v3582
  %v3587 = vadd.f32 %v3574, %v3582
  %v3588 = vmax.f32 %v3584, 0.0
  %v3589 = vmax.f32 %v3585, 0.0
  %v3590 = vmax.f32 %v3586, 0.0
  %v3591 = vmax.f32 %v3587, 0.0
  %v3592 = vld [vmem:[%s24] sm:$0xff]
  %v3593 = vld [vmem:[%s24 + $0x8] sm:$0xff]
  %v3594 = vld [vmem:[%s25] sm:$0x1]
  %v3596 = vlaneseq
  %v3597 = vshrl.u32 %v3596, 7
  %v3598 = vsub.s32 0, %v3597
  %v3599 = vrot.slane %v3594, %v3598
  %v3602 = vsel %vm3096, %v3588, 0
  %v3605 = vsel %vm3096, %v3589, 0
  %v3608 = vsel %vm3096, %v3590, 0
  %v3611 = vsel %vm3096, %v3591, 0
  %3613 = vmatprep.subr.mxu0 0.0
  %3614 = vmatpush1.msra.mxu0 %v3592
  %3615 = vmatprep.subr.mxu0 0.0
  %3616 = vmatpush1.msra.mxu0 %v3593
  %3617 = vmatprep.subr.mxu0 0.0
  %3618 = vmatpush1.msra.mxu0 0.0
  %3619 = vmatprep.subr.mxu0 0.0
  %3620 = vmatpush1.msra.mxu0 0.0
  %3621 = vmatprep.subr.mxu0 0.0
  %3622 = vmatpush1.msra.mxu0 0.0
  %3623 = vmatprep.subr.mxu0 0.0
  %3624 = vmatpush1.msra.mxu0 0.0
  %3625 = vmatprep.subr.mxu0 0.0
  %3626 = vmatpush1.msra.mxu0 0.0
  %3627 = vmatprep.subr.mxu0 0.0
  %3628 = vmatpush1.msra.mxu0 0.0
  %3629 = vmatprep.subr.mxu0 0.0
  %3630 = vmatpush1.msra.mxu0 0.0
  %3631 = vmatprep.subr.mxu0 0.0
  %3632 = vmatpush1.msra.mxu0 0.0
  %3633 = vmatprep.subr.mxu0 0.0
  %3634 = vmatpush1.msra.mxu0 0.0
  %3635 = vmatprep.subr.mxu0 0.0
  %3636 = vmatpush1.msra.mxu0 0.0
  %3637 = vmatprep.subr.mxu0 0.0
  %3638 = vmatpush1.msra.mxu0 0.0
  %3639 = vmatprep.subr.mxu0 0.0
  %3640 = vmatpush1.msra.mxu0 0.0
  %3641 = vmatprep.subr.mxu0 0.0
  %3642 = vmatpush1.msra.mxu0 0.0
  %3643 = vmatprep.subr.mxu0 0.0
  %3644 = vmatpush1.msra.mxu0 0.0
  %3645 = vmatprep.subr.mxu0 0.0
  %3646 = vmatpush1.msra.mxu0 0.0
  %3647 = vmatprep.subr.mxu0 0.0
  %3648 = vmatpush1.msra.mxu0 0.0
  %3649 = vmatprep.subr.mxu0 0.0
  %3650 = vmatpush1.msra.mxu0 0.0
  %3651 = vmatprep.subr.mxu0 0.0
  %3652 = vmatpush1.msra.mxu0 0.0
  %3653 = vmatprep.subr.mxu0 0.0
  %3654 = vmatpush1.msra.mxu0 0.0
  %3655 = vmatprep.subr.mxu0 0.0
  %3656 = vmatpush1.msra.mxu0 0.0
  %3657 = vmatprep.subr.mxu0 0.0
  %3658 = vmatpush1.msra.mxu0 0.0
  %3659 = vmatprep.subr.mxu0 0.0
  %3660 = vmatpush1.msra.mxu0 0.0
  %3661 = vmatprep.subr.mxu0 0.0
  %3662 = vmatpush1.msra.mxu0 0.0
  %3663 = vmatprep.subr.mxu0 0.0
  %3664 = vmatpush1.msra.mxu0 0.0
  %3665 = vmatprep.subr.mxu0 0.0
  %3666 = vmatpush1.msra.mxu0 0.0
  %3667 = vmatprep.subr.mxu0 0.0
  %3668 = vmatpush1.msra.mxu0 0.0
  %3669 = vmatprep.subr.mxu0 0.0
  %3670 = vmatpush1.msra.mxu0 0.0
  %3671 = vmatprep.subr.mxu0 0.0
  %3672 = vmatpush1.msra.mxu0 0.0
  %3673 = vmatprep.subr.mxu0 0.0
  %3674 = vmatpush1.msra.mxu0 0.0
  %3675 = vmatprep.subr.mxu0 0.0
  %3676 = vmatpush1.msra.mxu0 0.0
  %3677 = vmatprep.mubr.f32.mxu0 0.0
  %3678 = vmatmul.mubr.f32.gmra.mrb[0].mxu0 %v3602
  %v3679 = vpop.f32.mrb[0].mxu0
  %v3680 = vadd.f32 %v3599, %v3679
  %v3681 = vpop.f32.mrb[0].mxu0
  %3682 = vmatprep.mubr.f32.mxu0 0.0
  %3683 = vmatmul.mubr.f32.gmra.mrb[0].mxu0 %v3605
  %v3684 = vpop.f32.mrb[0].mxu0
  %v3685 = vadd.f32 %v3599, %v3684
  %v3686 = vpop.f32.mrb[0].mxu0
  %3687 = vmatprep.mubr.f32.mxu0 0.0
  %3688 = vmatmul.mubr.f32.gmra.mrb[0].mxu0 %v3608
  %v3689 = vpop.f32.mrb[0].mxu0
  %v3690 = vadd.f32 %v3599, %v3689
  %v3691 = vpop.f32.mrb[0].mxu0
  %3692 = vmatprep.mubr.f32.mxu0 0.0
  %3693 = vmatmul.mubr.f32.gmra.mrb[0].mxu0 %v3611
  %v3694 = vpop.f32.mrb[0].mxu0
  %v3695 = vadd.f32 %v3599, %v3694
  %v3696 = vpop.f32.mrb[0].mxu0
  %3697 = vdwg.mxu0
  %3698 = vst [vmem:[%s26] sm:$0xff] %v3680
  %3699 = vst [vmem:[%s26 + $0x8] sm:$0xff] %v3685
  %3700 = vst [vmem:[%s26 + $0x10] sm:$0xff] %v3690
  %3701 = vst [vmem:[%s26 + $0x18] sm:$0xff] %v3695
  // Predicated region
  $region106: #{multiview_gnn_forward.1} parent=0 // pred_check
    _
  $region107: #{multiview_gnn_forward.1} parent=0 // pred_check_branch
    %3703 = sbr.rel (0) target = $region109
  $region108: #{multiview_gnn_forward.1} parent=0 // pred_region
    _
  $region109: #{multiview_gnn_forward.1} parent=0 // pred_fallthru
    _
  // Predicated region
  $region110: #{multiview_gnn_forward.1} parent=0 // pred_check
    _
  $region111: #{multiview_gnn_forward.1} parent=0 // pred_check_branch
    %3705 = sbr.rel (0) target = $region113
  $region112: #{multiview_gnn_forward.1} parent=0 // pred_region
    _
  $region113: #{multiview_gnn_forward.1} parent=0 // pred_fallthru
    _

</llo_original>
